<compile_context>
chip_gen: v6e
topology: v6e:2x2x1
jax: 0.10.0
libtpu: 0.0.40
codegen_flags: <defaults>
</compile_context>

<pallas_src>
import jax
import jax.numpy as jnp
import numpy as np
from jax import lax
from jax.experimental import pallas as pl
from jax.experimental.pallas import tpu as pltpu


def block_kernel(x_ref, wcat_ref, cdw_ref, w3_ref, out_ref, pad_ref, ysc_ref):
    BB, H, W, Cin = x_ref.shape
    Cmid, Cout = w3_ref.shape
    N = BB * H * W

    # ---- fused conv1 + shortcut: one 1x1 matmul (bf16 MXU, f32 accumulate) ----
    # wcat columns: [0:Cout) = shortcut weights, [Cout:Cout+Cmid) = conv1.
    x2d = x_ref[...].reshape(N, Cin)                               # bf16 (N, Cin)
    y1 = jnp.dot(x2d, wcat_ref[...], preferred_element_type=jnp.float32)
    ysc_ref[...] = y1[:, :Cout]                                    # park shortcut in VMEM
    b1 = cdw_ref[9:10, 0:Cmid]                                     # (1, Cmid)
    h1 = jnp.maximum(y1[:, Cout:Cout + Cmid] + b1, 0.0)            # (N, Cmid) f32

    # ---- conv2: 3x3 depthwise (groups == Cmid), stride=1, pad=1, BN, ReLU ----
    # Zero only the 1-wide border (interior is overwritten right after);
    # per-step, so safe under a "parallel" batch axis.
    zrow = jnp.zeros((BB, 1, W + 2, Cmid), jnp.float32)
    zcol = jnp.zeros((BB, H, 1, Cmid), jnp.float32)
    pad_ref[:, 0:1, :, :] = zrow
    pad_ref[:, H + 1:H + 2, :, :] = zrow
    pad_ref[:, 1:H + 1, 0:1, :] = zcol
    pad_ref[:, 1:H + 1, W + 1:W + 2, :] = zcol
    pad_ref[:, 1:H + 1, 1:W + 1, :] = h1.reshape(BB, H, W, Cmid)

    acc = jnp.zeros((BB, H, W, Cmid), jnp.float32)
    for tap in range(9):                                           # static unroll, f32 VPU MACs
        dy, dx = tap // 3, tap % 3
        w_tap = cdw_ref[tap:tap + 1, 0:Cmid]                       # (1, Cmid) -> broadcasts
        acc = acc + pad_ref[:, dy:dy + H, dx:dx + W, :] * w_tap
    b2 = cdw_ref[10:11, 0:Cmid]
    h2 = jnp.maximum(acc + b2, 0.0)                                # (BB, H, W, Cmid)

    # ---- conv3: 1x1 (Cmid -> Cout), merged bias (b3 + bsc), residual, ReLU ----
    y3 = jnp.dot(h2.reshape(N, Cmid).astype(jnp.bfloat16), w3_ref[...],
                 preferred_element_type=jnp.float32)
    b3 = cdw_ref[11:12, 0:Cout]
    out = jnp.maximum(y3 + ysc_ref[...] + b3, 0.0)
    out_ref[...] = out.reshape(BB, H, W, Cout)


def fold_params(p):
    """Host-side param prep: fold BN scales into weights, fuse conv1+shortcut,
    merge conv3/shortcut biases, pack small per-channel constants into one array."""
    Cin, Cmid = p["w1"].shape
    Cout = p["w3"].shape[1]
    w1f = p["w1"] * p["s1"]                                        # (Cin, Cmid)
    wscf = p["wsc"] * p["ssc"]                                     # (Cin, Cout)
    wcat = jnp.concatenate([wscf, w1f], axis=1).astype(jnp.bfloat16)
    w3f = (p["w3"] * p["s3"]).astype(jnp.bfloat16)                 # (Cmid, Cout)
    # One (12, Cout) f32 array:
    #   rows 0..8 : depthwise taps (BN s2 folded) in cols [0:Cmid]
    #   row  9    : b1 in cols [0:Cmid]
    #   row 10    : b2 in cols [0:Cmid]
    #   row 11    : b3 + bsc (merged) in cols [0:Cout]
    cdw = jnp.zeros((12, Cout), jnp.float32)
    cdw = cdw.at[0:9, 0:Cmid].set(p["wdw"] * p["s2"])
    cdw = cdw.at[9, 0:Cmid].set(p["b1"].reshape(Cmid))
    cdw = cdw.at[10, 0:Cmid].set(p["b2"].reshape(Cmid))
    cdw = cdw.at[11, 0:Cout].set((p["b3"] + p["bsc"]).reshape(Cout))
    return dict(wcat=wcat, w3=w3f, cdw=cdw)


def _default_batch_block(B):
    """Single grid step on single-TC chips (v5e/v6e); shard the batch across
    the 2 TensorCores on v7x via a 'parallel' batch grid axis."""
    try:
        kind = jax.devices()[0].device_kind.lower()
    except Exception:
        kind = ""
    if B > 1 and ("v7" in kind or "7x" in kind):
        return 1
    return B


def block_forward(x_nhwc, fp, batch_block=None):
    B, H, W, Cin = x_nhwc.shape
    Cmid, Cout = fp["w3"].shape
    BB = _default_batch_block(B) if batch_block is None else batch_block
    assert B % BB == 0
    nsteps = B // BB

    x_bf16 = x_nhwc.astype(jnp.bfloat16)

    grid_spec = pltpu.PrefetchScalarGridSpec(
        num_scalar_prefetch=0,
        grid=(nsteps,),
        in_specs=[
            pl.BlockSpec((BB, H, W, Cin), lambda b: (b, 0, 0, 0)),   # x (bf16)
            pl.BlockSpec((Cin, Cout + Cmid), lambda b: (0, 0)),      # fused [wsc | w1] (bf16)
            pl.BlockSpec((12, Cout), lambda b: (0, 0)),              # taps + biases (f32)
            pl.BlockSpec((Cmid, Cout), lambda b: (0, 0)),            # w3 (bf16)
        ],
        out_specs=pl.BlockSpec((BB, H, W, Cout), lambda b: (b, 0, 0, 0)),
        scratch_shapes=[
            pltpu.VMEM((BB, H + 2, W + 2, Cmid), jnp.float32),       # conv2 pad scratch
            pltpu.VMEM((BB * H * W, Cout), jnp.float32),             # parked shortcut (ysc)
        ],
    )
    return pl.pallas_call(
        block_kernel,
        out_shape=jax.ShapeDtypeStruct((B, H, W, Cout), jnp.float32),
        grid_spec=grid_spec,
        compiler_params=pltpu.CompilerParams(
            dimension_semantics=("parallel",),
            vmem_limit_bytes=16 * 1024 * 1024),     # explicit, well under v7x 32 MiB scoped default
    )(x_bf16, fp["wcat"], fp["cdw"], fp["w3"])


def make_params(key, Cin, Cout):
    """Deterministic synthetic params; BN folded (eval mode, eps=1e-5)."""
    Cmid = Cout // 2
    eps = 1e-5
    keys = iter(jax.random.split(key, 32))
    nk = lambda: next(keys)

    def bn_fold(C, extra_bias=None):
        gamma = jax.random.uniform(nk(), (C,), jnp.float32, 0.5, 1.5)
        beta = 0.1 * jax.random.normal(nk(), (C,), jnp.float32)
        mean = 0.1 * jax.random.normal(nk(), (C,), jnp.float32)
        var = jax.random.uniform(nk(), (C,), jnp.float32, 0.5, 1.5)
        scale = gamma / jnp.sqrt(var + eps)
        bias = beta - mean * scale
        if extra_bias is not None:                  # fold conv bias through BN
            bias = bias + extra_bias * scale
        return scale.reshape(1, C), bias.reshape(1, C)

    w1 = jax.random.normal(nk(), (Cin, Cmid), jnp.float32) / np.sqrt(Cin)
    s1, b1 = bn_fold(Cmid)
    wdw = jax.random.normal(nk(), (9, Cmid), jnp.float32) / 3.0       # (tap, ch)
    s2, b2 = bn_fold(Cmid)
    w3 = jax.random.normal(nk(), (Cmid, Cout), jnp.float32) / np.sqrt(Cmid)
    s3, b3 = bn_fold(Cout)
    wsc = jax.random.normal(nk(), (Cin, Cout), jnp.float32) / np.sqrt(Cin)
    bsc_conv = 0.1 * jax.random.normal(nk(), (Cout,), jnp.float32)
    ssc, bsc = bn_fold(Cout, extra_bias=bsc_conv)
    return dict(w1=w1, s1=s1, b1=b1, wdw=wdw, s2=s2, b2=b2,
                w3=w3, s3=s3, b3=b3, wsc=wsc, ssc=ssc, bsc=bsc)


def block_reference(x_nhwc, p):
    """Pure-JAX reference (lax.conv, HIGHEST precision) with identical semantics."""
    dn = ("NHWC", "HWIO", "NHWC")
    HIGH = lax.Precision.HIGHEST
    Cin, Cmid = p["w1"].shape
    Cout = p["w3"].shape[1]
    h = lax.conv_general_dilated(x_nhwc, p["w1"].reshape(1, 1, Cin, Cmid),
                                 (1, 1), "VALID", dimension_numbers=dn,
                                 precision=HIGH)
    h = jnp.maximum(h * p["s1"] + p["b1"], 0.0)
    wdw = p["wdw"].reshape(3, 3, 1, Cmid)
    h = lax.conv_general_dilated(h, wdw, (1, 1), ((1, 1), (1, 1)),
                                 dimension_numbers=dn,
                                 feature_group_count=Cmid, precision=HIGH)
    h = jnp.maximum(h * p["s2"] + p["b2"], 0.0)
    y3 = lax.conv_general_dilated(h, p["w3"].reshape(1, 1, Cmid, Cout),
                                  (1, 1), "VALID", dimension_numbers=dn,
                                  precision=HIGH)
    y3 = y3 * p["s3"] + p["b3"]
    ysc = lax.conv_general_dilated(x_nhwc, p["wsc"].reshape(1, 1, Cin, Cout),
                                   (1, 1), "VALID", dimension_numbers=dn,
                                   precision=HIGH)
    ysc = ysc * p["ssc"] + p["bsc"]
    return jnp.maximum(y3 + ysc, 0.0)


if __name__ == "__main__":
    # groups=32 in conv2 requires out_channels//2 to be a multiple of 32 ->
    # out_channels=64 (Cmid=32, conv2 is depthwise 3x3), stride=1, is_shortcut=True.
    B, Cin, H, W = 2, 64, 16, 16
    Cout = 64

    key = jax.random.PRNGKey(0)
    kx, kp = jax.random.split(key)
    x_nchw = jax.random.normal(kx, (B, Cin, H, W), jnp.float32)   # PyTorch NCHW
    x_nhwc = jnp.transpose(x_nchw, (0, 2, 3, 1))                  # kernel layout

    params = make_params(kp, Cin, Cout)
    folded = fold_params(params)

    out = block_forward(x_nhwc, folded)
    out = jax.block_until_ready(out)

    ref = jax.block_until_ready(block_reference(x_nhwc, params))
    # Kernel matmuls use bf16 inputs with f32 accumulation (same numerics as
    # the previous DEFAULT-precision single-pass bf16 MXU run); the reference
    # is full-f32 HIGHEST, so tolerances reflect bf16 input rounding.
    np.testing.assert_allclose(np.asarray(out), np.asarray(ref),
                               atol=5e-2, rtol=5e-2)
    print("KERNEL_OK")
</pallas_src>

<mosaic_0001>
module attributes {stable_mosaic.version = 11 : i64} {
  func.func @block_kernel(%arg0: i32, %arg1: memref<2x16x16x64xbf16, #tpu.memory_space<vmem>>, %arg2: memref<64x96xbf16, #tpu.memory_space<vmem>>, %arg3: memref<12x64xf32, #tpu.memory_space<vmem>>, %arg4: memref<32x64xbf16, #tpu.memory_space<vmem>>, %arg5: memref<2x16x16x64xf32, #tpu.memory_space<vmem>>, %arg6: memref<2x18x18x32xf32, #tpu.memory_space<vmem>>, %arg7: memref<512x64xf32, #tpu.memory_space<vmem>>) attributes {dimension_semantics = [#tpu.dimension_semantics<parallel>], iteration_bounds = array<i64: 1>, scalar_prefetch = 0 : i64, scratch_operands = 2 : i64, tpu.core_type = #tpu.core_type<tc>, window_params = [{transform_indices = @transform_0, window_bounds = array<i64: 2, 16, 16, 64>}, {pipeline_mode = #tpu.pipeline_mode<synchronous>, transform_indices = @transform_1, window_bounds = array<i64: 64, 96>}, {pipeline_mode = #tpu.pipeline_mode<synchronous>, transform_indices = @transform_2, window_bounds = array<i64: 12, 64>}, {pipeline_mode = #tpu.pipeline_mode<synchronous>, transform_indices = @transform_3, window_bounds = array<i64: 32, 64>}, {transform_indices = @transform_4, window_bounds = array<i64: 2, 16, 16, 64>}]} {
    %c0 = arith.constant 0 : index
    %c0_0 = arith.constant 0 : index
    %c0_1 = arith.constant 0 : index
    %c0_2 = arith.constant 0 : index
    %0 = vector.load %arg1[%c0, %c0_0, %c0_1, %c0_2] : memref<2x16x16x64xbf16, #tpu.memory_space<vmem>>, vector<2x16x16x64xbf16>
    %1 = vector.shape_cast %0 : vector<2x16x16x64xbf16> to vector<512x64xbf16>
    %c0_3 = arith.constant 0 : index
    %c0_4 = arith.constant 0 : index
    %2 = vector.load %arg2[%c0_3, %c0_4] : memref<64x96xbf16, #tpu.memory_space<vmem>>, vector<64x96xbf16>
    %cst = arith.constant dense<0.000000e+00> : vector<512x96xf32>
    %3 = tpu.matmul %1, %2, %cst {dimension_numbers = #tpu.dot_dimension_numbers<[1], [0], [0], [1], [0, 0, 1, 1], [], []>} : vector<512x64xbf16>, vector<64x96xbf16>, vector<512x96xf32> -> vector<512x96xf32>
    %4 = vector.extract_strided_slice %3 {offsets = [0, 0], sizes = [512, 64], strides = [1, 1]} : vector<512x96xf32> to vector<512x64xf32>
    %c0_5 = arith.constant 0 : index
    %c0_6 = arith.constant 0 : index
    %5 = vector.load %arg7[%c0_5, %c0_6] : memref<512x64xf32, #tpu.memory_space<vmem>>, vector<512x64xf32>
    tpu.vector_store %arg7[%c0_5, %c0_6], %4 {strides = array<i32>} : memref<512x64xf32, #tpu.memory_space<vmem>>, vector<512x64xf32>,
    %c9 = arith.constant 9 : index
    %c0_7 = arith.constant 0 : index
    %6 = vector.load %arg3[%c9, %c0_7] : memref<12x64xf32, #tpu.memory_space<vmem>>, vector<1x32xf32>
    %7 = vector.extract_strided_slice %3 {offsets = [0, 64], sizes = [512, 32], strides = [1, 1]} : vector<512x96xf32> to vector<512x32xf32>
    %8 = vector.broadcast %6 : vector<1x32xf32> to vector<512x32xf32>
    %9 = arith.addf %7, %8 : vector<512x32xf32>
    %cst_8 = arith.constant 0.000000e+00 : f32
    %10 = vector.broadcast %cst_8 : f32 to vector<512x32xf32>
    %11 = arith.maximumf %9, %10 : vector<512x32xf32>
    %cst_9 = arith.constant 0.000000e+00 : f32
    %12 = vector.broadcast %cst_9 : f32 to vector<2x1x18x32xf32>
    %cst_10 = arith.constant 0.000000e+00 : f32
    %13 = vector.broadcast %cst_10 : f32 to vector<2x16x1x32xf32>
    %c0_11 = arith.constant 0 : index
    %c0_12 = arith.constant 0 : index
    %c0_13 = arith.constant 0 : index
    %c0_14 = arith.constant 0 : index
    %14 = vector.load %arg6[%c0_11, %c0_12, %c0_13, %c0_14] : memref<2x18x18x32xf32, #tpu.memory_space<vmem>>, vector<2x1x18x32xf32>
    tpu.vector_store %arg6[%c0_11, %c0_12, %c0_13, %c0_14], %12 {strides = array<i32>} : memref<2x18x18x32xf32, #tpu.memory_space<vmem>>, vector<2x1x18x32xf32>,
    %c0_15 = arith.constant 0 : index
    %c17 = arith.constant 17 : index
    %c0_16 = arith.constant 0 : index
    %c0_17 = arith.constant 0 : index
    %15 = vector.load %arg6[%c0_15, %c17, %c0_16, %c0_17] : memref<2x18x18x32xf32, #tpu.memory_space<vmem>>, vector<2x1x18x32xf32>
    tpu.vector_store %arg6[%c0_15, %c17, %c0_16, %c0_17], %12 {strides = array<i32>} : memref<2x18x18x32xf32, #tpu.memory_space<vmem>>, vector<2x1x18x32xf32>,
    %c0_18 = arith.constant 0 : index
    %c1 = arith.constant 1 : index
    %c0_19 = arith.constant 0 : index
    %c0_20 = arith.constant 0 : index
    %16 = vector.load %arg6[%c0_18, %c1, %c0_19, %c0_20] : memref<2x18x18x32xf32, #tpu.memory_space<vmem>>, vector<2x16x1x32xf32>
    tpu.vector_store %arg6[%c0_18, %c1, %c0_19, %c0_20], %13 {strides = array<i32>} : memref<2x18x18x32xf32, #tpu.memory_space<vmem>>, vector<2x16x1x32xf32>,
    %c0_21 = arith.constant 0 : index
    %c1_22 = arith.constant 1 : index
    %c17_23 = arith.constant 17 : index
    %c0_24 = arith.constant 0 : index
    %17 = vector.load %arg6[%c0_21, %c1_22, %c17_23, %c0_24] : memref<2x18x18x32xf32, #tpu.memory_space<vmem>>, vector<2x16x1x32xf32>
    tpu.vector_store %arg6[%c0_21, %c1_22, %c17_23, %c0_24], %13 {strides = array<i32>} : memref<2x18x18x32xf32, #tpu.memory_space<vmem>>, vector<2x16x1x32xf32>,
    %18 = vector.shape_cast %11 : vector<512x32xf32> to vector<2x16x16x32xf32>
    %c0_25 = arith.constant 0 : index
    %c1_26 = arith.constant 1 : index
    %c1_27 = arith.constant 1 : index
    %c0_28 = arith.constant 0 : index
    %19 = vector.load %arg6[%c0_25, %c1_26, %c1_27, %c0_28] : memref<2x18x18x32xf32, #tpu.memory_space<vmem>>, vector<2x16x16x32xf32>
    tpu.vector_store %arg6[%c0_25, %c1_26, %c1_27, %c0_28], %18 {strides = array<i32>} : memref<2x18x18x32xf32, #tpu.memory_space<vmem>>, vector<2x16x16x32xf32>,
    %cst_29 = arith.constant 0.000000e+00 : f32
    %20 = vector.broadcast %cst_29 : f32 to vector<2x16x16x32xf32>
    %c0_30 = arith.constant 0 : index
    %c0_31 = arith.constant 0 : index
    %21 = vector.load %arg3[%c0_30, %c0_31] : memref<12x64xf32, #tpu.memory_space<vmem>>, vector<1x32xf32>
    %c0_32 = arith.constant 0 : index
    %c0_33 = arith.constant 0 : index
    %c0_34 = arith.constant 0 : index
    %c0_35 = arith.constant 0 : index
    %22 = vector.load %arg6[%c0_32, %c0_33, %c0_34, %c0_35] : memref<2x18x18x32xf32, #tpu.memory_space<vmem>>, vector<2x16x16x32xf32>
    %23 = vector.shape_cast %21 : vector<1x32xf32> to vector<1x1x1x32xf32>
    %24 = vector.broadcast %23 : vector<1x1x1x32xf32> to vector<2x16x16x32xf32>
    %25 = arith.mulf %22, %24 : vector<2x16x16x32xf32>
    %26 = arith.addf %20, %25 : vector<2x16x16x32xf32>
    %c1_36 = arith.constant 1 : index
    %c0_37 = arith.constant 0 : index
    %27 = vector.load %arg3[%c1_36, %c0_37] : memref<12x64xf32, #tpu.memory_space<vmem>>, vector<1x32xf32>
    %c0_38 = arith.constant 0 : index
    %c0_39 = arith.constant 0 : index
    %c1_40 = arith.constant 1 : index
    %c0_41 = arith.constant 0 : index
    %28 = vector.load %arg6[%c0_38, %c0_39, %c1_40, %c0_41] : memref<2x18x18x32xf32, #tpu.memory_space<vmem>>, vector<2x16x16x32xf32>
    %29 = vector.shape_cast %27 : vector<1x32xf32> to vector<1x1x1x32xf32>
    %30 = vector.broadcast %29 : vector<1x1x1x32xf32> to vector<2x16x16x32xf32>
    %31 = arith.mulf %28, %30 : vector<2x16x16x32xf32>
    %32 = arith.addf %26, %31 : vector<2x16x16x32xf32>
    %c2 = arith.constant 2 : index
    %c0_42 = arith.constant 0 : index
    %33 = vector.load %arg3[%c2, %c0_42] : memref<12x64xf32, #tpu.memory_space<vmem>>, vector<1x32xf32>
    %c0_43 = arith.constant 0 : index
    %c0_44 = arith.constant 0 : index
    %c2_45 = arith.constant 2 : index
    %c0_46 = arith.constant 0 : index
    %34 = vector.load %arg6[%c0_43, %c0_44, %c2_45, %c0_46] : memref<2x18x18x32xf32, #tpu.memory_space<vmem>>, vector<2x16x16x32xf32>
    %35 = vector.shape_cast %33 : vector<1x32xf32> to vector<1x1x1x32xf32>
    %36 = vector.broadcast %35 : vector<1x1x1x32xf32> to vector<2x16x16x32xf32>
    %37 = arith.mulf %34, %36 : vector<2x16x16x32xf32>
    %38 = arith.addf %32, %37 : vector<2x16x16x32xf32>
    %c3 = arith.constant 3 : index
    %c0_47 = arith.constant 0 : index
    %39 = vector.load %arg3[%c3, %c0_47] : memref<12x64xf32, #tpu.memory_space<vmem>>, vector<1x32xf32>
    %c0_48 = arith.constant 0 : index
    %c1_49 = arith.constant 1 : index
    %c0_50 = arith.constant 0 : index
    %c0_51 = arith.constant 0 : index
    %40 = vector.load %arg6[%c0_48, %c1_49, %c0_50, %c0_51] : memref<2x18x18x32xf32, #tpu.memory_space<vmem>>, vector<2x16x16x32xf32>
    %41 = vector.shape_cast %39 : vector<1x32xf32> to vector<1x1x1x32xf32>
    %42 = vector.broadcast %41 : vector<1x1x1x32xf32> to vector<2x16x16x32xf32>
    %43 = arith.mulf %40, %42 : vector<2x16x16x32xf32>
    %44 = arith.addf %38, %43 : vector<2x16x16x32xf32>
    %c4 = arith.constant 4 : index
    %c0_52 = arith.constant 0 : index
    %45 = vector.load %arg3[%c4, %c0_52] : memref<12x64xf32, #tpu.memory_space<vmem>>, vector<1x32xf32>
    %c0_53 = arith.constant 0 : index
    %c1_54 = arith.constant 1 : index
    %c1_55 = arith.constant 1 : index
    %c0_56 = arith.constant 0 : index
    %46 = vector.load %arg6[%c0_53, %c1_54, %c1_55, %c0_56] : memref<2x18x18x32xf32, #tpu.memory_space<vmem>>, vector<2x16x16x32xf32>
    %47 = vector.shape_cast %45 : vector<1x32xf32> to vector<1x1x1x32xf32>
    %48 = vector.broadcast %47 : vector<1x1x1x32xf32> to vector<2x16x16x32xf32>
    %49 = arith.mulf %46, %48 : vector<2x16x16x32xf32>
    %50 = arith.addf %44, %49 : vector<2x16x16x32xf32>
    %c5 = arith.constant 5 : index
    %c0_57 = arith.constant 0 : index
    %51 = vector.load %arg3[%c5, %c0_57] : memref<12x64xf32, #tpu.memory_space<vmem>>, vector<1x32xf32>
    %c0_58 = arith.constant 0 : index
    %c1_59 = arith.constant 1 : index
    %c2_60 = arith.constant 2 : index
    %c0_61 = arith.constant 0 : index
    %52 = vector.load %arg6[%c0_58, %c1_59, %c2_60, %c0_61] : memref<2x18x18x32xf32, #tpu.memory_space<vmem>>, vector<2x16x16x32xf32>
    %53 = vector.shape_cast %51 : vector<1x32xf32> to vector<1x1x1x32xf32>
    %54 = vector.broadcast %53 : vector<1x1x1x32xf32> to vector<2x16x16x32xf32>
    %55 = arith.mulf %52, %54 : vector<2x16x16x32xf32>
    %56 = arith.addf %50, %55 : vector<2x16x16x32xf32>
    %c6 = arith.constant 6 : index
    %c0_62 = arith.constant 0 : index
    %57 = vector.load %arg3[%c6, %c0_62] : memref<12x64xf32, #tpu.memory_space<vmem>>, vector<1x32xf32>
    %c0_63 = arith.constant 0 : index
    %c2_64 = arith.constant 2 : index
    %c0_65 = arith.constant 0 : index
    %c0_66 = arith.constant 0 : index
    %58 = vector.load %arg6[%c0_63, %c2_64, %c0_65, %c0_66] : memref<2x18x18x32xf32, #tpu.memory_space<vmem>>, vector<2x16x16x32xf32>
    %59 = vector.shape_cast %57 : vector<1x32xf32> to vector<1x1x1x32xf32>
    %60 = vector.broadcast %59 : vector<1x1x1x32xf32> to vector<2x16x16x32xf32>
    %61 = arith.mulf %58, %60 : vector<2x16x16x32xf32>
    %62 = arith.addf %56, %61 : vector<2x16x16x32xf32>
    %c7 = arith.constant 7 : index
    %c0_67 = arith.constant 0 : index
    %63 = vector.load %arg3[%c7, %c0_67] : memref<12x64xf32, #tpu.memory_space<vmem>>, vector<1x32xf32>
    %c0_68 = arith.constant 0 : index
    %c2_69 = arith.constant 2 : index
    %c1_70 = arith.constant 1 : index
    %c0_71 = arith.constant 0 : index
    %64 = vector.load %arg6[%c0_68, %c2_69, %c1_70, %c0_71] : memref<2x18x18x32xf32, #tpu.memory_space<vmem>>, vector<2x16x16x32xf32>
    %65 = vector.shape_cast %63 : vector<1x32xf32> to vector<1x1x1x32xf32>
    %66 = vector.broadcast %65 : vector<1x1x1x32xf32> to vector<2x16x16x32xf32>
    %67 = arith.mulf %64, %66 : vector<2x16x16x32xf32>
    %68 = arith.addf %62, %67 : vector<2x16x16x32xf32>
    %c8 = arith.constant 8 : index
    %c0_72 = arith.constant 0 : index
    %69 = vector.load %arg3[%c8, %c0_72] : memref<12x64xf32, #tpu.memory_space<vmem>>, vector<1x32xf32>
    %c0_73 = arith.constant 0 : index
    %c2_74 = arith.constant 2 : index
    %c2_75 = arith.constant 2 : index
    %c0_76 = arith.constant 0 : index
    %70 = vector.load %arg6[%c0_73, %c2_74, %c2_75, %c0_76] : memref<2x18x18x32xf32, #tpu.memory_space<vmem>>, vector<2x16x16x32xf32>
    %71 = vector.shape_cast %69 : vector<1x32xf32> to vector<1x1x1x32xf32>
    %72 = vector.broadcast %71 : vector<1x1x1x32xf32> to vector<2x16x16x32xf32>
    %73 = arith.mulf %70, %72 : vector<2x16x16x32xf32>
    %74 = arith.addf %68, %73 : vector<2x16x16x32xf32>
    %c10 = arith.constant 10 : index
    %c0_77 = arith.constant 0 : index
    %75 = vector.load %arg3[%c10, %c0_77] : memref<12x64xf32, #tpu.memory_space<vmem>>, vector<1x32xf32>
    %76 = vector.shape_cast %75 : vector<1x32xf32> to vector<1x1x1x32xf32>
    %77 = vector.broadcast %76 : vector<1x1x1x32xf32> to vector<2x16x16x32xf32>
    %78 = arith.addf %74, %77 : vector<2x16x16x32xf32>
    %cst_78 = arith.constant 0.000000e+00 : f32
    %79 = vector.broadcast %cst_78 : f32 to vector<2x16x16x32xf32>
    %80 = arith.maximumf %78, %79 : vector<2x16x16x32xf32>
    %81 = vector.shape_cast %80 : vector<2x16x16x32xf32> to vector<512x32xf32>
    %82 = arith.truncf %81 : vector<512x32xf32> to vector<512x32xbf16>
    %c0_79 = arith.constant 0 : index
    %c0_80 = arith.constant 0 : index
    %83 = vector.load %arg4[%c0_79, %c0_80] : memref<32x64xbf16, #tpu.memory_space<vmem>>, vector<32x64xbf16>
    %cst_81 = arith.constant dense<0.000000e+00> : vector<512x64xf32>
    %84 = tpu.matmul %82, %83, %cst_81 {dimension_numbers = #tpu.dot_dimension_numbers<[1], [0], [0], [1], [0, 0, 1, 1], [], []>} : vector<512x32xbf16>, vector<32x64xbf16>, vector<512x64xf32> -> vector<512x64xf32>
    %c11 = arith.constant 11 : index
    %c0_82 = arith.constant 0 : index
    %85 = vector.load %arg3[%c11, %c0_82] : memref<12x64xf32, #tpu.memory_space<vmem>>, vector<1x64xf32>
    %c0_83 = arith.constant 0 : index
    %c0_84 = arith.constant 0 : index
    %86 = vector.load %arg7[%c0_83, %c0_84] : memref<512x64xf32, #tpu.memory_space<vmem>>, vector<512x64xf32>
    %87 = arith.addf %84, %86 : vector<512x64xf32>
    %88 = vector.broadcast %85 : vector<1x64xf32> to vector<512x64xf32>
    %89 = arith.addf %87, %88 : vector<512x64xf32>
    %cst_85 = arith.constant 0.000000e+00 : f32
    %90 = vector.broadcast %cst_85 : f32 to vector<512x64xf32>
    %91 = arith.maximumf %89, %90 : vector<512x64xf32>
    %92 = vector.shape_cast %91 : vector<512x64xf32> to vector<2x16x16x64xf32>
    %c0_86 = arith.constant 0 : index
    %c0_87 = arith.constant 0 : index
    %c0_88 = arith.constant 0 : index
    %c0_89 = arith.constant 0 : index
    %93 = vector.load %arg5[%c0_86, %c0_87, %c0_88, %c0_89] : memref<2x16x16x64xf32, #tpu.memory_space<vmem>>, vector<2x16x16x64xf32>
    tpu.vector_store %arg5[%c0_86, %c0_87, %c0_88, %c0_89], %92 {strides = array<i32>} : memref<2x16x16x64xf32, #tpu.memory_space<vmem>>, vector<2x16x16x64xf32>,
    return
  }
  func.func @transform_0(%arg0: i32) -> (i32, i32, i32, i32) {
    %c0_i32 = arith.constant 0 : i32
    %c0_i32_0 = arith.constant 0 : i32
    %c0_i32_1 = arith.constant 0 : i32
    %c0_i32_2 = arith.constant 0 : i32
    return %arg0, %c0_i32, %c0_i32_0, %c0_i32_1 : i32, i32, i32, i32
  }
  func.func @transform_1(%arg0: i32) -> (i32, i32) {
    %c0_i32 = arith.constant 0 : i32
    %c0_i32_0 = arith.constant 0 : i32
    %c0_i32_1 = arith.constant 0 : i32
    return %c0_i32, %c0_i32_0 : i32, i32
  }
  func.func @transform_2(%arg0: i32) -> (i32, i32) {
    %c0_i32 = arith.constant 0 : i32
    %c0_i32_0 = arith.constant 0 : i32
    %c0_i32_1 = arith.constant 0 : i32
    return %c0_i32, %c0_i32_0 : i32, i32
  }
  func.func @transform_3(%arg0: i32) -> (i32, i32) {
    %c0_i32 = arith.constant 0 : i32
    %c0_i32_0 = arith.constant 0 : i32
    %c0_i32_1 = arith.constant 0 : i32
    return %c0_i32, %c0_i32_0 : i32, i32
  }
  func.func @transform_4(%arg0: i32) -> (i32, i32, i32, i32) {
    %c0_i32 = arith.constant 0 : i32
    %c0_i32_0 = arith.constant 0 : i32
    %c0_i32_1 = arith.constant 0 : i32
    %c0_i32_2 = arith.constant 0 : i32
    return %arg0, %c0_i32, %c0_i32_0, %c0_i32_1 : i32, i32, i32, i32
  }
}

</mosaic_0001>

<llo_original>
// kernel: tpu_custom_call.1
$region0: #{tpu_custom_call.1}
  #allocation0 [shape = 'u32[]', space=smem, size = 0x4, offset = 0x4, fixed_abs, tag = 'smem constant byte address 0x4 - core index']
  #allocation1 [shape = 'u32[144,128]{1,0:T(1,128)}', space=vmem, size = 0x12000, scoped, tag = 'internal scratch']
  #allocation2 [shape = 'f32[2,18,18,32]{3,2,1,0:T(8,128)}', space=vmem, size = 0x6c000, scoped, tag = 'scratch operand']
  #allocation3 [shape = 'f32[512,64]{1,0:T(8,128)}', space=vmem, size = 0x40000, scoped, tag = 'scratch operand']
  %s0 = inlined_call_operand.hbm [shape: bf16[2,16,16,64], index: 0, kind: input, shape index: {}]
  %s1 = inlined_call_operand.hbm [shape: bf16[64,96], index: 1, kind: input, shape index: {}]
  %s2 = inlined_call_operand.hbm [shape: f32[12,64], index: 2, kind: input, shape index: {}]
  %s3 = inlined_call_operand.hbm [shape: bf16[32,64], index: 3, kind: input, shape index: {}]
  %s4 = inlined_call_operand.hbm [shape: f32[2,16,16,64], index: 4, kind: output, shape index: {}]
  %s5 = sld [smem:[#allocation0]]
  $region42: #{tpu_custom_call.1} parent=0
    _
  %s7 = ssub.s32 1, %s5
  %s8 = scalar_select 0, %s7, %s5
  $region1: #{tpu_custom_call.1} parent=0
    #allocation4 [shape = 'u8[131072]{0}', space=vmem, size = 0x20000, scoped, tag = 'input window, operand 0, single buffered']
    #allocation5 [shape = 's32[1]{0}', space=sflag, size = 0x4, scoped, tag = 'scoped memory for tpu_custom_call.1']
    #allocation6 [shape = 's32[1]{0}', space=sflag, size = 0x4, scoped, tag = 'scoped memory for tpu_custom_call.1']
    #allocation7 [shape = 'u8[16384]{0}', space=vmem, size = 0x4000, scoped, tag = 'input window, operand 1, single buffered']
    #allocation8 [shape = 's32[1]{0}', space=sflag, size = 0x4, scoped, tag = 'scoped memory for tpu_custom_call.1']
    #allocation9 [shape = 'u8[8192]{0}', space=vmem, size = 0x2000, scoped, tag = 'input window, operand 2, single buffered']
    #allocation10 [shape = 'u8[8192]{0}', space=vmem, size = 0x2000, scoped, tag = 'input window, operand 3, single buffered']
    #allocation11 [shape = 's32[1]{0}', space=sflag, size = 0x4, scoped, tag = 'scoped memory for tpu_custom_call.1']
    #allocation12 [shape = 'u8[262144]{0}', space=vmem, size = 0x40000, scoped, tag = 'output window, operand 0, single buffered']
    %9 = vsyncpa [#allocation5], 0
    %10 = vsyncpa [#allocation8], 0
    %11 = vsyncpa [#allocation11], 0
    %12 = vsyncpa [#allocation6], 0
    // Predicated region
    $region2: #{tpu_custom_call.1} parent=1 // pred_check
      _
    $region3: #{tpu_custom_call.1} parent=1 // pred_check_branch
      %14 = sbr.rel (0) target = $region5
    $region4: #{tpu_custom_call.1} parent=1 // pred_region
      %s16 = ssub.s32 4096, 4096
      %17 = vsyncadd [#allocation5], %s16
      %s18 = sshll.u32 [#allocation4], 4
      %s19 = int_to_ptr.vmem [resolvable:$true] %s18
      %24 = dma.hbm_to_vmem [thread:$0]  %s0, 4096, %s19, [#allocation5], 64, 64, 4
    $region5: #{tpu_custom_call.1} parent=1 // pred_fallthru
      _
    // Predicated region
    $region6: #{tpu_custom_call.1} parent=1 // pred_check
      _
    $region7: #{tpu_custom_call.1} parent=1 // pred_check_branch
      %26 = sbr.rel (0) target = $region9
    $region8: #{tpu_custom_call.1} parent=1 // pred_region
      %s28 = ssub.s32 512, 512
      %29 = vsyncadd [#allocation8], %s28
      %s30 = sshll.u32 [#allocation7], 4
      %s31 = int_to_ptr.vmem [resolvable:$true] %s30
      %36 = dma.hbm_to_vmem [thread:$0]  %s1, 512, %s31, [#allocation8], 64, 64, 4
    $region9: #{tpu_custom_call.1} parent=1 // pred_fallthru
      _
    // Predicated region
    $region10: #{tpu_custom_call.1} parent=1 // pred_check
      _
    $region11: #{tpu_custom_call.1} parent=1 // pred_check_branch
      %38 = sbr.rel (0) target = $region13
    $region12: #{tpu_custom_call.1} parent=1 // pred_region
      %s40 = ssub.s32 256, 256
      %41 = vsyncadd [#allocation8], %s40
      %s42 = sshll.u32 [#allocation9], 4
      %s43 = int_to_ptr.vmem [resolvable:$true] %s42
      %48 = dma.hbm_to_vmem [thread:$0]  %s2, 256, %s43, [#allocation8], 128, 128, 8
    $region13: #{tpu_custom_call.1} parent=1 // pred_fallthru
      _
    // Predicated region
    $region14: #{tpu_custom_call.1} parent=1 // pred_check
      _
    $region15: #{tpu_custom_call.1} parent=1 // pred_check_branch
      %50 = sbr.rel (0) target = $region17
    $region16: #{tpu_custom_call.1} parent=1 // pred_region
      %s52 = ssub.s32 256, 256
      %53 = vsyncadd [#allocation11], %s52
      %s54 = sshll.u32 [#allocation10], 4
      %s55 = int_to_ptr.vmem [resolvable:$true] %s54
      %60 = dma.hbm_to_vmem [thread:$0]  %s3, 256, %s55, [#allocation11], 64, 64, 4
    $region17: #{tpu_custom_call.1} parent=1 // pred_fallthru
      _
    // Predicated region
    $region18: #{tpu_custom_call.1} parent=1 // pred_check
      _
    $region19: #{tpu_custom_call.1} parent=1 // pred_check_branch
      %62 = sbr.rel (0) target = $region21
    $region20: #{tpu_custom_call.1} parent=1 // pred_region
      %63 = dma.done [#allocation5], 4096
    $region21: #{tpu_custom_call.1} parent=1 // pred_fallthru
      _
    // Predicated region
    $region22: #{tpu_custom_call.1} parent=1 // pred_check
      _
    $region23: #{tpu_custom_call.1} parent=1 // pred_check_branch
      %65 = sbr.rel (0) target = $region25
    $region24: #{tpu_custom_call.1} parent=1 // pred_region
      %66 = dma.done [#allocation8], 512
    $region25: #{tpu_custom_call.1} parent=1 // pred_fallthru
      _
    // Predicated region
    $region26: #{tpu_custom_call.1} parent=1 // pred_check
      _
    $region27: #{tpu_custom_call.1} parent=1 // pred_check_branch
      %68 = sbr.rel (0) target = $region29
    $region28: #{tpu_custom_call.1} parent=1 // pred_region
      %69 = dma.done [#allocation8], 256
    $region29: #{tpu_custom_call.1} parent=1 // pred_fallthru
      _
    // Predicated region
    $region30: #{tpu_custom_call.1} parent=1 // pred_check
      _
    $region31: #{tpu_custom_call.1} parent=1 // pred_check_branch
      %71 = sbr.rel (0) target = $region33
    $region32: #{tpu_custom_call.1} parent=1 // pred_region
      %72 = dma.done [#allocation11], 256
    $region33: #{tpu_custom_call.1} parent=1 // pred_fallthru
      _
    %v74 = vld [vmem:[#allocation4] sm:$0xf]
    %v75 = vld [vmem:[#allocation4 + $0x4] sm:$0xf]
    %v76 = vld [vmem:[#allocation4 + $0x8] sm:$0xf]
    %v77 = vld [vmem:[#allocation4 + $0xc] sm:$0xf]
    %v78 = vld [vmem:[#allocation4 + $0x10] sm:$0xf]
    %v79 = vld [vmem:[#allocation4 + $0x14] sm:$0xf]
    %v80 = vld [vmem:[#allocation4 + $0x18] sm:$0xf]
    %v81 = vld [vmem:[#allocation4 + $0x1c] sm:$0xf]
    %v82 = vld [vmem:[#allocation4 + $0x20] sm:$0xf]
    %v83 = vld [vmem:[#allocation4 + $0x24] sm:$0xf]
    %v84 = vld [vmem:[#allocation4 + $0x28] sm:$0xf]
    %v85 = vld [vmem:[#allocation4 + $0x2c] sm:$0xf]
    %v86 = vld [vmem:[#allocation4 + $0x30] sm:$0xf]
    %v87 = vld [vmem:[#allocation4 + $0x34] sm:$0xf]
    %v88 = vld [vmem:[#allocation4 + $0x38] sm:$0xf]
    %v89 = vld [vmem:[#allocation4 + $0x3c] sm:$0xf]
    %v90 = vld [vmem:[#allocation4 + $0x40] sm:$0xf]
    %v91 = vld [vmem:[#allocation4 + $0x44] sm:$0xf]
    %v92 = vld [vmem:[#allocation4 + $0x48] sm:$0xf]
    %v93 = vld [vmem:[#allocation4 + $0x4c] sm:$0xf]
    %v94 = vld [vmem:[#allocation4 + $0x50] sm:$0xf]
    %v95 = vld [vmem:[#allocation4 + $0x54] sm:$0xf]
    %v96 = vld [vmem:[#allocation4 + $0x58] sm:$0xf]
    %v97 = vld [vmem:[#allocation4 + $0x5c] sm:$0xf]
    %v98 = vld [vmem:[#allocation4 + $0x60] sm:$0xf]
    %v99 = vld [vmem:[#allocation4 + $0x64] sm:$0xf]
    %v100 = vld [vmem:[#allocation4 + $0x68] sm:$0xf]
    %v101 = vld [vmem:[#allocation4 + $0x6c] sm:$0xf]
    %v102 = vld [vmem:[#allocation4 + $0x70] sm:$0xf]
    %v103 = vld [vmem:[#allocation4 + $0x74] sm:$0xf]
    %v104 = vld [vmem:[#allocation4 + $0x78] sm:$0xf]
    %v105 = vld [vmem:[#allocation4 + $0x7c] sm:$0xf]
    %v106 = vld [vmem:[#allocation4 + $0x80] sm:$0xf]
    %v107 = vld [vmem:[#allocation4 + $0x84] sm:$0xf]
    %v108 = vld [vmem:[#allocation4 + $0x88] sm:$0xf]
    %v109 = vld [vmem:[#allocation4 + $0x8c] sm:$0xf]
    %v110 = vld [vmem:[#allocation4 + $0x90] sm:$0xf]
    %v111 = vld [vmem:[#allocation4 + $0x94] sm:$0xf]
    %v112 = vld [vmem:[#allocation4 + $0x98] sm:$0xf]
    %v113 = vld [vmem:[#allocation4 + $0x9c] sm:$0xf]
    %v114 = vld [vmem:[#allocation4 + $0xa0] sm:$0xf]
    %v115 = vld [vmem:[#allocation4 + $0xa4] sm:$0xf]
    %v116 = vld [vmem:[#allocation4 + $0xa8] sm:$0xf]
    %v117 = vld [vmem:[#allocation4 + $0xac] sm:$0xf]
    %v118 = vld [vmem:[#allocation4 + $0xb0] sm:$0xf]
    %v119 = vld [vmem:[#allocation4 + $0xb4] sm:$0xf]
    %v120 = vld [vmem:[#allocation4 + $0xb8] sm:$0xf]
    %v121 = vld [vmem:[#allocation4 + $0xbc] sm:$0xf]
    %v122 = vld [vmem:[#allocation4 + $0xc0] sm:$0xf]
    %v123 = vld [vmem:[#allocation4 + $0xc4] sm:$0xf]
    %v124 = vld [vmem:[#allocation4 + $0xc8] sm:$0xf]
    %v125 = vld [vmem:[#allocation4 + $0xcc] sm:$0xf]
    %v126 = vld [vmem:[#allocation4 + $0xd0] sm:$0xf]
    %v127 = vld [vmem:[#allocation4 + $0xd4] sm:$0xf]
    %v128 = vld [vmem:[#allocation4 + $0xd8] sm:$0xf]
    %v129 = vld [vmem:[#allocation4 + $0xdc] sm:$0xf]
    %v130 = vld [vmem:[#allocation4 + $0xe0] sm:$0xf]
    %v131 = vld [vmem:[#allocation4 + $0xe4] sm:$0xf]
    %v132 = vld [vmem:[#allocation4 + $0xe8] sm:$0xf]
    %v133 = vld [vmem:[#allocation4 + $0xec] sm:$0xf]
    %v134 = vld [vmem:[#allocation4 + $0xf0] sm:$0xf]
    %v135 = vld [vmem:[#allocation4 + $0xf4] sm:$0xf]
    %v136 = vld [vmem:[#allocation4 + $0xf8] sm:$0xf]
    %v137 = vld [vmem:[#allocation4 + $0xfc] sm:$0xf]
    %v138 = vld [vmem:[#allocation7] sm:$0xf]
    %v139 = vld [vmem:[#allocation7 + $0x4] sm:$0xf]
    %v140 = vld [vmem:[#allocation7 + $0x8] sm:$0xf]
    %v141 = vld [vmem:[#allocation7 + $0xc] sm:$0xf]
    %v142 = vld [vmem:[#allocation7 + $0x10] sm:$0xf]
    %v143 = vld [vmem:[#allocation7 + $0x14] sm:$0xf]
    %v144 = vld [vmem:[#allocation7 + $0x18] sm:$0xf]
    %v145 = vld [vmem:[#allocation7 + $0x1c] sm:$0xf]
    %v210 = vunpack.c.l.b16 %v74
    %v211 = vunpack.c.l.b16 %v75
    %v212 = vunpack.c.l.b16 %v76
    %v213 = vunpack.c.l.b16 %v77
    %v214 = vunpack.c.l.b16 %v78
    %v215 = vunpack.c.l.b16 %v79
    %v216 = vunpack.c.l.b16 %v80
    %v217 = vunpack.c.l.b16 %v81
    %v218 = vunpack.c.l.b16 %v82
    %v219 = vunpack.c.l.b16 %v83
    %v220 = vunpack.c.l.b16 %v84
    %v221 = vunpack.c.l.b16 %v85
    %v222 = vunpack.c.l.b16 %v86
    %v223 = vunpack.c.l.b16 %v87
    %v224 = vunpack.c.l.b16 %v88
    %v225 = vunpack.c.l.b16 %v89
    %v226 = vunpack.c.l.b16 %v90
    %v227 = vunpack.c.l.b16 %v91
    %v228 = vunpack.c.l.b16 %v92
    %v229 = vunpack.c.l.b16 %v93
    %v230 = vunpack.c.l.b16 %v94
    %v231 = vunpack.c.l.b16 %v95
    %v232 = vunpack.c.l.b16 %v96
    %v233 = vunpack.c.l.b16 %v97
    %v234 = vunpack.c.l.b16 %v98
    %v235 = vunpack.c.l.b16 %v99
    %v236 = vunpack.c.l.b16 %v100
    %v237 = vunpack.c.l.b16 %v101
    %v238 = vunpack.c.l.b16 %v102
    %v239 = vunpack.c.l.b16 %v103
    %v240 = vunpack.c.l.b16 %v104
    %v241 = vunpack.c.l.b16 %v105
    %v242 = vunpack.c.l.b16 %v106
    %v243 = vunpack.c.l.b16 %v107
    %v244 = vunpack.c.l.b16 %v108
    %v245 = vunpack.c.l.b16 %v109
    %v246 = vunpack.c.l.b16 %v110
    %v247 = vunpack.c.l.b16 %v111
    %v248 = vunpack.c.l.b16 %v112
    %v249 = vunpack.c.l.b16 %v113
    %v250 = vunpack.c.l.b16 %v114
    %v251 = vunpack.c.l.b16 %v115
    %v252 = vunpack.c.l.b16 %v116
    %v253 = vunpack.c.l.b16 %v117
    %v254 = vunpack.c.l.b16 %v118
    %v255 = vunpack.c.l.b16 %v119
    %v256 = vunpack.c.l.b16 %v120
    %v257 = vunpack.c.l.b16 %v121
    %v258 = vunpack.c.l.b16 %v122
    %v259 = vunpack.c.l.b16 %v123
    %v260 = vunpack.c.l.b16 %v124
    %v261 = vunpack.c.l.b16 %v125
    %v262 = vunpack.c.l.b16 %v126
    %v263 = vunpack.c.l.b16 %v127
    %v264 = vunpack.c.l.b16 %v128
    %v265 = vunpack.c.l.b16 %v129
    %v266 = vunpack.c.l.b16 %v130
    %v267 = vunpack.c.l.b16 %v131
    %v268 = vunpack.c.l.b16 %v132
    %v269 = vunpack.c.l.b16 %v133
    %v270 = vunpack.c.l.b16 %v134
    %v271 = vunpack.c.l.b16 %v135
    %v272 = vunpack.c.l.b16 %v136
    %v273 = vunpack.c.l.b16 %v137
    %v274 = vpack.c.b16 %v211, %v210
    %v275 = vpack.c.b16 %v213, %v212
    %v276 = vpack.c.b16 %v215, %v214
    %v277 = vpack.c.b16 %v217, %v216
    %v278 = vpack.c.b16 %v219, %v218
    %v279 = vpack.c.b16 %v221, %v220
    %v280 = vpack.c.b16 %v223, %v222
    %v281 = vpack.c.b16 %v225, %v224
    %v282 = vpack.c.b16 %v227, %v226
    %v283 = vpack.c.b16 %v229, %v228
    %v284 = vpack.c.b16 %v231, %v230
    %v285 = vpack.c.b16 %v233, %v232
    %v286 = vpack.c.b16 %v235, %v234
    %v287 = vpack.c.b16 %v237, %v236
    %v288 = vpack.c.b16 %v239, %v238
    %v289 = vpack.c.b16 %v241, %v240
    %v290 = vpack.c.b16 %v243, %v242
    %v291 = vpack.c.b16 %v245, %v244
    %v292 = vpack.c.b16 %v247, %v246
    %v293 = vpack.c.b16 %v249, %v248
    %v294 = vpack.c.b16 %v251, %v250
    %v295 = vpack.c.b16 %v253, %v252
    %v296 = vpack.c.b16 %v255, %v254
    %v297 = vpack.c.b16 %v257, %v256
    %v298 = vpack.c.b16 %v259, %v258
    %v299 = vpack.c.b16 %v261, %v260
    %v300 = vpack.c.b16 %v263, %v262
    %v301 = vpack.c.b16 %v265, %v264
    %v302 = vpack.c.b16 %v267, %v266
    %v303 = vpack.c.b16 %v269, %v268
    %v304 = vpack.c.b16 %v271, %v270
    %v305 = vpack.c.b16 %v273, %v272
    %v314 = vunpack.c.l.b16 %v138
    %v315 = vunpack.c.l.b16 %v139
    %v316 = vunpack.c.l.b16 %v140
    %v317 = vunpack.c.l.b16 %v141
    %v318 = vunpack.c.l.b16 %v142
    %v319 = vunpack.c.l.b16 %v143
    %v320 = vunpack.c.l.b16 %v144
    %v321 = vunpack.c.l.b16 %v145
    %v322 = vpack.c.b16 %v315, %v314
    %v323 = vpack.c.b16 %v317, %v316
    %v324 = vpack.c.b16 %v319, %v318
    %v325 = vpack.c.b16 %v321, %v320
    %vm330 = vcmask 523264
    %v332 = vsel %vm330, %v274, 0
    %v335 = vsel %vm330, %v275, 0
    %v338 = vsel %vm330, %v276, 0
    %v341 = vsel %vm330, %v277, 0
    %v344 = vsel %vm330, %v278, 0
    %v347 = vsel %vm330, %v279, 0
    %v350 = vsel %vm330, %v280, 0
    %v353 = vsel %vm330, %v281, 0
    %v356 = vsel %vm330, %v282, 0
    %v359 = vsel %vm330, %v283, 0
    %v362 = vsel %vm330, %v284, 0
    %v365 = vsel %vm330, %v285, 0
    %v368 = vsel %vm330, %v286, 0
    %v371 = vsel %vm330, %v287, 0
    %v374 = vsel %vm330, %v288, 0
    %v377 = vsel %vm330, %v289, 0
    %v380 = vsel %vm330, %v290, 0
    %v383 = vsel %vm330, %v291, 0
    %v386 = vsel %vm330, %v292, 0
    %v389 = vsel %vm330, %v293, 0
    %v392 = vsel %vm330, %v294, 0
    %v395 = vsel %vm330, %v295, 0
    %v398 = vsel %vm330, %v296, 0
    %v401 = vsel %vm330, %v297, 0
    %v404 = vsel %vm330, %v298, 0
    %v407 = vsel %vm330, %v299, 0
    %v410 = vsel %vm330, %v300, 0
    %v413 = vsel %vm330, %v301, 0
    %v416 = vsel %vm330, %v302, 0
    %v419 = vsel %vm330, %v303, 0
    %v422 = vsel %vm330, %v304, 0
    %v425 = vsel %vm330, %v305, 0
    %427 = vmatprep.subr.bf16.mxu0 0
    %428 = vmatpush1.bf16.msra.mxu0 0
    %429 = vmatprep.subr.bf16.mxu0 0
    %430 = vmatpush1.bf16.msra.mxu0 0
    %431 = vmatprep.subr.bf16.mxu0 0
    %432 = vmatpush1.bf16.msra.mxu0 0
    %433 = vmatprep.subr.bf16.mxu0 0
    %434 = vmatpush1.bf16.msra.mxu0 0
    %435 = vmatprep.subr.bf16.mxu0 0
    %436 = vmatpush1.bf16.msra.mxu0 %v325
    %437 = vmatprep.subr.bf16.mxu0 0
    %438 = vmatpush1.bf16.msra.mxu0 %v324
    %439 = vmatprep.subr.bf16.mxu0 0
    %440 = vmatpush1.bf16.msra.mxu0 %v323
    %441 = vmatprep.subr.bf16.mxu0 0
    %442 = vmatpush1.bf16.msra.mxu0 %v322
    %443 = vmatprep.subr.bf16.mxu0 0
    %444 = vmatpush2.bf16.msra.mxu0 0
    %445 = vmatprep.subr.bf16.mxu0 0
    %446 = vmatpush2.bf16.msra.mxu0 0
    %447 = vmatprep.subr.bf16.mxu0 0
    %448 = vmatpush2.bf16.msra.mxu0 0
    %449 = vmatprep.subr.bf16.mxu0 0
    %450 = vmatpush2.bf16.msra.mxu0 0
    %451 = vmatprep.subr.bf16.mxu0 0
    %452 = vmatpush2.bf16.msra.mxu0 0
    %453 = vmatprep.subr.bf16.mxu0 0
    %454 = vmatpush2.bf16.msra.mxu0 0
    %455 = vmatprep.subr.bf16.mxu0 0
    %456 = vmatpush2.bf16.msra.mxu0 0
    %457 = vmatprep.subr.bf16.mxu0 0
    %458 = vmatpush2.bf16.msra.mxu0 0
    %459 = vmatprep.mubr.bf16.mxu0 0
    %460 = vmatmul.mubr.bf16.gmra.mxu0 %v332
    %v461 = vpop.f32.mrf.mxu0
    %v462 = vadd.f32 0.0, %v461
    %v463 = vpop.f32.mrf.mxu0
    %v464 = vpop.f32.mrf.mxu0
    %v465 = vadd.f32 0.0, %v464
    %v466 = vpop.f32.mrf.mxu0
    %467 = vmatprep.mubr.bf16.mxu0 0
    %468 = vmatmul.mubr.bf16.gmra.mxu0 %v335
    %v469 = vpop.f32.mrf.mxu0
    %v470 = vadd.f32 0.0, %v469
    %v471 = vpop.f32.mrf.mxu0
    %v472 = vpop.f32.mrf.mxu0
    %v473 = vadd.f32 0.0, %v472
    %v474 = vpop.f32.mrf.mxu0
    %475 = vmatprep.mubr.bf16.mxu0 0
    %476 = vmatmul.mubr.bf16.gmra.mxu0 %v338
    %v477 = vpop.f32.mrf.mxu0
    %v478 = vadd.f32 0.0, %v477
    %v479 = vpop.f32.mrf.mxu0
    %v480 = vpop.f32.mrf.mxu0
    %v481 = vadd.f32 0.0, %v480
    %v482 = vpop.f32.mrf.mxu0
    %483 = vmatprep.mubr.bf16.mxu0 0
    %484 = vmatmul.mubr.bf16.gmra.mxu0 %v341
    %v485 = vpop.f32.mrf.mxu0
    %v486 = vadd.f32 0.0, %v485
    %v487 = vpop.f32.mrf.mxu0
    %v488 = vpop.f32.mrf.mxu0
    %v489 = vadd.f32 0.0, %v488
    %v490 = vpop.f32.mrf.mxu0
    %491 = vmatprep.mubr.bf16.mxu0 0
    %492 = vmatmul.mubr.bf16.gmra.mxu0 %v344
    %v493 = vpop.f32.mrf.mxu0
    %v494 = vadd.f32 0.0, %v493
    %v495 = vpop.f32.mrf.mxu0
    %v496 = vpop.f32.mrf.mxu0
    %v497 = vadd.f32 0.0, %v496
    %v498 = vpop.f32.mrf.mxu0
    %499 = vmatprep.mubr.bf16.mxu0 0
    %500 = vmatmul.mubr.bf16.gmra.mxu0 %v347
    %v501 = vpop.f32.mrf.mxu0
    %v502 = vadd.f32 0.0, %v501
    %v503 = vpop.f32.mrf.mxu0
    %v504 = vpop.f32.mrf.mxu0
    %v505 = vadd.f32 0.0, %v504
    %v506 = vpop.f32.mrf.mxu0
    %507 = vmatprep.mubr.bf16.mxu0 0
    %508 = vmatmul.mubr.bf16.gmra.mxu0 %v350
    %v509 = vpop.f32.mrf.mxu0
    %v510 = vadd.f32 0.0, %v509
    %v511 = vpop.f32.mrf.mxu0
    %v512 = vpop.f32.mrf.mxu0
    %v513 = vadd.f32 0.0, %v512
    %v514 = vpop.f32.mrf.mxu0
    %515 = vmatprep.mubr.bf16.mxu0 0
    %516 = vmatmul.mubr.bf16.gmra.mxu0 %v353
    %v517 = vpop.f32.mrf.mxu0
    %v518 = vadd.f32 0.0, %v517
    %v519 = vpop.f32.mrf.mxu0
    %v520 = vpop.f32.mrf.mxu0
    %v521 = vadd.f32 0.0, %v520
    %v522 = vpop.f32.mrf.mxu0
    %523 = vmatprep.mubr.bf16.mxu0 0
    %524 = vmatmul.mubr.bf16.gmra.mxu0 %v356
    %v525 = vpop.f32.mrf.mxu0
    %v526 = vadd.f32 0.0, %v525
    %v527 = vpop.f32.mrf.mxu0
    %v528 = vpop.f32.mrf.mxu0
    %v529 = vadd.f32 0.0, %v528
    %v530 = vpop.f32.mrf.mxu0
    %531 = vmatprep.mubr.bf16.mxu0 0
    %532 = vmatmul.mubr.bf16.gmra.mxu0 %v359
    %v533 = vpop.f32.mrf.mxu0
    %v534 = vadd.f32 0.0, %v533
    %v535 = vpop.f32.mrf.mxu0
    %v536 = vpop.f32.mrf.mxu0
    %v537 = vadd.f32 0.0, %v536
    %v538 = vpop.f32.mrf.mxu0
    %539 = vmatprep.mubr.bf16.mxu0 0
    %540 = vmatmul.mubr.bf16.gmra.mxu0 %v362
    %v541 = vpop.f32.mrf.mxu0
    %v542 = vadd.f32 0.0, %v541
    %v543 = vpop.f32.mrf.mxu0
    %v544 = vpop.f32.mrf.mxu0
    %v545 = vadd.f32 0.0, %v544
    %v546 = vpop.f32.mrf.mxu0
    %547 = vmatprep.mubr.bf16.mxu0 0
    %548 = vmatmul.mubr.bf16.gmra.mxu0 %v365
    %v549 = vpop.f32.mrf.mxu0
    %v550 = vadd.f32 0.0, %v549
    %v551 = vpop.f32.mrf.mxu0
    %v552 = vpop.f32.mrf.mxu0
    %v553 = vadd.f32 0.0, %v552
    %v554 = vpop.f32.mrf.mxu0
    %555 = vmatprep.mubr.bf16.mxu0 0
    %556 = vmatmul.mubr.bf16.gmra.mxu0 %v368
    %v557 = vpop.f32.mrf.mxu0
    %v558 = vadd.f32 0.0, %v557
    %v559 = vpop.f32.mrf.mxu0
    %v560 = vpop.f32.mrf.mxu0
    %v561 = vadd.f32 0.0, %v560
    %v562 = vpop.f32.mrf.mxu0
    %563 = vmatprep.mubr.bf16.mxu0 0
    %564 = vmatmul.mubr.bf16.gmra.mxu0 %v371
    %v565 = vpop.f32.mrf.mxu0
    %v566 = vadd.f32 0.0, %v565
    %v567 = vpop.f32.mrf.mxu0
    %v568 = vpop.f32.mrf.mxu0
    %v569 = vadd.f32 0.0, %v568
    %v570 = vpop.f32.mrf.mxu0
    %571 = vmatprep.mubr.bf16.mxu0 0
    %572 = vmatmul.mubr.bf16.gmra.mxu0 %v374
    %v573 = vpop.f32.mrf.mxu0
    %v574 = vadd.f32 0.0, %v573
    %v575 = vpop.f32.mrf.mxu0
    %v576 = vpop.f32.mrf.mxu0
    %v577 = vadd.f32 0.0, %v576
    %v578 = vpop.f32.mrf.mxu0
    %579 = vmatprep.mubr.bf16.mxu0 0
    %580 = vmatmul.mubr.bf16.gmra.mxu0 %v377
    %v581 = vpop.f32.mrf.mxu0
    %v582 = vadd.f32 0.0, %v581
    %v583 = vpop.f32.mrf.mxu0
    %v584 = vpop.f32.mrf.mxu0
    %v585 = vadd.f32 0.0, %v584
    %v586 = vpop.f32.mrf.mxu0
    %587 = vmatprep.mubr.bf16.mxu0 0
    %588 = vmatmul.mubr.bf16.gmra.mxu0 %v380
    %v589 = vpop.f32.mrf.mxu0
    %v590 = vadd.f32 0.0, %v589
    %v591 = vpop.f32.mrf.mxu0
    %v592 = vpop.f32.mrf.mxu0
    %v593 = vadd.f32 0.0, %v592
    %v594 = vpop.f32.mrf.mxu0
    %595 = vmatprep.mubr.bf16.mxu0 0
    %596 = vmatmul.mubr.bf16.gmra.mxu0 %v383
    %v597 = vpop.f32.mrf.mxu0
    %v598 = vadd.f32 0.0, %v597
    %v599 = vpop.f32.mrf.mxu0
    %v600 = vpop.f32.mrf.mxu0
    %v601 = vadd.f32 0.0, %v600
    %v602 = vpop.f32.mrf.mxu0
    %603 = vmatprep.mubr.bf16.mxu0 0
    %604 = vmatmul.mubr.bf16.gmra.mxu0 %v386
    %v605 = vpop.f32.mrf.mxu0
    %v606 = vadd.f32 0.0, %v605
    %v607 = vpop.f32.mrf.mxu0
    %v608 = vpop.f32.mrf.mxu0
    %v609 = vadd.f32 0.0, %v608
    %v610 = vpop.f32.mrf.mxu0
    %611 = vmatprep.mubr.bf16.mxu0 0
    %612 = vmatmul.mubr.bf16.gmra.mxu0 %v389
    %v613 = vpop.f32.mrf.mxu0
    %v614 = vadd.f32 0.0, %v613
    %v615 = vpop.f32.mrf.mxu0
    %v616 = vpop.f32.mrf.mxu0
    %v617 = vadd.f32 0.0, %v616
    %v618 = vpop.f32.mrf.mxu0
    %619 = vmatprep.mubr.bf16.mxu0 0
    %620 = vmatmul.mubr.bf16.gmra.mxu0 %v392
    %v621 = vpop.f32.mrf.mxu0
    %v622 = vadd.f32 0.0, %v621
    %v623 = vpop.f32.mrf.mxu0
    %v624 = vpop.f32.mrf.mxu0
    %v625 = vadd.f32 0.0, %v624
    %v626 = vpop.f32.mrf.mxu0
    %627 = vmatprep.mubr.bf16.mxu0 0
    %628 = vmatmul.mubr.bf16.gmra.mxu0 %v395
    %v629 = vpop.f32.mrf.mxu0
    %v630 = vadd.f32 0.0, %v629
    %v631 = vpop.f32.mrf.mxu0
    %v632 = vpop.f32.mrf.mxu0
    %v633 = vadd.f32 0.0, %v632
    %v634 = vpop.f32.mrf.mxu0
    %635 = vmatprep.mubr.bf16.mxu0 0
    %636 = vmatmul.mubr.bf16.gmra.mxu0 %v398
    %v637 = vpop.f32.mrf.mxu0
    %v638 = vadd.f32 0.0, %v637
    %v639 = vpop.f32.mrf.mxu0
    %v640 = vpop.f32.mrf.mxu0
    %v641 = vadd.f32 0.0, %v640
    %v642 = vpop.f32.mrf.mxu0
    %643 = vmatprep.mubr.bf16.mxu0 0
    %644 = vmatmul.mubr.bf16.gmra.mxu0 %v401
    %v645 = vpop.f32.mrf.mxu0
    %v646 = vadd.f32 0.0, %v645
    %v647 = vpop.f32.mrf.mxu0
    %v648 = vpop.f32.mrf.mxu0
    %v649 = vadd.f32 0.0, %v648
    %v650 = vpop.f32.mrf.mxu0
    %651 = vmatprep.mubr.bf16.mxu0 0
    %652 = vmatmul.mubr.bf16.gmra.mxu0 %v404
    %v653 = vpop.f32.mrf.mxu0
    %v654 = vadd.f32 0.0, %v653
    %v655 = vpop.f32.mrf.mxu0
    %v656 = vpop.f32.mrf.mxu0
    %v657 = vadd.f32 0.0, %v656
    %v658 = vpop.f32.mrf.mxu0
    %659 = vmatprep.mubr.bf16.mxu0 0
    %660 = vmatmul.mubr.bf16.gmra.mxu0 %v407
    %v661 = vpop.f32.mrf.mxu0
    %v662 = vadd.f32 0.0, %v661
    %v663 = vpop.f32.mrf.mxu0
    %v664 = vpop.f32.mrf.mxu0
    %v665 = vadd.f32 0.0, %v664
    %v666 = vpop.f32.mrf.mxu0
    %667 = vmatprep.mubr.bf16.mxu0 0
    %668 = vmatmul.mubr.bf16.gmra.mxu0 %v410
    %v669 = vpop.f32.mrf.mxu0
    %v670 = vadd.f32 0.0, %v669
    %v671 = vpop.f32.mrf.mxu0
    %v672 = vpop.f32.mrf.mxu0
    %v673 = vadd.f32 0.0, %v672
    %v674 = vpop.f32.mrf.mxu0
    %675 = vmatprep.mubr.bf16.mxu0 0
    %676 = vmatmul.mubr.bf16.gmra.mxu0 %v413
    %v677 = vpop.f32.mrf.mxu0
    %v678 = vadd.f32 0.0, %v677
    %v679 = vpop.f32.mrf.mxu0
    %v680 = vpop.f32.mrf.mxu0
    %v681 = vadd.f32 0.0, %v680
    %v682 = vpop.f32.mrf.mxu0
    %683 = vmatprep.mubr.bf16.mxu0 0
    %684 = vmatmul.mubr.bf16.gmra.mxu0 %v416
    %v685 = vpop.f32.mrf.mxu0
    %v686 = vadd.f32 0.0, %v685
    %v687 = vpop.f32.mrf.mxu0
    %v688 = vpop.f32.mrf.mxu0
    %v689 = vadd.f32 0.0, %v688
    %v690 = vpop.f32.mrf.mxu0
    %691 = vmatprep.mubr.bf16.mxu0 0
    %692 = vmatmul.mubr.bf16.gmra.mxu0 %v419
    %v693 = vpop.f32.mrf.mxu0
    %v694 = vadd.f32 0.0, %v693
    %v695 = vpop.f32.mrf.mxu0
    %v696 = vpop.f32.mrf.mxu0
    %v697 = vadd.f32 0.0, %v696
    %v698 = vpop.f32.mrf.mxu0
    %699 = vmatprep.mubr.bf16.mxu0 0
    %700 = vmatmul.mubr.bf16.gmra.mxu0 %v422
    %v701 = vpop.f32.mrf.mxu0
    %v702 = vadd.f32 0.0, %v701
    %v703 = vpop.f32.mrf.mxu0
    %v704 = vpop.f32.mrf.mxu0
    %v705 = vadd.f32 0.0, %v704
    %v706 = vpop.f32.mrf.mxu0
    %707 = vmatprep.mubr.bf16.mxu0 0
    %708 = vmatmul.mubr.bf16.gmra.mxu0 %v425
    %v709 = vpop.f32.mrf.mxu0
    %v710 = vadd.f32 0.0, %v709
    %v711 = vpop.f32.mrf.mxu0
    %v712 = vpop.f32.mrf.mxu0
    %v713 = vadd.f32 0.0, %v712
    %v714 = vpop.f32.mrf.mxu0
    %715 = vdwg.mxu0
    %716 = vst.msk [vmem:[#allocation3] sm:$0xff] %vm330, %v462
    %717 = vst.msk [vmem:[#allocation3 + $0x8] sm:$0xff] %vm330, %v465
    %718 = vst.msk [vmem:[#allocation3 + $0x10] sm:$0xff] %vm330, %v470
    %719 = vst.msk [vmem:[#allocation3 + $0x18] sm:$0xff] %vm330, %v473
    %720 = vst.msk [vmem:[#allocation3 + $0x20] sm:$0xff] %vm330, %v478
    %721 = vst.msk [vmem:[#allocation3 + $0x28] sm:$0xff] %vm330, %v481
    %722 = vst.msk [vmem:[#allocation3 + $0x30] sm:$0xff] %vm330, %v486
    %723 = vst.msk [vmem:[#allocation3 + $0x38] sm:$0xff] %vm330, %v489
    %724 = vst.msk [vmem:[#allocation3 + $0x40] sm:$0xff] %vm330, %v494
    %725 = vst.msk [vmem:[#allocation3 + $0x48] sm:$0xff] %vm330, %v497
    %726 = vst.msk [vmem:[#allocation3 + $0x50] sm:$0xff] %vm330, %v502
    %727 = vst.msk [vmem:[#allocation3 + $0x58] sm:$0xff] %vm330, %v505
    %728 = vst.msk [vmem:[#allocation3 + $0x60] sm:$0xff] %vm330, %v510
    %729 = vst.msk [vmem:[#allocation3 + $0x68] sm:$0xff] %vm330, %v513
    %730 = vst.msk [vmem:[#allocation3 + $0x70] sm:$0xff] %vm330, %v518
    %731 = vst.msk [vmem:[#allocation3 + $0x78] sm:$0xff] %vm330, %v521
    %732 = vst.msk [vmem:[#allocation3 + $0x80] sm:$0xff] %vm330, %v526
    %733 = vst.msk [vmem:[#allocation3 + $0x88] sm:$0xff] %vm330, %v529
    %734 = vst.msk [vmem:[#allocation3 + $0x90] sm:$0xff] %vm330, %v534
    %735 = vst.msk [vmem:[#allocation3 + $0x98] sm:$0xff] %vm330, %v537
    %736 = vst.msk [vmem:[#allocation3 + $0xa0] sm:$0xff] %vm330, %v542
    %737 = vst.msk [vmem:[#allocation3 + $0xa8] sm:$0xff] %vm330, %v545
    %738 = vst.msk [vmem:[#allocation3 + $0xb0] sm:$0xff] %vm330, %v550
    %739 = vst.msk [vmem:[#allocation3 + $0xb8] sm:$0xff] %vm330, %v553
    %740 = vst.msk [vmem:[#allocation3 + $0xc0] sm:$0xff] %vm330, %v558
    %741 = vst.msk [vmem:[#allocation3 + $0xc8] sm:$0xff] %vm330, %v561
    %742 = vst.msk [vmem:[#allocation3 + $0xd0] sm:$0xff] %vm330, %v566
    %743 = vst.msk [vmem:[#allocation3 + $0xd8] sm:$0xff] %vm330, %v569
    %744 = vst.msk [vmem:[#allocation3 + $0xe0] sm:$0xff] %vm330, %v574
    %745 = vst.msk [vmem:[#allocation3 + $0xe8] sm:$0xff] %vm330, %v577
    %746 = vst.msk [vmem:[#allocation3 + $0xf0] sm:$0xff] %vm330, %v582
    %747 = vst.msk [vmem:[#allocation3 + $0xf8] sm:$0xff] %vm330, %v585
    %748 = vst.msk [vmem:[#allocation3 + $0x100] sm:$0xff] %vm330, %v590
    %749 = vst.msk [vmem:[#allocation3 + $0x108] sm:$0xff] %vm330, %v593
    %750 = vst.msk [vmem:[#allocation3 + $0x110] sm:$0xff] %vm330, %v598
    %751 = vst.msk [vmem:[#allocation3 + $0x118] sm:$0xff] %vm330, %v601
    %752 = vst.msk [vmem:[#allocation3 + $0x120] sm:$0xff] %vm330, %v606
    %753 = vst.msk [vmem:[#allocation3 + $0x128] sm:$0xff] %vm330, %v609
    %754 = vst.msk [vmem:[#allocation3 + $0x130] sm:$0xff] %vm330, %v614
    %755 = vst.msk [vmem:[#allocation3 + $0x138] sm:$0xff] %vm330, %v617
    %756 = vst.msk [vmem:[#allocation3 + $0x140] sm:$0xff] %vm330, %v622
    %757 = vst.msk [vmem:[#allocation3 + $0x148] sm:$0xff] %vm330, %v625
    %758 = vst.msk [vmem:[#allocation3 + $0x150] sm:$0xff] %vm330, %v630
    %759 = vst.msk [vmem:[#allocation3 + $0x158] sm:$0xff] %vm330, %v633
    %760 = vst.msk [vmem:[#allocation3 + $0x160] sm:$0xff] %vm330, %v638
    %761 = vst.msk [vmem:[#allocation3 + $0x168] sm:$0xff] %vm330, %v641
    %762 = vst.msk [vmem:[#allocation3 + $0x170] sm:$0xff] %vm330, %v646
    %763 = vst.msk [vmem:[#allocation3 + $0x178] sm:$0xff] %vm330, %v649
    %764 = vst.msk [vmem:[#allocation3 + $0x180] sm:$0xff] %vm330, %v654
    %765 = vst.msk [vmem:[#allocation3 + $0x188] sm:$0xff] %vm330, %v657
    %766 = vst.msk [vmem:[#allocation3 + $0x190] sm:$0xff] %vm330, %v662
    %767 = vst.msk [vmem:[#allocation3 + $0x198] sm:$0xff] %vm330, %v665
    %768 = vst.msk [vmem:[#allocation3 + $0x1a0] sm:$0xff] %vm330, %v670
    %769 = vst.msk [vmem:[#allocation3 + $0x1a8] sm:$0xff] %vm330, %v673
    %770 = vst.msk [vmem:[#allocation3 + $0x1b0] sm:$0xff] %vm330, %v678
    %771 = vst.msk [vmem:[#allocation3 + $0x1b8] sm:$0xff] %vm330, %v681
    %772 = vst.msk [vmem:[#allocation3 + $0x1c0] sm:$0xff] %vm330, %v686
    %773 = vst.msk [vmem:[#allocation3 + $0x1c8] sm:$0xff] %vm330, %v689
    %774 = vst.msk [vmem:[#allocation3 + $0x1d0] sm:$0xff] %vm330, %v694
    %775 = vst.msk [vmem:[#allocation3 + $0x1d8] sm:$0xff] %vm330, %v697
    %776 = vst.msk [vmem:[#allocation3 + $0x1e0] sm:$0xff] %vm330, %v702
    %777 = vst.msk [vmem:[#allocation3 + $0x1e8] sm:$0xff] %vm330, %v705
    %778 = vst.msk [vmem:[#allocation3 + $0x1f0] sm:$0xff] %vm330, %v710
    %779 = vst.msk [vmem:[#allocation3 + $0x1f8] sm:$0xff] %vm330, %v713
    %v780 = vld [vmem:[#allocation9 + $0x9] sm:$0x1]
    %v781 = vlaneseq
    %v782 = vshrl.u32 %v781, 7
    %v783 = vsub.s32 0, %v782
    %v784 = vrot.slane %v780, %v783
    %786 = vrot.lane.b32.xlu0 %v784, 64
    %v787 = vpop.permute.xlu0 %786
    %v789 = vadd.f32 %v462, %v787
    %v790 = vadd.f32 %v465, %v787
    %v791 = vadd.f32 %v470, %v787
    %v792 = vadd.f32 %v473, %v787
    %v793 = vadd.f32 %v478, %v787
    %v794 = vadd.f32 %v481, %v787
    %v795 = vadd.f32 %v486, %v787
    %v796 = vadd.f32 %v489, %v787
    %v797 = vadd.f32 %v494, %v787
    %v798 = vadd.f32 %v497, %v787
    %v799 = vadd.f32 %v502, %v787
    %v800 = vadd.f32 %v505, %v787
    %v801 = vadd.f32 %v510, %v787
    %v802 = vadd.f32 %v513, %v787
    %v803 = vadd.f32 %v518, %v787
    %v804 = vadd.f32 %v521, %v787
    %v805 = vadd.f32 %v526, %v787
    %v806 = vadd.f32 %v529, %v787
    %v807 = vadd.f32 %v534, %v787
    %v808 = vadd.f32 %v537, %v787
    %v809 = vadd.f32 %v542, %v787
    %v810 = vadd.f32 %v545, %v787
    %v811 = vadd.f32 %v550, %v787
    %v812 = vadd.f32 %v553, %v787
    %v813 = vadd.f32 %v558, %v787
    %v814 = vadd.f32 %v561, %v787
    %v815 = vadd.f32 %v566, %v787
    %v816 = vadd.f32 %v569, %v787
    %v817 = vadd.f32 %v574, %v787
    %v818 = vadd.f32 %v577, %v787
    %v819 = vadd.f32 %v582, %v787
    %v820 = vadd.f32 %v585, %v787
    %v821 = vadd.f32 %v590, %v787
    %v822 = vadd.f32 %v593, %v787
    %v823 = vadd.f32 %v598, %v787
    %v824 = vadd.f32 %v601, %v787
    %v825 = vadd.f32 %v606, %v787
    %v826 = vadd.f32 %v609, %v787
    %v827 = vadd.f32 %v614, %v787
    %v828 = vadd.f32 %v617, %v787
    %v829 = vadd.f32 %v622, %v787
    %v830 = vadd.f32 %v625, %v787
    %v831 = vadd.f32 %v630, %v787
    %v832 = vadd.f32 %v633, %v787
    %v833 = vadd.f32 %v638, %v787
    %v834 = vadd.f32 %v641, %v787
    %v835 = vadd.f32 %v646, %v787
    %v836 = vadd.f32 %v649, %v787
    %v837 = vadd.f32 %v654, %v787
    %v838 = vadd.f32 %v657, %v787
    %v839 = vadd.f32 %v662, %v787
    %v840 = vadd.f32 %v665, %v787
    %v841 = vadd.f32 %v670, %v787
    %v842 = vadd.f32 %v673, %v787
    %v843 = vadd.f32 %v678, %v787
    %v844 = vadd.f32 %v681, %v787
    %v845 = vadd.f32 %v686, %v787
    %v846 = vadd.f32 %v689, %v787
    %v847 = vadd.f32 %v694, %v787
    %v848 = vadd.f32 %v697, %v787
    %v849 = vadd.f32 %v702, %v787
    %v850 = vadd.f32 %v705, %v787
    %v851 = vadd.f32 %v710, %v787
    %v852 = vadd.f32 %v713, %v787
    %v853 = vmax.f32 %v789, 0.0
    %v854 = vmax.f32 %v790, 0.0
    %v855 = vmax.f32 %v791, 0.0
    %v856 = vmax.f32 %v792, 0.0
    %v857 = vmax.f32 %v793, 0.0
    %v858 = vmax.f32 %v794, 0.0
    %v859 = vmax.f32 %v795, 0.0
    %v860 = vmax.f32 %v796, 0.0
    %v861 = vmax.f32 %v797, 0.0
    %v862 = vmax.f32 %v798, 0.0
    %v863 = vmax.f32 %v799, 0.0
    %v864 = vmax.f32 %v800, 0.0
    %v865 = vmax.f32 %v801, 0.0
    %v866 = vmax.f32 %v802, 0.0
    %v867 = vmax.f32 %v803, 0.0
    %v868 = vmax.f32 %v804, 0.0
    %v869 = vmax.f32 %v805, 0.0
    %v870 = vmax.f32 %v806, 0.0
    %v871 = vmax.f32 %v807, 0.0
    %v872 = vmax.f32 %v808, 0.0
    %v873 = vmax.f32 %v809, 0.0
    %v874 = vmax.f32 %v810, 0.0
    %v875 = vmax.f32 %v811, 0.0
    %v876 = vmax.f32 %v812, 0.0
    %v877 = vmax.f32 %v813, 0.0
    %v878 = vmax.f32 %v814, 0.0
    %v879 = vmax.f32 %v815, 0.0
    %v880 = vmax.f32 %v816, 0.0
    %v881 = vmax.f32 %v817, 0.0
    %v882 = vmax.f32 %v818, 0.0
    %v883 = vmax.f32 %v819, 0.0
    %v884 = vmax.f32 %v820, 0.0
    %v885 = vmax.f32 %v821, 0.0
    %v886 = vmax.f32 %v822, 0.0
    %v887 = vmax.f32 %v823, 0.0
    %v888 = vmax.f32 %v824, 0.0
    %v889 = vmax.f32 %v825, 0.0
    %v890 = vmax.f32 %v826, 0.0
    %v891 = vmax.f32 %v827, 0.0
    %v892 = vmax.f32 %v828, 0.0
    %v893 = vmax.f32 %v829, 0.0
    %v894 = vmax.f32 %v830, 0.0
    %v895 = vmax.f32 %v831, 0.0
    %v896 = vmax.f32 %v832, 0.0
    %v897 = vmax.f32 %v833, 0.0
    %v898 = vmax.f32 %v834, 0.0
    %v899 = vmax.f32 %v835, 0.0
    %v900 = vmax.f32 %v836, 0.0
    %v901 = vmax.f32 %v837, 0.0
    %v902 = vmax.f32 %v838, 0.0
    %v903 = vmax.f32 %v839, 0.0
    %v904 = vmax.f32 %v840, 0.0
    %v905 = vmax.f32 %v841, 0.0
    %v906 = vmax.f32 %v842, 0.0
    %v907 = vmax.f32 %v843, 0.0
    %v908 = vmax.f32 %v844, 0.0
    %v909 = vmax.f32 %v845, 0.0
    %v910 = vmax.f32 %v846, 0.0
    %v911 = vmax.f32 %v847, 0.0
    %v912 = vmax.f32 %v848, 0.0
    %v913 = vmax.f32 %v849, 0.0
    %v914 = vmax.f32 %v850, 0.0
    %v915 = vmax.f32 %v851, 0.0
    %v916 = vmax.f32 %v852, 0.0
    %vm917 = vcmask 261120
    %918 = vst.msk [vmem:[#allocation2] sm:$0xff] %vm917, 0.0
    %919 = vst.msk [vmem:[#allocation2 + $0x8] sm:$0xff] %vm917, 0.0
    %vm920 = vcmask 254976
    %921 = vst.msk [vmem:[#allocation2 + $0x10] sm:$0x3] %vm920, 0.0
    %922 = vst.msk [vmem:[#allocation2 + $0x1b0] sm:$0xff] %vm917, 0.0
    %923 = vst.msk [vmem:[#allocation2 + $0x1b8] sm:$0xff] %vm917, 0.0
    %924 = vst.msk [vmem:[#allocation2 + $0x1c0] sm:$0x3] %vm920, 0.0
    %s925 = scalar_lea.vmem [#allocation2], 408
    %926 = vst.msk [vmem:[%s925] sm:$0xff] %vm917, 0.0
    %927 = vst.msk [vmem:[%s925 + $0x8] sm:$0xff] %vm917, 0.0
    %928 = vst.msk [vmem:[%s925 + $0x10] sm:$0x3] %vm920, 0.0
    %929 = vst.msk [vmem:[%s925 + $0x1b0] sm:$0xff] %vm917, 0.0
    %930 = vst.msk [vmem:[%s925 + $0x1b8] sm:$0xff] %vm917, 0.0
    %931 = vst.msk [vmem:[%s925 + $0x1c0] sm:$0x3] %vm920, 0.0
    %s932 = scalar_lea.vmem [#allocation2], 24
    %vm933 = vcmask 253952
    %934 = vst.msk [vmem:[%s932] sm:$0x1] %vm933, 0.0
    %935 = vst.msk [vmem:[%s932 + $0x18] sm:$0x1] %vm933, 0.0
    %936 = vst.msk [vmem:[%s932 + $0x30] sm:$0x1] %vm933, 0.0
    %937 = vst.msk [vmem:[%s932 + $0x48] sm:$0x1] %vm933, 0.0
    %938 = vst.msk [vmem:[%s932 + $0x60] sm:$0x1] %vm933, 0.0
    %939 = vst.msk [vmem:[%s932 + $0x78] sm:$0x1] %vm933, 0.0
    %940 = vst.msk [vmem:[%s932 + $0x90] sm:$0x1] %vm933, 0.0
    %941 = vst.msk [vmem:[%s932 + $0xa8] sm:$0x1] %vm933, 0.0
    %942 = vst.msk [vmem:[%s932 + $0xc0] sm:$0x1] %vm933, 0.0
    %943 = vst.msk [vmem:[%s932 + $0xd8] sm:$0x1] %vm933, 0.0
    %944 = vst.msk [vmem:[%s932 + $0xf0] sm:$0x1] %vm933, 0.0
    %945 = vst.msk [vmem:[%s932 + $0x108] sm:$0x1] %vm933, 0.0
    %946 = vst.msk [vmem:[%s932 + $0x120] sm:$0x1] %vm933, 0.0
    %947 = vst.msk [vmem:[%s932 + $0x138] sm:$0x1] %vm933, 0.0
    %948 = vst.msk [vmem:[%s932 + $0x150] sm:$0x1] %vm933, 0.0
    %949 = vst.msk [vmem:[%s932 + $0x168] sm:$0x1] %vm933, 0.0
    %950 = vst.msk [vmem:[%s932 + $0x1b0] sm:$0x1] %vm933, 0.0
    %951 = vst.msk [vmem:[%s932 + $0x1c8] sm:$0x1] %vm933, 0.0
    %952 = vst.msk [vmem:[%s932 + $0x1e0] sm:$0x1] %vm933, 0.0
    %953 = vst.msk [vmem:[%s932 + $0x1f8] sm:$0x1] %vm933, 0.0
    %954 = vst.msk [vmem:[%s932 + $0x210] sm:$0x1] %vm933, 0.0
    %955 = vst.msk [vmem:[%s932 + $0x228] sm:$0x1] %vm933, 0.0
    %956 = vst.msk [vmem:[%s932 + $0x240] sm:$0x1] %vm933, 0.0
    %957 = vst.msk [vmem:[%s932 + $0x258] sm:$0x1] %vm933, 0.0
    %958 = vst.msk [vmem:[%s932 + $0x270] sm:$0x1] %vm933, 0.0
    %959 = vst.msk [vmem:[%s932 + $0x288] sm:$0x1] %vm933, 0.0
    %960 = vst.msk [vmem:[%s932 + $0x2a0] sm:$0x1] %vm933, 0.0
    %961 = vst.msk [vmem:[%s932 + $0x2b8] sm:$0x1] %vm933, 0.0
    %962 = vst.msk [vmem:[%s932 + $0x2d0] sm:$0x1] %vm933, 0.0
    %963 = vst.msk [vmem:[%s932 + $0x2e8] sm:$0x1] %vm933, 0.0
    %964 = vst.msk [vmem:[%s932 + $0x300] sm:$0x1] %vm933, 0.0
    %965 = vst.msk [vmem:[%s932 + $0x318] sm:$0x1] %vm933, 0.0
    %966 = vst.msk [vmem:[%s932 + $0x11] sm:$0x1] %vm933, 0.0
    %967 = vst.msk [vmem:[%s932 + $0x29] sm:$0x1] %vm933, 0.0
    %968 = vst.msk [vmem:[%s932 + $0x41] sm:$0x1] %vm933, 0.0
    %969 = vst.msk [vmem:[%s932 + $0x59] sm:$0x1] %vm933, 0.0
    %970 = vst.msk [vmem:[%s932 + $0x71] sm:$0x1] %vm933, 0.0
    %971 = vst.msk [vmem:[%s932 + $0x89] sm:$0x1] %vm933, 0.0
    %972 = vst.msk [vmem:[%s932 + $0xa1] sm:$0x1] %vm933, 0.0
    %973 = vst.msk [vmem:[%s932 + $0xb9] sm:$0x1] %vm933, 0.0
    %974 = vst.msk [vmem:[%s932 + $0xd1] sm:$0x1] %vm933, 0.0
    %975 = vst.msk [vmem:[%s932 + $0xe9] sm:$0x1] %vm933, 0.0
    %976 = vst.msk [vmem:[%s932 + $0x101] sm:$0x1] %vm933, 0.0
    %977 = vst.msk [vmem:[%s932 + $0x119] sm:$0x1] %vm933, 0.0
    %978 = vst.msk [vmem:[%s932 + $0x131] sm:$0x1] %vm933, 0.0
    %979 = vst.msk [vmem:[%s932 + $0x149] sm:$0x1] %vm933, 0.0
    %980 = vst.msk [vmem:[%s932 + $0x161] sm:$0x1] %vm933, 0.0
    %981 = vst.msk [vmem:[%s932 + $0x179] sm:$0x1] %vm933, 0.0
    %982 = vst.msk [vmem:[%s932 + $0x1c1] sm:$0x1] %vm933, 0.0
    %983 = vst.msk [vmem:[%s932 + $0x1d9] sm:$0x1] %vm933, 0.0
    %984 = vst.msk [vmem:[%s932 + $0x1f1] sm:$0x1] %vm933, 0.0
    %985 = vst.msk [vmem:[%s932 + $0x209] sm:$0x1] %vm933, 0.0
    %986 = vst.msk [vmem:[%s932 + $0x221] sm:$0x1] %vm933, 0.0
    %987 = vst.msk [vmem:[%s932 + $0x239] sm:$0x1] %vm933, 0.0
    %988 = vst.msk [vmem:[%s932 + $0x251] sm:$0x1] %vm933, 0.0
    %989 = vst.msk [vmem:[%s932 + $0x269] sm:$0x1] %vm933, 0.0
    %990 = vst.msk [vmem:[%s932 + $0x281] sm:$0x1] %vm933, 0.0
    %991 = vst.msk [vmem:[%s932 + $0x299] sm:$0x1] %vm933, 0.0
    %992 = vst.msk [vmem:[%s932 + $0x2b1] sm:$0x1] %vm933, 0.0
    %993 = vst.msk [vmem:[%s932 + $0x2c9] sm:$0x1] %vm933, 0.0
    %994 = vst.msk [vmem:[%s932 + $0x2e1] sm:$0x1] %vm933, 0.0
    %995 = vst.msk [vmem:[%s932 + $0x2f9] sm:$0x1] %vm933, 0.0
    %996 = vst.msk [vmem:[%s932 + $0x311] sm:$0x1] %vm933, 0.0
    %997 = vst.msk [vmem:[%s932 + $0x329] sm:$0x1] %vm933, 0.0
    %1062 = vrot.lane.b32.xlu0 %v853, 64
    %v1063 = vpop.permute.xlu0 %1062
    %1064 = vrot.lane.b32.xlu0 %v854, 64
    %v1065 = vpop.permute.xlu0 %1064
    %1066 = vrot.lane.b32.xlu0 %v855, 64
    %v1067 = vpop.permute.xlu0 %1066
    %1068 = vrot.lane.b32.xlu0 %v856, 64
    %v1069 = vpop.permute.xlu0 %1068
    %1070 = vrot.lane.b32.xlu0 %v857, 64
    %v1071 = vpop.permute.xlu0 %1070
    %1072 = vrot.lane.b32.xlu0 %v858, 64
    %v1073 = vpop.permute.xlu0 %1072
    %1074 = vrot.lane.b32.xlu0 %v859, 64
    %v1075 = vpop.permute.xlu0 %1074
    %1076 = vrot.lane.b32.xlu0 %v860, 64
    %v1077 = vpop.permute.xlu0 %1076
    %1078 = vrot.lane.b32.xlu0 %v861, 64
    %v1079 = vpop.permute.xlu0 %1078
    %1080 = vrot.lane.b32.xlu0 %v862, 64
    %v1081 = vpop.permute.xlu0 %1080
    %1082 = vrot.lane.b32.xlu0 %v863, 64
    %v1083 = vpop.permute.xlu0 %1082
    %1084 = vrot.lane.b32.xlu0 %v864, 64
    %v1085 = vpop.permute.xlu0 %1084
    %1086 = vrot.lane.b32.xlu0 %v865, 64
    %v1087 = vpop.permute.xlu0 %1086
    %1088 = vrot.lane.b32.xlu0 %v866, 64
    %v1089 = vpop.permute.xlu0 %1088
    %1090 = vrot.lane.b32.xlu0 %v867, 64
    %v1091 = vpop.permute.xlu0 %1090
    %1092 = vrot.lane.b32.xlu0 %v868, 64
    %v1093 = vpop.permute.xlu0 %1092
    %1094 = vrot.lane.b32.xlu0 %v869, 64
    %v1095 = vpop.permute.xlu0 %1094
    %1096 = vrot.lane.b32.xlu0 %v870, 64
    %v1097 = vpop.permute.xlu0 %1096
    %1098 = vrot.lane.b32.xlu0 %v871, 64
    %v1099 = vpop.permute.xlu0 %1098
    %1100 = vrot.lane.b32.xlu0 %v872, 64
    %v1101 = vpop.permute.xlu0 %1100
    %1102 = vrot.lane.b32.xlu0 %v873, 64
    %v1103 = vpop.permute.xlu0 %1102
    %1104 = vrot.lane.b32.xlu0 %v874, 64
    %v1105 = vpop.permute.xlu0 %1104
    %1106 = vrot.lane.b32.xlu0 %v875, 64
    %v1107 = vpop.permute.xlu0 %1106
    %1108 = vrot.lane.b32.xlu0 %v876, 64
    %v1109 = vpop.permute.xlu0 %1108
    %1110 = vrot.lane.b32.xlu0 %v877, 64
    %v1111 = vpop.permute.xlu0 %1110
    %1112 = vrot.lane.b32.xlu0 %v878, 64
    %v1113 = vpop.permute.xlu0 %1112
    %1114 = vrot.lane.b32.xlu0 %v879, 64
    %v1115 = vpop.permute.xlu0 %1114
    %1116 = vrot.lane.b32.xlu0 %v880, 64
    %v1117 = vpop.permute.xlu0 %1116
    %1118 = vrot.lane.b32.xlu0 %v881, 64
    %v1119 = vpop.permute.xlu0 %1118
    %1120 = vrot.lane.b32.xlu0 %v882, 64
    %v1121 = vpop.permute.xlu0 %1120
    %1122 = vrot.lane.b32.xlu0 %v883, 64
    %v1123 = vpop.permute.xlu0 %1122
    %1124 = vrot.lane.b32.xlu0 %v884, 64
    %v1125 = vpop.permute.xlu0 %1124
    %1126 = vrot.lane.b32.xlu0 %v885, 64
    %v1127 = vpop.permute.xlu0 %1126
    %1128 = vrot.lane.b32.xlu0 %v886, 64
    %v1129 = vpop.permute.xlu0 %1128
    %1130 = vrot.lane.b32.xlu0 %v887, 64
    %v1131 = vpop.permute.xlu0 %1130
    %1132 = vrot.lane.b32.xlu0 %v888, 64
    %v1133 = vpop.permute.xlu0 %1132
    %1134 = vrot.lane.b32.xlu0 %v889, 64
    %v1135 = vpop.permute.xlu0 %1134
    %1136 = vrot.lane.b32.xlu0 %v890, 64
    %v1137 = vpop.permute.xlu0 %1136
    %1138 = vrot.lane.b32.xlu0 %v891, 64
    %v1139 = vpop.permute.xlu0 %1138
    %1140 = vrot.lane.b32.xlu0 %v892, 64
    %v1141 = vpop.permute.xlu0 %1140
    %1142 = vrot.lane.b32.xlu0 %v893, 64
    %v1143 = vpop.permute.xlu0 %1142
    %1144 = vrot.lane.b32.xlu0 %v894, 64
    %v1145 = vpop.permute.xlu0 %1144
    %1146 = vrot.lane.b32.xlu0 %v895, 64
    %v1147 = vpop.permute.xlu0 %1146
    %1148 = vrot.lane.b32.xlu0 %v896, 64
    %v1149 = vpop.permute.xlu0 %1148
    %1150 = vrot.lane.b32.xlu0 %v897, 64
    %v1151 = vpop.permute.xlu0 %1150
    %1152 = vrot.lane.b32.xlu0 %v898, 64
    %v1153 = vpop.permute.xlu0 %1152
    %1154 = vrot.lane.b32.xlu0 %v899, 64
    %v1155 = vpop.permute.xlu0 %1154
    %1156 = vrot.lane.b32.xlu0 %v900, 64
    %v1157 = vpop.permute.xlu0 %1156
    %1158 = vrot.lane.b32.xlu0 %v901, 64
    %v1159 = vpop.permute.xlu0 %1158
    %1160 = vrot.lane.b32.xlu0 %v902, 64
    %v1161 = vpop.permute.xlu0 %1160
    %1162 = vrot.lane.b32.xlu0 %v903, 64
    %v1163 = vpop.permute.xlu0 %1162
    %1164 = vrot.lane.b32.xlu0 %v904, 64
    %v1165 = vpop.permute.xlu0 %1164
    %1166 = vrot.lane.b32.xlu0 %v905, 64
    %v1167 = vpop.permute.xlu0 %1166
    %1168 = vrot.lane.b32.xlu0 %v906, 64
    %v1169 = vpop.permute.xlu0 %1168
    %1170 = vrot.lane.b32.xlu0 %v907, 64
    %v1171 = vpop.permute.xlu0 %1170
    %1172 = vrot.lane.b32.xlu0 %v908, 64
    %v1173 = vpop.permute.xlu0 %1172
    %1174 = vrot.lane.b32.xlu0 %v909, 64
    %v1175 = vpop.permute.xlu0 %1174
    %1176 = vrot.lane.b32.xlu0 %v910, 64
    %v1177 = vpop.permute.xlu0 %1176
    %1178 = vrot.lane.b32.xlu0 %v911, 64
    %v1179 = vpop.permute.xlu0 %1178
    %1180 = vrot.lane.b32.xlu0 %v912, 64
    %v1181 = vpop.permute.xlu0 %1180
    %1182 = vrot.lane.b32.xlu0 %v913, 64
    %v1183 = vpop.permute.xlu0 %1182
    %1184 = vrot.lane.b32.xlu0 %v914, 64
    %v1185 = vpop.permute.xlu0 %1184
    %1186 = vrot.lane.b32.xlu0 %v915, 64
    %v1187 = vpop.permute.xlu0 %1186
    %1188 = vrot.lane.b32.xlu0 %v916, 64
    %v1189 = vpop.permute.xlu0 %1188
    %1254 = vst.msk [vmem:[%s932 + $0x1] sm:$0xff] %vm917, %v1063
    %1255 = vst.msk [vmem:[%s932 + $0x9] sm:$0xff] %vm917, %v1065
    %1256 = vst.msk [vmem:[%s932 + $0x19] sm:$0xff] %vm917, %v1067
    %1257 = vst.msk [vmem:[%s932 + $0x21] sm:$0xff] %vm917, %v1069
    %1258 = vst.msk [vmem:[%s932 + $0x31] sm:$0xff] %vm917, %v1071
    %1259 = vst.msk [vmem:[%s932 + $0x39] sm:$0xff] %vm917, %v1073
    %1260 = vst.msk [vmem:[%s932 + $0x49] sm:$0xff] %vm917, %v1075
    %1261 = vst.msk [vmem:[%s932 + $0x51] sm:$0xff] %vm917, %v1077
    %1262 = vst.msk [vmem:[%s932 + $0x61] sm:$0xff] %vm917, %v1079
    %1263 = vst.msk [vmem:[%s932 + $0x69] sm:$0xff] %vm917, %v1081
    %1264 = vst.msk [vmem:[%s932 + $0x79] sm:$0xff] %vm917, %v1083
    %1265 = vst.msk [vmem:[%s932 + $0x81] sm:$0xff] %vm917, %v1085
    %1266 = vst.msk [vmem:[%s932 + $0x91] sm:$0xff] %vm917, %v1087
    %1267 = vst.msk [vmem:[%s932 + $0x99] sm:$0xff] %vm917, %v1089
    %1268 = vst.msk [vmem:[%s932 + $0xa9] sm:$0xff] %vm917, %v1091
    %1269 = vst.msk [vmem:[%s932 + $0xb1] sm:$0xff] %vm917, %v1093
    %1270 = vst.msk [vmem:[%s932 + $0xc1] sm:$0xff] %vm917, %v1095
    %1271 = vst.msk [vmem:[%s932 + $0xc9] sm:$0xff] %vm917, %v1097
    %1272 = vst.msk [vmem:[%s932 + $0xd9] sm:$0xff] %vm917, %v1099
    %1273 = vst.msk [vmem:[%s932 + $0xe1] sm:$0xff] %vm917, %v1101
    %1274 = vst.msk [vmem:[%s932 + $0xf1] sm:$0xff] %vm917, %v1103
    %1275 = vst.msk [vmem:[%s932 + $0xf9] sm:$0xff] %vm917, %v1105
    %1276 = vst.msk [vmem:[%s932 + $0x109] sm:$0xff] %vm917, %v1107
    %1277 = vst.msk [vmem:[%s932 + $0x111] sm:$0xff] %vm917, %v1109
    %1278 = vst.msk [vmem:[%s932 + $0x121] sm:$0xff] %vm917, %v1111
    %1279 = vst.msk [vmem:[%s932 + $0x129] sm:$0xff] %vm917, %v1113
    %1280 = vst.msk [vmem:[%s932 + $0x139] sm:$0xff] %vm917, %v1115
    %1281 = vst.msk [vmem:[%s932 + $0x141] sm:$0xff] %vm917, %v1117
    %1282 = vst.msk [vmem:[%s932 + $0x151] sm:$0xff] %vm917, %v1119
    %1283 = vst.msk [vmem:[%s932 + $0x159] sm:$0xff] %vm917, %v1121
    %1284 = vst.msk [vmem:[%s932 + $0x169] sm:$0xff] %vm917, %v1123
    %1285 = vst.msk [vmem:[%s932 + $0x171] sm:$0xff] %vm917, %v1125
    %1286 = vst.msk [vmem:[%s932 + $0x1b1] sm:$0xff] %vm917, %v1127
    %1287 = vst.msk [vmem:[%s932 + $0x1b9] sm:$0xff] %vm917, %v1129
    %1288 = vst.msk [vmem:[%s932 + $0x1c9] sm:$0xff] %vm917, %v1131
    %1289 = vst.msk [vmem:[%s932 + $0x1d1] sm:$0xff] %vm917, %v1133
    %1290 = vst.msk [vmem:[%s932 + $0x1e1] sm:$0xff] %vm917, %v1135
    %1291 = vst.msk [vmem:[%s932 + $0x1e9] sm:$0xff] %vm917, %v1137
    %1292 = vst.msk [vmem:[%s932 + $0x1f9] sm:$0xff] %vm917, %v1139
    %1293 = vst.msk [vmem:[%s932 + $0x201] sm:$0xff] %vm917, %v1141
    %1294 = vst.msk [vmem:[%s932 + $0x211] sm:$0xff] %vm917, %v1143
    %1295 = vst.msk [vmem:[%s932 + $0x219] sm:$0xff] %vm917, %v1145
    %1296 = vst.msk [vmem:[%s932 + $0x229] sm:$0xff] %vm917, %v1147
    %1297 = vst.msk [vmem:[%s932 + $0x231] sm:$0xff] %vm917, %v1149
    %1298 = vst.msk [vmem:[%s932 + $0x241] sm:$0xff] %vm917, %v1151
    %1299 = vst.msk [vmem:[%s932 + $0x249] sm:$0xff] %vm917, %v1153
    %1300 = vst.msk [vmem:[%s932 + $0x259] sm:$0xff] %vm917, %v1155
    %1301 = vst.msk [vmem:[%s932 + $0x261] sm:$0xff] %vm917, %v1157
    %1302 = vst.msk [vmem:[%s932 + $0x271] sm:$0xff] %vm917, %v1159
    %1303 = vst.msk [vmem:[%s932 + $0x279] sm:$0xff] %vm917, %v1161
    %1304 = vst.msk [vmem:[%s932 + $0x289] sm:$0xff] %vm917, %v1163
    %1305 = vst.msk [vmem:[%s932 + $0x291] sm:$0xff] %vm917, %v1165
    %1306 = vst.msk [vmem:[%s932 + $0x2a1] sm:$0xff] %vm917, %v1167
    %1307 = vst.msk [vmem:[%s932 + $0x2a9] sm:$0xff] %vm917, %v1169
    %1308 = vst.msk [vmem:[%s932 + $0x2b9] sm:$0xff] %vm917, %v1171
    %1309 = vst.msk [vmem:[%s932 + $0x2c1] sm:$0xff] %vm917, %v1173
    %1310 = vst.msk [vmem:[%s932 + $0x2d1] sm:$0xff] %vm917, %v1175
    %1311 = vst.msk [vmem:[%s932 + $0x2d9] sm:$0xff] %vm917, %v1177
    %1312 = vst.msk [vmem:[%s932 + $0x2e9] sm:$0xff] %vm917, %v1179
    %1313 = vst.msk [vmem:[%s932 + $0x2f1] sm:$0xff] %vm917, %v1181
    %1314 = vst.msk [vmem:[%s932 + $0x301] sm:$0xff] %vm917, %v1183
    %1315 = vst.msk [vmem:[%s932 + $0x309] sm:$0xff] %vm917, %v1185
    %1316 = vst.msk [vmem:[%s932 + $0x319] sm:$0xff] %vm917, %v1187
    %1317 = vst.msk [vmem:[%s932 + $0x321] sm:$0xff] %vm917, %v1189
    %v1318 = vld [vmem:[#allocation9] sm:$0x1]
    %v1319 = vld [vmem:[#allocation2] sm:$0xff]
    %v1320 = vld [vmem:[#allocation2 + $0x8] sm:$0xff]
    %v1321 = vld [vmem:[#allocation2 + $0x18] sm:$0xff]
    %v1322 = vld [vmem:[#allocation2 + $0x20] sm:$0xff]
    %v1323 = vld [vmem:[#allocation2 + $0x30] sm:$0xff]
    %v1324 = vld [vmem:[#allocation2 + $0x38] sm:$0xff]
    %v1325 = vld [vmem:[#allocation2 + $0x48] sm:$0xff]
    %v1326 = vld [vmem:[#allocation2 + $0x50] sm:$0xff]
    %v1327 = vld [vmem:[#allocation2 + $0x60] sm:$0xff]
    %v1328 = vld [vmem:[#allocation2 + $0x68] sm:$0xff]
    %v1329 = vld [vmem:[#allocation2 + $0x78] sm:$0xff]
    %v1330 = vld [vmem:[#allocation2 + $0x80] sm:$0xff]
    %v1331 = vld [vmem:[#allocation2 + $0x90] sm:$0xff]
    %v1332 = vld [vmem:[#allocation2 + $0x98] sm:$0xff]
    %v1333 = vld [vmem:[#allocation2 + $0xa8] sm:$0xff]
    %v1334 = vld [vmem:[#allocation2 + $0xb0] sm:$0xff]
    %v1335 = vld [vmem:[#allocation2 + $0xc0] sm:$0xff]
    %v1336 = vld [vmem:[#allocation2 + $0xc8] sm:$0xff]
    %v1337 = vld [vmem:[#allocation2 + $0xd8] sm:$0xff]
    %v1338 = vld [vmem:[#allocation2 + $0xe0] sm:$0xff]
    %v1339 = vld [vmem:[#allocation2 + $0xf0] sm:$0xff]
    %v1340 = vld [vmem:[#allocation2 + $0xf8] sm:$0xff]
    %v1341 = vld [vmem:[#allocation2 + $0x108] sm:$0xff]
    %v1342 = vld [vmem:[#allocation2 + $0x110] sm:$0xff]
    %v1343 = vld [vmem:[#allocation2 + $0x120] sm:$0xff]
    %v1344 = vld [vmem:[#allocation2 + $0x128] sm:$0xff]
    %v1345 = vld [vmem:[#allocation2 + $0x138] sm:$0xff]
    %v1346 = vld [vmem:[#allocation2 + $0x140] sm:$0xff]
    %v1347 = vld [vmem:[#allocation2 + $0x150] sm:$0xff]
    %v1348 = vld [vmem:[#allocation2 + $0x158] sm:$0xff]
    %v1349 = vld [vmem:[#allocation2 + $0x168] sm:$0xff]
    %v1350 = vld [vmem:[#allocation2 + $0x170] sm:$0xff]
    %v1351 = vld [vmem:[#allocation2 + $0x1b0] sm:$0xff]
    %v1352 = vld [vmem:[#allocation2 + $0x1b8] sm:$0xff]
    %v1353 = vld [vmem:[#allocation2 + $0x1c8] sm:$0xff]
    %v1354 = vld [vmem:[#allocation2 + $0x1d0] sm:$0xff]
    %v1355 = vld [vmem:[#allocation2 + $0x1e0] sm:$0xff]
    %v1356 = vld [vmem:[#allocation2 + $0x1e8] sm:$0xff]
    %v1357 = vld [vmem:[#allocation2 + $0x1f8] sm:$0xff]
    %v1358 = vld [vmem:[#allocation2 + $0x200] sm:$0xff]
    %v1359 = vld [vmem:[#allocation2 + $0x210] sm:$0xff]
    %v1360 = vld [vmem:[#allocation2 + $0x218] sm:$0xff]
    %v1361 = vld [vmem:[#allocation2 + $0x228] sm:$0xff]
    %v1362 = vld [vmem:[#allocation2 + $0x230] sm:$0xff]
    %v1363 = vld [vmem:[#allocation2 + $0x240] sm:$0xff]
    %v1364 = vld [vmem:[#allocation2 + $0x248] sm:$0xff]
    %v1365 = vld [vmem:[#allocation2 + $0x258] sm:$0xff]
    %v1366 = vld [vmem:[#allocation2 + $0x260] sm:$0xff]
    %v1367 = vld [vmem:[#allocation2 + $0x270] sm:$0xff]
    %v1368 = vld [vmem:[#allocation2 + $0x278] sm:$0xff]
    %v1369 = vld [vmem:[#allocation2 + $0x288] sm:$0xff]
    %v1370 = vld [vmem:[#allocation2 + $0x290] sm:$0xff]
    %v1371 = vld [vmem:[#allocation2 + $0x2a0] sm:$0xff]
    %v1372 = vld [vmem:[#allocation2 + $0x2a8] sm:$0xff]
    %v1373 = vld [vmem:[#allocation2 + $0x2b8] sm:$0xff]
    %v1374 = vld [vmem:[#allocation2 + $0x2c0] sm:$0xff]
    %v1375 = vld [vmem:[#allocation2 + $0x2d0] sm:$0xff]
    %v1376 = vld [vmem:[#allocation2 + $0x2d8] sm:$0xff]
    %v1377 = vld [vmem:[#allocation2 + $0x2e8] sm:$0xff]
    %v1378 = vld [vmem:[#allocation2 + $0x2f0] sm:$0xff]
    %v1379 = vld [vmem:[#allocation2 + $0x300] sm:$0xff]
    %v1380 = vld [vmem:[#allocation2 + $0x308] sm:$0xff]
    %v1381 = vld [vmem:[#allocation2 + $0x318] sm:$0xff]
    %v1382 = vld [vmem:[#allocation2 + $0x320] sm:$0xff]
    %v1383 = vlaneseq
    %v1384 = vshrl.u32 %v1383, 7
    %v1385 = vsub.s32 0, %v1384
    %v1386 = vrot.slane %v1318, %v1385
    %v1387 = vmul.f32 %v1319, %v1386
    %v1388 = vmul.f32 %v1320, %v1386
    %v1389 = vmul.f32 %v1321, %v1386
    %v1390 = vmul.f32 %v1322, %v1386
    %v1391 = vmul.f32 %v1323, %v1386
    %v1392 = vmul.f32 %v1324, %v1386
    %v1393 = vmul.f32 %v1325, %v1386
    %v1394 = vmul.f32 %v1326, %v1386
    %v1395 = vmul.f32 %v1327, %v1386
    %v1396 = vmul.f32 %v1328, %v1386
    %v1397 = vmul.f32 %v1329, %v1386
    %v1398 = vmul.f32 %v1330, %v1386
    %v1399 = vmul.f32 %v1331, %v1386
    %v1400 = vmul.f32 %v1332, %v1386
    %v1401 = vmul.f32 %v1333, %v1386
    %v1402 = vmul.f32 %v1334, %v1386
    %v1403 = vmul.f32 %v1335, %v1386
    %v1404 = vmul.f32 %v1336, %v1386
    %v1405 = vmul.f32 %v1337, %v1386
    %v1406 = vmul.f32 %v1338, %v1386
    %v1407 = vmul.f32 %v1339, %v1386
    %v1408 = vmul.f32 %v1340, %v1386
    %v1409 = vmul.f32 %v1341, %v1386
    %v1410 = vmul.f32 %v1342, %v1386
    %v1411 = vmul.f32 %v1343, %v1386
    %v1412 = vmul.f32 %v1344, %v1386
    %v1413 = vmul.f32 %v1345, %v1386
    %v1414 = vmul.f32 %v1346, %v1386
    %v1415 = vmul.f32 %v1347, %v1386
    %v1416 = vmul.f32 %v1348, %v1386
    %v1417 = vmul.f32 %v1349, %v1386
    %v1418 = vmul.f32 %v1350, %v1386
    %v1419 = vmul.f32 %v1351, %v1386
    %v1420 = vmul.f32 %v1352, %v1386
    %v1421 = vmul.f32 %v1353, %v1386
    %v1422 = vmul.f32 %v1354, %v1386
    %v1423 = vmul.f32 %v1355, %v1386
    %v1424 = vmul.f32 %v1356, %v1386
    %v1425 = vmul.f32 %v1357, %v1386
    %v1426 = vmul.f32 %v1358, %v1386
    %v1427 = vmul.f32 %v1359, %v1386
    %v1428 = vmul.f32 %v1360, %v1386
    %v1429 = vmul.f32 %v1361, %v1386
    %v1430 = vmul.f32 %v1362, %v1386
    %v1431 = vmul.f32 %v1363, %v1386
    %v1432 = vmul.f32 %v1364, %v1386
    %v1433 = vmul.f32 %v1365, %v1386
    %v1434 = vmul.f32 %v1366, %v1386
    %v1435 = vmul.f32 %v1367, %v1386
    %v1436 = vmul.f32 %v1368, %v1386
    %v1437 = vmul.f32 %v1369, %v1386
    %v1438 = vmul.f32 %v1370, %v1386
    %v1439 = vmul.f32 %v1371, %v1386
    %v1440 = vmul.f32 %v1372, %v1386
    %v1441 = vmul.f32 %v1373, %v1386
    %v1442 = vmul.f32 %v1374, %v1386
    %v1443 = vmul.f32 %v1375, %v1386
    %v1444 = vmul.f32 %v1376, %v1386
    %v1445 = vmul.f32 %v1377, %v1386
    %v1446 = vmul.f32 %v1378, %v1386
    %v1447 = vmul.f32 %v1379, %v1386
    %v1448 = vmul.f32 %v1380, %v1386
    %v1449 = vmul.f32 %v1381, %v1386
    %v1450 = vmul.f32 %v1382, %v1386
    %v1451 = vadd.f32 %v1387, 0.0
    %v1452 = vadd.f32 %v1388, 0.0
    %v1453 = vadd.f32 %v1389, 0.0
    %v1454 = vadd.f32 %v1390, 0.0
    %v1455 = vadd.f32 %v1391, 0.0
    %v1456 = vadd.f32 %v1392, 0.0
    %v1457 = vadd.f32 %v1393, 0.0
    %v1458 = vadd.f32 %v1394, 0.0
    %v1459 = vadd.f32 %v1395, 0.0
    %v1460 = vadd.f32 %v1396, 0.0
    %v1461 = vadd.f32 %v1397, 0.0
    %v1462 = vadd.f32 %v1398, 0.0
    %v1463 = vadd.f32 %v1399, 0.0
    %v1464 = vadd.f32 %v1400, 0.0
    %v1465 = vadd.f32 %v1401, 0.0
    %v1466 = vadd.f32 %v1402, 0.0
    %v1467 = vadd.f32 %v1403, 0.0
    %v1468 = vadd.f32 %v1404, 0.0
    %v1469 = vadd.f32 %v1405, 0.0
    %v1470 = vadd.f32 %v1406, 0.0
    %v1471 = vadd.f32 %v1407, 0.0
    %v1472 = vadd.f32 %v1408, 0.0
    %v1473 = vadd.f32 %v1409, 0.0
    %v1474 = vadd.f32 %v1410, 0.0
    %v1475 = vadd.f32 %v1411, 0.0
    %v1476 = vadd.f32 %v1412, 0.0
    %v1477 = vadd.f32 %v1413, 0.0
    %v1478 = vadd.f32 %v1414, 0.0
    %v1479 = vadd.f32 %v1415, 0.0
    %v1480 = vadd.f32 %v1416, 0.0
    %v1481 = vadd.f32 %v1417, 0.0
    %v1482 = vadd.f32 %v1418, 0.0
    %v1483 = vadd.f32 %v1419, 0.0
    %v1484 = vadd.f32 %v1420, 0.0
    %v1485 = vadd.f32 %v1421, 0.0
    %v1486 = vadd.f32 %v1422, 0.0
    %v1487 = vadd.f32 %v1423, 0.0
    %v1488 = vadd.f32 %v1424, 0.0
    %v1489 = vadd.f32 %v1425, 0.0
    %v1490 = vadd.f32 %v1426, 0.0
    %v1491 = vadd.f32 %v1427, 0.0
    %v1492 = vadd.f32 %v1428, 0.0
    %v1493 = vadd.f32 %v1429, 0.0
    %v1494 = vadd.f32 %v1430, 0.0
    %v1495 = vadd.f32 %v1431, 0.0
    %v1496 = vadd.f32 %v1432, 0.0
    %v1497 = vadd.f32 %v1433, 0.0
    %v1498 = vadd.f32 %v1434, 0.0
    %v1499 = vadd.f32 %v1435, 0.0
    %v1500 = vadd.f32 %v1436, 0.0
    %v1501 = vadd.f32 %v1437, 0.0
    %v1502 = vadd.f32 %v1438, 0.0
    %v1503 = vadd.f32 %v1439, 0.0
    %v1504 = vadd.f32 %v1440, 0.0
    %v1505 = vadd.f32 %v1441, 0.0
    %v1506 = vadd.f32 %v1442, 0.0
    %v1507 = vadd.f32 %v1443, 0.0
    %v1508 = vadd.f32 %v1444, 0.0
    %v1509 = vadd.f32 %v1445, 0.0
    %v1510 = vadd.f32 %v1446, 0.0
    %v1511 = vadd.f32 %v1447, 0.0
    %v1512 = vadd.f32 %v1448, 0.0
    %v1513 = vadd.f32 %v1449, 0.0
    %v1514 = vadd.f32 %v1450, 0.0
    %v1515 = vld [vmem:[#allocation9 + $0x1] sm:$0x1]
    %v1516 = vld [vmem:[#allocation2 + $0x1] sm:$0xff]
    %v1517 = vld [vmem:[#allocation2 + $0x9] sm:$0xff]
    %v1518 = vld [vmem:[#allocation2 + $0x19] sm:$0xff]
    %v1519 = vld [vmem:[#allocation2 + $0x21] sm:$0xff]
    %v1520 = vld [vmem:[#allocation2 + $0x31] sm:$0xff]
    %v1521 = vld [vmem:[#allocation2 + $0x39] sm:$0xff]
    %v1522 = vld [vmem:[#allocation2 + $0x49] sm:$0xff]
    %v1523 = vld [vmem:[#allocation2 + $0x51] sm:$0xff]
    %v1524 = vld [vmem:[#allocation2 + $0x61] sm:$0xff]
    %v1525 = vld [vmem:[#allocation2 + $0x69] sm:$0xff]
    %v1526 = vld [vmem:[#allocation2 + $0x79] sm:$0xff]
    %v1527 = vld [vmem:[#allocation2 + $0x81] sm:$0xff]
    %v1528 = vld [vmem:[#allocation2 + $0x91] sm:$0xff]
    %v1529 = vld [vmem:[#allocation2 + $0x99] sm:$0xff]
    %v1530 = vld [vmem:[#allocation2 + $0xa9] sm:$0xff]
    %v1531 = vld [vmem:[#allocation2 + $0xb1] sm:$0xff]
    %v1532 = vld [vmem:[#allocation2 + $0xc1] sm:$0xff]
    %v1533 = vld [vmem:[#allocation2 + $0xc9] sm:$0xff]
    %v1534 = vld [vmem:[#allocation2 + $0xd9] sm:$0xff]
    %v1535 = vld [vmem:[#allocation2 + $0xe1] sm:$0xff]
    %v1536 = vld [vmem:[#allocation2 + $0xf1] sm:$0xff]
    %v1537 = vld [vmem:[#allocation2 + $0xf9] sm:$0xff]
    %v1538 = vld [vmem:[#allocation2 + $0x109] sm:$0xff]
    %v1539 = vld [vmem:[#allocation2 + $0x111] sm:$0xff]
    %v1540 = vld [vmem:[#allocation2 + $0x121] sm:$0xff]
    %v1541 = vld [vmem:[#allocation2 + $0x129] sm:$0xff]
    %v1542 = vld [vmem:[#allocation2 + $0x139] sm:$0xff]
    %v1543 = vld [vmem:[#allocation2 + $0x141] sm:$0xff]
    %v1544 = vld [vmem:[#allocation2 + $0x151] sm:$0xff]
    %v1545 = vld [vmem:[#allocation2 + $0x159] sm:$0xff]
    %v1546 = vld [vmem:[#allocation2 + $0x169] sm:$0xff]
    %v1547 = vld [vmem:[#allocation2 + $0x171] sm:$0xff]
    %v1548 = vld [vmem:[#allocation2 + $0x1b1] sm:$0xff]
    %v1549 = vld [vmem:[#allocation2 + $0x1b9] sm:$0xff]
    %v1550 = vld [vmem:[#allocation2 + $0x1c9] sm:$0xff]
    %v1551 = vld [vmem:[#allocation2 + $0x1d1] sm:$0xff]
    %v1552 = vld [vmem:[#allocation2 + $0x1e1] sm:$0xff]
    %v1553 = vld [vmem:[#allocation2 + $0x1e9] sm:$0xff]
    %v1554 = vld [vmem:[#allocation2 + $0x1f9] sm:$0xff]
    %v1555 = vld [vmem:[#allocation2 + $0x201] sm:$0xff]
    %v1556 = vld [vmem:[#allocation2 + $0x211] sm:$0xff]
    %v1557 = vld [vmem:[#allocation2 + $0x219] sm:$0xff]
    %v1558 = vld [vmem:[#allocation2 + $0x229] sm:$0xff]
    %v1559 = vld [vmem:[#allocation2 + $0x231] sm:$0xff]
    %v1560 = vld [vmem:[#allocation2 + $0x241] sm:$0xff]
    %v1561 = vld [vmem:[#allocation2 + $0x249] sm:$0xff]
    %v1562 = vld [vmem:[#allocation2 + $0x259] sm:$0xff]
    %v1563 = vld [vmem:[#allocation2 + $0x261] sm:$0xff]
    %v1564 = vld [vmem:[#allocation2 + $0x271] sm:$0xff]
    %v1565 = vld [vmem:[#allocation2 + $0x279] sm:$0xff]
    %v1566 = vld [vmem:[#allocation2 + $0x289] sm:$0xff]
    %v1567 = vld [vmem:[#allocation2 + $0x291] sm:$0xff]
    %v1568 = vld [vmem:[#allocation2 + $0x2a1] sm:$0xff]
    %v1569 = vld [vmem:[#allocation2 + $0x2a9] sm:$0xff]
    %v1570 = vld [vmem:[#allocation2 + $0x2b9] sm:$0xff]
    %v1571 = vld [vmem:[#allocation2 + $0x2c1] sm:$0xff]
    %v1572 = vld [vmem:[#allocation2 + $0x2d1] sm:$0xff]
    %v1573 = vld [vmem:[#allocation2 + $0x2d9] sm:$0xff]
    %v1574 = vld [vmem:[#allocation2 + $0x2e9] sm:$0xff]
    %v1575 = vld [vmem:[#allocation2 + $0x2f1] sm:$0xff]
    %v1576 = vld [vmem:[#allocation2 + $0x301] sm:$0xff]
    %v1577 = vld [vmem:[#allocation2 + $0x309] sm:$0xff]
    %v1578 = vld [vmem:[#allocation2 + $0x319] sm:$0xff]
    %v1579 = vld [vmem:[#allocation2 + $0x321] sm:$0xff]
    %v1580 = vlaneseq
    %v1581 = vshrl.u32 %v1580, 7
    %v1582 = vsub.s32 0, %v1581
    %v1583 = vrot.slane %v1515, %v1582
    %v1584 = vmul.f32 %v1516, %v1583
    %v1585 = vmul.f32 %v1517, %v1583
    %v1586 = vmul.f32 %v1518, %v1583
    %v1587 = vmul.f32 %v1519, %v1583
    %v1588 = vmul.f32 %v1520, %v1583
    %v1589 = vmul.f32 %v1521, %v1583
    %v1590 = vmul.f32 %v1522, %v1583
    %v1591 = vmul.f32 %v1523, %v1583
    %v1592 = vmul.f32 %v1524, %v1583
    %v1593 = vmul.f32 %v1525, %v1583
    %v1594 = vmul.f32 %v1526, %v1583
    %v1595 = vmul.f32 %v1527, %v1583
    %v1596 = vmul.f32 %v1528, %v1583
    %v1597 = vmul.f32 %v1529, %v1583
    %v1598 = vmul.f32 %v1530, %v1583
    %v1599 = vmul.f32 %v1531, %v1583
    %v1600 = vmul.f32 %v1532, %v1583
    %v1601 = vmul.f32 %v1533, %v1583
    %v1602 = vmul.f32 %v1534, %v1583
    %v1603 = vmul.f32 %v1535, %v1583
    %v1604 = vmul.f32 %v1536, %v1583
    %v1605 = vmul.f32 %v1537, %v1583
    %v1606 = vmul.f32 %v1538, %v1583
    %v1607 = vmul.f32 %v1539, %v1583
    %v1608 = vmul.f32 %v1540, %v1583
    %v1609 = vmul.f32 %v1541, %v1583
    %v1610 = vmul.f32 %v1542, %v1583
    %v1611 = vmul.f32 %v1543, %v1583
    %v1612 = vmul.f32 %v1544, %v1583
    %v1613 = vmul.f32 %v1545, %v1583
    %v1614 = vmul.f32 %v1546, %v1583
    %v1615 = vmul.f32 %v1547, %v1583
    %v1616 = vmul.f32 %v1548, %v1583
    %v1617 = vmul.f32 %v1549, %v1583
    %v1618 = vmul.f32 %v1550, %v1583
    %v1619 = vmul.f32 %v1551, %v1583
    %v1620 = vmul.f32 %v1552, %v1583
    %v1621 = vmul.f32 %v1553, %v1583
    %v1622 = vmul.f32 %v1554, %v1583
    %v1623 = vmul.f32 %v1555, %v1583
    %v1624 = vmul.f32 %v1556, %v1583
    %v1625 = vmul.f32 %v1557, %v1583
    %v1626 = vmul.f32 %v1558, %v1583
    %v1627 = vmul.f32 %v1559, %v1583
    %v1628 = vmul.f32 %v1560, %v1583
    %v1629 = vmul.f32 %v1561, %v1583
    %v1630 = vmul.f32 %v1562, %v1583
    %v1631 = vmul.f32 %v1563, %v1583
    %v1632 = vmul.f32 %v1564, %v1583
    %v1633 = vmul.f32 %v1565, %v1583
    %v1634 = vmul.f32 %v1566, %v1583
    %v1635 = vmul.f32 %v1567, %v1583
    %v1636 = vmul.f32 %v1568, %v1583
    %v1637 = vmul.f32 %v1569, %v1583
    %v1638 = vmul.f32 %v1570, %v1583
    %v1639 = vmul.f32 %v1571, %v1583
    %v1640 = vmul.f32 %v1572, %v1583
    %v1641 = vmul.f32 %v1573, %v1583
    %v1642 = vmul.f32 %v1574, %v1583
    %v1643 = vmul.f32 %v1575, %v1583
    %v1644 = vmul.f32 %v1576, %v1583
    %v1645 = vmul.f32 %v1577, %v1583
    %v1646 = vmul.f32 %v1578, %v1583
    %v1647 = vmul.f32 %v1579, %v1583
    %v1648 = vadd.f32 %v1451, %v1584
    %v1649 = vadd.f32 %v1452, %v1585
    %v1650 = vadd.f32 %v1453, %v1586
    %v1651 = vadd.f32 %v1454, %v1587
    %v1652 = vadd.f32 %v1455, %v1588
    %v1653 = vadd.f32 %v1456, %v1589
    %v1654 = vadd.f32 %v1457, %v1590
    %v1655 = vadd.f32 %v1458, %v1591
    %v1656 = vadd.f32 %v1459, %v1592
    %v1657 = vadd.f32 %v1460, %v1593
    %v1658 = vadd.f32 %v1461, %v1594
    %v1659 = vadd.f32 %v1462, %v1595
    %v1660 = vadd.f32 %v1463, %v1596
    %v1661 = vadd.f32 %v1464, %v1597
    %v1662 = vadd.f32 %v1465, %v1598
    %v1663 = vadd.f32 %v1466, %v1599
    %v1664 = vadd.f32 %v1467, %v1600
    %v1665 = vadd.f32 %v1468, %v1601
    %v1666 = vadd.f32 %v1469, %v1602
    %v1667 = vadd.f32 %v1470, %v1603
    %v1668 = vadd.f32 %v1471, %v1604
    %v1669 = vadd.f32 %v1472, %v1605
    %v1670 = vadd.f32 %v1473, %v1606
    %v1671 = vadd.f32 %v1474, %v1607
    %v1672 = vadd.f32 %v1475, %v1608
    %v1673 = vadd.f32 %v1476, %v1609
    %v1674 = vadd.f32 %v1477, %v1610
    %v1675 = vadd.f32 %v1478, %v1611
    %v1676 = vadd.f32 %v1479, %v1612
    %v1677 = vadd.f32 %v1480, %v1613
    %v1678 = vadd.f32 %v1481, %v1614
    %v1679 = vadd.f32 %v1482, %v1615
    %v1680 = vadd.f32 %v1483, %v1616
    %v1681 = vadd.f32 %v1484, %v1617
    %v1682 = vadd.f32 %v1485, %v1618
    %v1683 = vadd.f32 %v1486, %v1619
    %v1684 = vadd.f32 %v1487, %v1620
    %v1685 = vadd.f32 %v1488, %v1621
    %v1686 = vadd.f32 %v1489, %v1622
    %v1687 = vadd.f32 %v1490, %v1623
    %v1688 = vadd.f32 %v1491, %v1624
    %v1689 = vadd.f32 %v1492, %v1625
    %v1690 = vadd.f32 %v1493, %v1626
    %v1691 = vadd.f32 %v1494, %v1627
    %v1692 = vadd.f32 %v1495, %v1628
    %v1693 = vadd.f32 %v1496, %v1629
    %v1694 = vadd.f32 %v1497, %v1630
    %v1695 = vadd.f32 %v1498, %v1631
    %v1696 = vadd.f32 %v1499, %v1632
    %v1697 = vadd.f32 %v1500, %v1633
    %v1698 = vadd.f32 %v1501, %v1634
    %v1699 = vadd.f32 %v1502, %v1635
    %v1700 = vadd.f32 %v1503, %v1636
    %v1701 = vadd.f32 %v1504, %v1637
    %v1702 = vadd.f32 %v1505, %v1638
    %v1703 = vadd.f32 %v1506, %v1639
    %v1704 = vadd.f32 %v1507, %v1640
    %v1705 = vadd.f32 %v1508, %v1641
    %v1706 = vadd.f32 %v1509, %v1642
    %v1707 = vadd.f32 %v1510, %v1643
    %v1708 = vadd.f32 %v1511, %v1644
    %v1709 = vadd.f32 %v1512, %v1645
    %v1710 = vadd.f32 %v1513, %v1646
    %v1711 = vadd.f32 %v1514, %v1647
    %v1712 = vld [vmem:[#allocation9 + $0x2] sm:$0x1]
    %v1713 = vld [vmem:[#allocation2 + $0x2] sm:$0xff]
    %v1714 = vld [vmem:[#allocation2 + $0xa] sm:$0xff]
    %v1715 = vld [vmem:[#allocation2 + $0x1a] sm:$0xff]
    %v1716 = vld [vmem:[#allocation2 + $0x22] sm:$0xff]
    %v1717 = vld [vmem:[#allocation2 + $0x32] sm:$0xff]
    %v1718 = vld [vmem:[#allocation2 + $0x3a] sm:$0xff]
    %v1719 = vld [vmem:[#allocation2 + $0x4a] sm:$0xff]
    %v1720 = vld [vmem:[#allocation2 + $0x52] sm:$0xff]
    %v1721 = vld [vmem:[#allocation2 + $0x62] sm:$0xff]
    %v1722 = vld [vmem:[#allocation2 + $0x6a] sm:$0xff]
    %v1723 = vld [vmem:[#allocation2 + $0x7a] sm:$0xff]
    %v1724 = vld [vmem:[#allocation2 + $0x82] sm:$0xff]
    %v1725 = vld [vmem:[#allocation2 + $0x92] sm:$0xff]
    %v1726 = vld [vmem:[#allocation2 + $0x9a] sm:$0xff]
    %v1727 = vld [vmem:[#allocation2 + $0xaa] sm:$0xff]
    %v1728 = vld [vmem:[#allocation2 + $0xb2] sm:$0xff]
    %v1729 = vld [vmem:[#allocation2 + $0xc2] sm:$0xff]
    %v1730 = vld [vmem:[#allocation2 + $0xca] sm:$0xff]
    %v1731 = vld [vmem:[#allocation2 + $0xda] sm:$0xff]
    %v1732 = vld [vmem:[#allocation2 + $0xe2] sm:$0xff]
    %v1733 = vld [vmem:[#allocation2 + $0xf2] sm:$0xff]
    %v1734 = vld [vmem:[#allocation2 + $0xfa] sm:$0xff]
    %v1735 = vld [vmem:[#allocation2 + $0x10a] sm:$0xff]
    %v1736 = vld [vmem:[#allocation2 + $0x112] sm:$0xff]
    %v1737 = vld [vmem:[#allocation2 + $0x122] sm:$0xff]
    %v1738 = vld [vmem:[#allocation2 + $0x12a] sm:$0xff]
    %v1739 = vld [vmem:[#allocation2 + $0x13a] sm:$0xff]
    %v1740 = vld [vmem:[#allocation2 + $0x142] sm:$0xff]
    %v1741 = vld [vmem:[#allocation2 + $0x152] sm:$0xff]
    %v1742 = vld [vmem:[#allocation2 + $0x15a] sm:$0xff]
    %v1743 = vld [vmem:[#allocation2 + $0x16a] sm:$0xff]
    %v1744 = vld [vmem:[#allocation2 + $0x172] sm:$0xff]
    %v1745 = vld [vmem:[#allocation2 + $0x1b2] sm:$0xff]
    %v1746 = vld [vmem:[#allocation2 + $0x1ba] sm:$0xff]
    %v1747 = vld [vmem:[#allocation2 + $0x1ca] sm:$0xff]
    %v1748 = vld [vmem:[#allocation2 + $0x1d2] sm:$0xff]
    %v1749 = vld [vmem:[#allocation2 + $0x1e2] sm:$0xff]
    %v1750 = vld [vmem:[#allocation2 + $0x1ea] sm:$0xff]
    %v1751 = vld [vmem:[#allocation2 + $0x1fa] sm:$0xff]
    %v1752 = vld [vmem:[#allocation2 + $0x202] sm:$0xff]
    %v1753 = vld [vmem:[#allocation2 + $0x212] sm:$0xff]
    %v1754 = vld [vmem:[#allocation2 + $0x21a] sm:$0xff]
    %v1755 = vld [vmem:[#allocation2 + $0x22a] sm:$0xff]
    %v1756 = vld [vmem:[#allocation2 + $0x232] sm:$0xff]
    %v1757 = vld [vmem:[#allocation2 + $0x242] sm:$0xff]
    %v1758 = vld [vmem:[#allocation2 + $0x24a] sm:$0xff]
    %v1759 = vld [vmem:[#allocation2 + $0x25a] sm:$0xff]
    %v1760 = vld [vmem:[#allocation2 + $0x262] sm:$0xff]
    %v1761 = vld [vmem:[#allocation2 + $0x272] sm:$0xff]
    %v1762 = vld [vmem:[#allocation2 + $0x27a] sm:$0xff]
    %v1763 = vld [vmem:[#allocation2 + $0x28a] sm:$0xff]
    %v1764 = vld [vmem:[#allocation2 + $0x292] sm:$0xff]
    %v1765 = vld [vmem:[#allocation2 + $0x2a2] sm:$0xff]
    %v1766 = vld [vmem:[#allocation2 + $0x2aa] sm:$0xff]
    %v1767 = vld [vmem:[#allocation2 + $0x2ba] sm:$0xff]
    %v1768 = vld [vmem:[#allocation2 + $0x2c2] sm:$0xff]
    %v1769 = vld [vmem:[#allocation2 + $0x2d2] sm:$0xff]
    %v1770 = vld [vmem:[#allocation2 + $0x2da] sm:$0xff]
    %v1771 = vld [vmem:[#allocation2 + $0x2ea] sm:$0xff]
    %v1772 = vld [vmem:[#allocation2 + $0x2f2] sm:$0xff]
    %v1773 = vld [vmem:[#allocation2 + $0x302] sm:$0xff]
    %v1774 = vld [vmem:[#allocation2 + $0x30a] sm:$0xff]
    %v1775 = vld [vmem:[#allocation2 + $0x31a] sm:$0xff]
    %v1776 = vld [vmem:[#allocation2 + $0x322] sm:$0xff]
    %v1777 = vlaneseq
    %v1778 = vshrl.u32 %v1777, 7
    %v1779 = vsub.s32 0, %v1778
    %v1780 = vrot.slane %v1712, %v1779
    %v1781 = vmul.f32 %v1713, %v1780
    %v1782 = vmul.f32 %v1714, %v1780
    %v1783 = vmul.f32 %v1715, %v1780
    %v1784 = vmul.f32 %v1716, %v1780
    %v1785 = vmul.f32 %v1717, %v1780
    %v1786 = vmul.f32 %v1718, %v1780
    %v1787 = vmul.f32 %v1719, %v1780
    %v1788 = vmul.f32 %v1720, %v1780
    %v1789 = vmul.f32 %v1721, %v1780
    %v1790 = vmul.f32 %v1722, %v1780
    %v1791 = vmul.f32 %v1723, %v1780
    %v1792 = vmul.f32 %v1724, %v1780
    %v1793 = vmul.f32 %v1725, %v1780
    %v1794 = vmul.f32 %v1726, %v1780
    %v1795 = vmul.f32 %v1727, %v1780
    %v1796 = vmul.f32 %v1728, %v1780
    %v1797 = vmul.f32 %v1729, %v1780
    %v1798 = vmul.f32 %v1730, %v1780
    %v1799 = vmul.f32 %v1731, %v1780
    %v1800 = vmul.f32 %v1732, %v1780
    %v1801 = vmul.f32 %v1733, %v1780
    %v1802 = vmul.f32 %v1734, %v1780
    %v1803 = vmul.f32 %v1735, %v1780
    %v1804 = vmul.f32 %v1736, %v1780
    %v1805 = vmul.f32 %v1737, %v1780
    %v1806 = vmul.f32 %v1738, %v1780
    %v1807 = vmul.f32 %v1739, %v1780
    %v1808 = vmul.f32 %v1740, %v1780
    %v1809 = vmul.f32 %v1741, %v1780
    %v1810 = vmul.f32 %v1742, %v1780
    %v1811 = vmul.f32 %v1743, %v1780
    %v1812 = vmul.f32 %v1744, %v1780
    %v1813 = vmul.f32 %v1745, %v1780
    %v1814 = vmul.f32 %v1746, %v1780
    %v1815 = vmul.f32 %v1747, %v1780
    %v1816 = vmul.f32 %v1748, %v1780
    %v1817 = vmul.f32 %v1749, %v1780
    %v1818 = vmul.f32 %v1750, %v1780
    %v1819 = vmul.f32 %v1751, %v1780
    %v1820 = vmul.f32 %v1752, %v1780
    %v1821 = vmul.f32 %v1753, %v1780
    %v1822 = vmul.f32 %v1754, %v1780
    %v1823 = vmul.f32 %v1755, %v1780
    %v1824 = vmul.f32 %v1756, %v1780
    %v1825 = vmul.f32 %v1757, %v1780
    %v1826 = vmul.f32 %v1758, %v1780
    %v1827 = vmul.f32 %v1759, %v1780
    %v1828 = vmul.f32 %v1760, %v1780
    %v1829 = vmul.f32 %v1761, %v1780
    %v1830 = vmul.f32 %v1762, %v1780
    %v1831 = vmul.f32 %v1763, %v1780
    %v1832 = vmul.f32 %v1764, %v1780
    %v1833 = vmul.f32 %v1765, %v1780
    %v1834 = vmul.f32 %v1766, %v1780
    %v1835 = vmul.f32 %v1767, %v1780
    %v1836 = vmul.f32 %v1768, %v1780
    %v1837 = vmul.f32 %v1769, %v1780
    %v1838 = vmul.f32 %v1770, %v1780
    %v1839 = vmul.f32 %v1771, %v1780
    %v1840 = vmul.f32 %v1772, %v1780
    %v1841 = vmul.f32 %v1773, %v1780
    %v1842 = vmul.f32 %v1774, %v1780
    %v1843 = vmul.f32 %v1775, %v1780
    %v1844 = vmul.f32 %v1776, %v1780
    %v1845 = vadd.f32 %v1648, %v1781
    %v1846 = vadd.f32 %v1649, %v1782
    %v1847 = vadd.f32 %v1650, %v1783
    %v1848 = vadd.f32 %v1651, %v1784
    %v1849 = vadd.f32 %v1652, %v1785
    %v1850 = vadd.f32 %v1653, %v1786
    %v1851 = vadd.f32 %v1654, %v1787
    %v1852 = vadd.f32 %v1655, %v1788
    %v1853 = vadd.f32 %v1656, %v1789
    %v1854 = vadd.f32 %v1657, %v1790
    %v1855 = vadd.f32 %v1658, %v1791
    %v1856 = vadd.f32 %v1659, %v1792
    %v1857 = vadd.f32 %v1660, %v1793
    %v1858 = vadd.f32 %v1661, %v1794
    %v1859 = vadd.f32 %v1662, %v1795
    %v1860 = vadd.f32 %v1663, %v1796
    %v1861 = vadd.f32 %v1664, %v1797
    %v1862 = vadd.f32 %v1665, %v1798
    %v1863 = vadd.f32 %v1666, %v1799
    %v1864 = vadd.f32 %v1667, %v1800
    %v1865 = vadd.f32 %v1668, %v1801
    %v1866 = vadd.f32 %v1669, %v1802
    %v1867 = vadd.f32 %v1670, %v1803
    %v1868 = vadd.f32 %v1671, %v1804
    %v1869 = vadd.f32 %v1672, %v1805
    %v1870 = vadd.f32 %v1673, %v1806
    %v1871 = vadd.f32 %v1674, %v1807
    %v1872 = vadd.f32 %v1675, %v1808
    %v1873 = vadd.f32 %v1676, %v1809
    %v1874 = vadd.f32 %v1677, %v1810
    %v1875 = vadd.f32 %v1678, %v1811
    %v1876 = vadd.f32 %v1679, %v1812
    %v1877 = vadd.f32 %v1680, %v1813
    %v1878 = vadd.f32 %v1681, %v1814
    %v1879 = vadd.f32 %v1682, %v1815
    %v1880 = vadd.f32 %v1683, %v1816
    %v1881 = vadd.f32 %v1684, %v1817
    %v1882 = vadd.f32 %v1685, %v1818
    %v1883 = vadd.f32 %v1686, %v1819
    %v1884 = vadd.f32 %v1687, %v1820
    %v1885 = vadd.f32 %v1688, %v1821
    %v1886 = vadd.f32 %v1689, %v1822
    %v1887 = vadd.f32 %v1690, %v1823
    %v1888 = vadd.f32 %v1691, %v1824
    %v1889 = vadd.f32 %v1692, %v1825
    %v1890 = vadd.f32 %v1693, %v1826
    %v1891 = vadd.f32 %v1694, %v1827
    %v1892 = vadd.f32 %v1695, %v1828
    %v1893 = vadd.f32 %v1696, %v1829
    %v1894 = vadd.f32 %v1697, %v1830
    %v1895 = vadd.f32 %v1698, %v1831
    %v1896 = vadd.f32 %v1699, %v1832
    %v1897 = vadd.f32 %v1700, %v1833
    %v1898 = vadd.f32 %v1701, %v1834
    %v1899 = vadd.f32 %v1702, %v1835
    %v1900 = vadd.f32 %v1703, %v1836
    %v1901 = vadd.f32 %v1704, %v1837
    %v1902 = vadd.f32 %v1705, %v1838
    %v1903 = vadd.f32 %v1706, %v1839
    %v1904 = vadd.f32 %v1707, %v1840
    %v1905 = vadd.f32 %v1708, %v1841
    %v1906 = vadd.f32 %v1709, %v1842
    %v1907 = vadd.f32 %v1710, %v1843
    %v1908 = vadd.f32 %v1711, %v1844
    %v1909 = vld [vmem:[#allocation9 + $0x3] sm:$0x1]
    %v1910 = vld [vmem:[%s932] sm:$0xff]
    %v1911 = vld [vmem:[%s932 + $0x8] sm:$0xff]
    %v1912 = vld [vmem:[%s932 + $0x18] sm:$0xff]
    %v1913 = vld [vmem:[%s932 + $0x20] sm:$0xff]
    %v1914 = vld [vmem:[%s932 + $0x30] sm:$0xff]
    %v1915 = vld [vmem:[%s932 + $0x38] sm:$0xff]
    %v1916 = vld [vmem:[%s932 + $0x48] sm:$0xff]
    %v1917 = vld [vmem:[%s932 + $0x50] sm:$0xff]
    %v1918 = vld [vmem:[%s932 + $0x60] sm:$0xff]
    %v1919 = vld [vmem:[%s932 + $0x68] sm:$0xff]
    %v1920 = vld [vmem:[%s932 + $0x78] sm:$0xff]
    %v1921 = vld [vmem:[%s932 + $0x80] sm:$0xff]
    %v1922 = vld [vmem:[%s932 + $0x90] sm:$0xff]
    %v1923 = vld [vmem:[%s932 + $0x98] sm:$0xff]
    %v1924 = vld [vmem:[%s932 + $0xa8] sm:$0xff]
    %v1925 = vld [vmem:[%s932 + $0xb0] sm:$0xff]
    %v1926 = vld [vmem:[%s932 + $0xc0] sm:$0xff]
    %v1927 = vld [vmem:[%s932 + $0xc8] sm:$0xff]
    %v1928 = vld [vmem:[%s932 + $0xd8] sm:$0xff]
    %v1929 = vld [vmem:[%s932 + $0xe0] sm:$0xff]
    %v1930 = vld [vmem:[%s932 + $0xf0] sm:$0xff]
    %v1931 = vld [vmem:[%s932 + $0xf8] sm:$0xff]
    %v1932 = vld [vmem:[%s932 + $0x108] sm:$0xff]
    %v1933 = vld [vmem:[%s932 + $0x110] sm:$0xff]
    %v1934 = vld [vmem:[%s932 + $0x120] sm:$0xff]
    %v1935 = vld [vmem:[%s932 + $0x128] sm:$0xff]
    %v1936 = vld [vmem:[%s932 + $0x138] sm:$0xff]
    %v1937 = vld [vmem:[%s932 + $0x140] sm:$0xff]
    %v1938 = vld [vmem:[%s932 + $0x150] sm:$0xff]
    %v1939 = vld [vmem:[%s932 + $0x158] sm:$0xff]
    %v1940 = vld [vmem:[%s932 + $0x168] sm:$0xff]
    %v1941 = vld [vmem:[%s932 + $0x170] sm:$0xff]
    %v1942 = vld [vmem:[%s932 + $0x1b0] sm:$0xff]
    %v1943 = vld [vmem:[%s932 + $0x1b8] sm:$0xff]
    %v1944 = vld [vmem:[%s932 + $0x1c8] sm:$0xff]
    %v1945 = vld [vmem:[%s932 + $0x1d0] sm:$0xff]
    %v1946 = vld [vmem:[%s932 + $0x1e0] sm:$0xff]
    %v1947 = vld [vmem:[%s932 + $0x1e8] sm:$0xff]
    %v1948 = vld [vmem:[%s932 + $0x1f8] sm:$0xff]
    %v1949 = vld [vmem:[%s932 + $0x200] sm:$0xff]
    %v1950 = vld [vmem:[%s932 + $0x210] sm:$0xff]
    %v1951 = vld [vmem:[%s932 + $0x218] sm:$0xff]
    %v1952 = vld [vmem:[%s932 + $0x228] sm:$0xff]
    %v1953 = vld [vmem:[%s932 + $0x230] sm:$0xff]
    %v1954 = vld [vmem:[%s932 + $0x240] sm:$0xff]
    %v1955 = vld [vmem:[%s932 + $0x248] sm:$0xff]
    %v1956 = vld [vmem:[%s932 + $0x258] sm:$0xff]
    %v1957 = vld [vmem:[%s932 + $0x260] sm:$0xff]
    %v1958 = vld [vmem:[%s932 + $0x270] sm:$0xff]
    %v1959 = vld [vmem:[%s932 + $0x278] sm:$0xff]
    %v1960 = vld [vmem:[%s932 + $0x288] sm:$0xff]
    %v1961 = vld [vmem:[%s932 + $0x290] sm:$0xff]
    %v1962 = vld [vmem:[%s932 + $0x2a0] sm:$0xff]
    %v1963 = vld [vmem:[%s932 + $0x2a8] sm:$0xff]
    %v1964 = vld [vmem:[%s932 + $0x2b8] sm:$0xff]
    %v1965 = vld [vmem:[%s932 + $0x2c0] sm:$0xff]
    %v1966 = vld [vmem:[%s932 + $0x2d0] sm:$0xff]
    %v1967 = vld [vmem:[%s932 + $0x2d8] sm:$0xff]
    %v1968 = vld [vmem:[%s932 + $0x2e8] sm:$0xff]
    %v1969 = vld [vmem:[%s932 + $0x2f0] sm:$0xff]
    %v1970 = vld [vmem:[%s932 + $0x300] sm:$0xff]
    %v1971 = vld [vmem:[%s932 + $0x308] sm:$0xff]
    %v1972 = vld [vmem:[%s932 + $0x318] sm:$0xff]
    %v1973 = vld [vmem:[%s932 + $0x320] sm:$0xff]
    %v1974 = vlaneseq
    %v1975 = vshrl.u32 %v1974, 7
    %v1976 = vsub.s32 0, %v1975
    %v1977 = vrot.slane %v1909, %v1976
    %v1978 = vmul.f32 %v1910, %v1977
    %v1979 = vmul.f32 %v1911, %v1977
    %v1980 = vmul.f32 %v1912, %v1977
    %v1981 = vmul.f32 %v1913, %v1977
    %v1982 = vmul.f32 %v1914, %v1977
    %v1983 = vmul.f32 %v1915, %v1977
    %v1984 = vmul.f32 %v1916, %v1977
    %v1985 = vmul.f32 %v1917, %v1977
    %v1986 = vmul.f32 %v1918, %v1977
    %v1987 = vmul.f32 %v1919, %v1977
    %v1988 = vmul.f32 %v1920, %v1977
    %v1989 = vmul.f32 %v1921, %v1977
    %v1990 = vmul.f32 %v1922, %v1977
    %v1991 = vmul.f32 %v1923, %v1977
    %v1992 = vmul.f32 %v1924, %v1977
    %v1993 = vmul.f32 %v1925, %v1977
    %v1994 = vmul.f32 %v1926, %v1977
    %v1995 = vmul.f32 %v1927, %v1977
    %v1996 = vmul.f32 %v1928, %v1977
    %v1997 = vmul.f32 %v1929, %v1977
    %v1998 = vmul.f32 %v1930, %v1977
    %v1999 = vmul.f32 %v1931, %v1977
    %v2000 = vmul.f32 %v1932, %v1977
    %v2001 = vmul.f32 %v1933, %v1977
    %v2002 = vmul.f32 %v1934, %v1977
    %v2003 = vmul.f32 %v1935, %v1977
    %v2004 = vmul.f32 %v1936, %v1977
    %v2005 = vmul.f32 %v1937, %v1977
    %v2006 = vmul.f32 %v1938, %v1977
    %v2007 = vmul.f32 %v1939, %v1977
    %v2008 = vmul.f32 %v1940, %v1977
    %v2009 = vmul.f32 %v1941, %v1977
    %v2010 = vmul.f32 %v1942, %v1977
    %v2011 = vmul.f32 %v1943, %v1977
    %v2012 = vmul.f32 %v1944, %v1977
    %v2013 = vmul.f32 %v1945, %v1977
    %v2014 = vmul.f32 %v1946, %v1977
    %v2015 = vmul.f32 %v1947, %v1977
    %v2016 = vmul.f32 %v1948, %v1977
    %v2017 = vmul.f32 %v1949, %v1977
    %v2018 = vmul.f32 %v1950, %v1977
    %v2019 = vmul.f32 %v1951, %v1977
    %v2020 = vmul.f32 %v1952, %v1977
    %v2021 = vmul.f32 %v1953, %v1977
    %v2022 = vmul.f32 %v1954, %v1977
    %v2023 = vmul.f32 %v1955, %v1977
    %v2024 = vmul.f32 %v1956, %v1977
    %v2025 = vmul.f32 %v1957, %v1977
    %v2026 = vmul.f32 %v1958, %v1977
    %v2027 = vmul.f32 %v1959, %v1977
    %v2028 = vmul.f32 %v1960, %v1977
    %v2029 = vmul.f32 %v1961, %v1977
    %v2030 = vmul.f32 %v1962, %v1977
    %v2031 = vmul.f32 %v1963, %v1977
    %v2032 = vmul.f32 %v1964, %v1977
    %v2033 = vmul.f32 %v1965, %v1977
    %v2034 = vmul.f32 %v1966, %v1977
    %v2035 = vmul.f32 %v1967, %v1977
    %v2036 = vmul.f32 %v1968, %v1977
    %v2037 = vmul.f32 %v1969, %v1977
    %v2038 = vmul.f32 %v1970, %v1977
    %v2039 = vmul.f32 %v1971, %v1977
    %v2040 = vmul.f32 %v1972, %v1977
    %v2041 = vmul.f32 %v1973, %v1977
    %v2042 = vadd.f32 %v1845, %v1978
    %v2043 = vadd.f32 %v1846, %v1979
    %v2044 = vadd.f32 %v1847, %v1980
    %v2045 = vadd.f32 %v1848, %v1981
    %v2046 = vadd.f32 %v1849, %v1982
    %v2047 = vadd.f32 %v1850, %v1983
    %v2048 = vadd.f32 %v1851, %v1984
    %v2049 = vadd.f32 %v1852, %v1985
    %v2050 = vadd.f32 %v1853, %v1986
    %v2051 = vadd.f32 %v1854, %v1987
    %v2052 = vadd.f32 %v1855, %v1988
    %v2053 = vadd.f32 %v1856, %v1989
    %v2054 = vadd.f32 %v1857, %v1990
    %v2055 = vadd.f32 %v1858, %v1991
    %v2056 = vadd.f32 %v1859, %v1992
    %v2057 = vadd.f32 %v1860, %v1993
    %v2058 = vadd.f32 %v1861, %v1994
    %v2059 = vadd.f32 %v1862, %v1995
    %v2060 = vadd.f32 %v1863, %v1996
    %v2061 = vadd.f32 %v1864, %v1997
    %v2062 = vadd.f32 %v1865, %v1998
    %v2063 = vadd.f32 %v1866, %v1999
    %v2064 = vadd.f32 %v1867, %v2000
    %v2065 = vadd.f32 %v1868, %v2001
    %v2066 = vadd.f32 %v1869, %v2002
    %v2067 = vadd.f32 %v1870, %v2003
    %v2068 = vadd.f32 %v1871, %v2004
    %v2069 = vadd.f32 %v1872, %v2005
    %v2070 = vadd.f32 %v1873, %v2006
    %v2071 = vadd.f32 %v1874, %v2007
    %v2072 = vadd.f32 %v1875, %v2008
    %v2073 = vadd.f32 %v1876, %v2009
    %v2074 = vadd.f32 %v1877, %v2010
    %v2075 = vadd.f32 %v1878, %v2011
    %v2076 = vadd.f32 %v1879, %v2012
    %v2077 = vadd.f32 %v1880, %v2013
    %v2078 = vadd.f32 %v1881, %v2014
    %v2079 = vadd.f32 %v1882, %v2015
    %v2080 = vadd.f32 %v1883, %v2016
    %v2081 = vadd.f32 %v1884, %v2017
    %v2082 = vadd.f32 %v1885, %v2018
    %v2083 = vadd.f32 %v1886, %v2019
    %v2084 = vadd.f32 %v1887, %v2020
    %v2085 = vadd.f32 %v1888, %v2021
    %v2086 = vadd.f32 %v1889, %v2022
    %v2087 = vadd.f32 %v1890, %v2023
    %v2088 = vadd.f32 %v1891, %v2024
    %v2089 = vadd.f32 %v1892, %v2025
    %v2090 = vadd.f32 %v1893, %v2026
    %v2091 = vadd.f32 %v1894, %v2027
    %v2092 = vadd.f32 %v1895, %v2028
    %v2093 = vadd.f32 %v1896, %v2029
    %v2094 = vadd.f32 %v1897, %v2030
    %v2095 = vadd.f32 %v1898, %v2031
    %v2096 = vadd.f32 %v1899, %v2032
    %v2097 = vadd.f32 %v1900, %v2033
    %v2098 = vadd.f32 %v1901, %v2034
    %v2099 = vadd.f32 %v1902, %v2035
    %v2100 = vadd.f32 %v1903, %v2036
    %v2101 = vadd.f32 %v1904, %v2037
    %v2102 = vadd.f32 %v1905, %v2038
    %v2103 = vadd.f32 %v1906, %v2039
    %v2104 = vadd.f32 %v1907, %v2040
    %v2105 = vadd.f32 %v1908, %v2041
    %v2106 = vld [vmem:[#allocation9 + $0x4] sm:$0x1]
    %v2107 = vld [vmem:[%s932 + $0x1] sm:$0xff]
    %v2108 = vld [vmem:[%s932 + $0x9] sm:$0xff]
    %v2109 = vld [vmem:[%s932 + $0x19] sm:$0xff]
    %v2110 = vld [vmem:[%s932 + $0x21] sm:$0xff]
    %v2111 = vld [vmem:[%s932 + $0x31] sm:$0xff]
    %v2112 = vld [vmem:[%s932 + $0x39] sm:$0xff]
    %v2113 = vld [vmem:[%s932 + $0x49] sm:$0xff]
    %v2114 = vld [vmem:[%s932 + $0x51] sm:$0xff]
    %v2115 = vld [vmem:[%s932 + $0x61] sm:$0xff]
    %v2116 = vld [vmem:[%s932 + $0x69] sm:$0xff]
    %v2117 = vld [vmem:[%s932 + $0x79] sm:$0xff]
    %v2118 = vld [vmem:[%s932 + $0x81] sm:$0xff]
    %v2119 = vld [vmem:[%s932 + $0x91] sm:$0xff]
    %v2120 = vld [vmem:[%s932 + $0x99] sm:$0xff]
    %v2121 = vld [vmem:[%s932 + $0xa9] sm:$0xff]
    %v2122 = vld [vmem:[%s932 + $0xb1] sm:$0xff]
    %v2123 = vld [vmem:[%s932 + $0xc1] sm:$0xff]
    %v2124 = vld [vmem:[%s932 + $0xc9] sm:$0xff]
    %v2125 = vld [vmem:[%s932 + $0xd9] sm:$0xff]
    %v2126 = vld [vmem:[%s932 + $0xe1] sm:$0xff]
    %v2127 = vld [vmem:[%s932 + $0xf1] sm:$0xff]
    %v2128 = vld [vmem:[%s932 + $0xf9] sm:$0xff]
    %v2129 = vld [vmem:[%s932 + $0x109] sm:$0xff]
    %v2130 = vld [vmem:[%s932 + $0x111] sm:$0xff]
    %v2131 = vld [vmem:[%s932 + $0x121] sm:$0xff]
    %v2132 = vld [vmem:[%s932 + $0x129] sm:$0xff]
    %v2133 = vld [vmem:[%s932 + $0x139] sm:$0xff]
    %v2134 = vld [vmem:[%s932 + $0x141] sm:$0xff]
    %v2135 = vld [vmem:[%s932 + $0x151] sm:$0xff]
    %v2136 = vld [vmem:[%s932 + $0x159] sm:$0xff]
    %v2137 = vld [vmem:[%s932 + $0x169] sm:$0xff]
    %v2138 = vld [vmem:[%s932 + $0x171] sm:$0xff]
    %v2139 = vld [vmem:[%s932 + $0x1b1] sm:$0xff]
    %v2140 = vld [vmem:[%s932 + $0x1b9] sm:$0xff]
    %v2141 = vld [vmem:[%s932 + $0x1c9] sm:$0xff]
    %v2142 = vld [vmem:[%s932 + $0x1d1] sm:$0xff]
    %v2143 = vld [vmem:[%s932 + $0x1e1] sm:$0xff]
    %v2144 = vld [vmem:[%s932 + $0x1e9] sm:$0xff]
    %v2145 = vld [vmem:[%s932 + $0x1f9] sm:$0xff]
    %v2146 = vld [vmem:[%s932 + $0x201] sm:$0xff]
    %v2147 = vld [vmem:[%s932 + $0x211] sm:$0xff]
    %v2148 = vld [vmem:[%s932 + $0x219] sm:$0xff]
    %v2149 = vld [vmem:[%s932 + $0x229] sm:$0xff]
    %v2150 = vld [vmem:[%s932 + $0x231] sm:$0xff]
    %v2151 = vld [vmem:[%s932 + $0x241] sm:$0xff]
    %v2152 = vld [vmem:[%s932 + $0x249] sm:$0xff]
    %v2153 = vld [vmem:[%s932 + $0x259] sm:$0xff]
    %v2154 = vld [vmem:[%s932 + $0x261] sm:$0xff]
    %v2155 = vld [vmem:[%s932 + $0x271] sm:$0xff]
    %v2156 = vld [vmem:[%s932 + $0x279] sm:$0xff]
    %v2157 = vld [vmem:[%s932 + $0x289] sm:$0xff]
    %v2158 = vld [vmem:[%s932 + $0x291] sm:$0xff]
    %v2159 = vld [vmem:[%s932 + $0x2a1] sm:$0xff]
    %v2160 = vld [vmem:[%s932 + $0x2a9] sm:$0xff]
    %v2161 = vld [vmem:[%s932 + $0x2b9] sm:$0xff]
    %v2162 = vld [vmem:[%s932 + $0x2c1] sm:$0xff]
    %v2163 = vld [vmem:[%s932 + $0x2d1] sm:$0xff]
    %v2164 = vld [vmem:[%s932 + $0x2d9] sm:$0xff]
    %v2165 = vld [vmem:[%s932 + $0x2e9] sm:$0xff]
    %v2166 = vld [vmem:[%s932 + $0x2f1] sm:$0xff]
    %v2167 = vld [vmem:[%s932 + $0x301] sm:$0xff]
    %v2168 = vld [vmem:[%s932 + $0x309] sm:$0xff]
    %v2169 = vld [vmem:[%s932 + $0x319] sm:$0xff]
    %v2170 = vld [vmem:[%s932 + $0x321] sm:$0xff]
    %v2171 = vlaneseq
    %v2172 = vshrl.u32 %v2171, 7
    %v2173 = vsub.s32 0, %v2172
    %v2174 = vrot.slane %v2106, %v2173
    %v2175 = vmul.f32 %v2107, %v2174
    %v2176 = vmul.f32 %v2108, %v2174
    %v2177 = vmul.f32 %v2109, %v2174
    %v2178 = vmul.f32 %v2110, %v2174
    %v2179 = vmul.f32 %v2111, %v2174
    %v2180 = vmul.f32 %v2112, %v2174
    %v2181 = vmul.f32 %v2113, %v2174
    %v2182 = vmul.f32 %v2114, %v2174
    %v2183 = vmul.f32 %v2115, %v2174
    %v2184 = vmul.f32 %v2116, %v2174
    %v2185 = vmul.f32 %v2117, %v2174
    %v2186 = vmul.f32 %v2118, %v2174
    %v2187 = vmul.f32 %v2119, %v2174
    %v2188 = vmul.f32 %v2120, %v2174
    %v2189 = vmul.f32 %v2121, %v2174
    %v2190 = vmul.f32 %v2122, %v2174
    %v2191 = vmul.f32 %v2123, %v2174
    %v2192 = vmul.f32 %v2124, %v2174
    %v2193 = vmul.f32 %v2125, %v2174
    %v2194 = vmul.f32 %v2126, %v2174
    %v2195 = vmul.f32 %v2127, %v2174
    %v2196 = vmul.f32 %v2128, %v2174
    %v2197 = vmul.f32 %v2129, %v2174
    %v2198 = vmul.f32 %v2130, %v2174
    %v2199 = vmul.f32 %v2131, %v2174
    %v2200 = vmul.f32 %v2132, %v2174
    %v2201 = vmul.f32 %v2133, %v2174
    %v2202 = vmul.f32 %v2134, %v2174
    %v2203 = vmul.f32 %v2135, %v2174
    %v2204 = vmul.f32 %v2136, %v2174
    %v2205 = vmul.f32 %v2137, %v2174
    %v2206 = vmul.f32 %v2138, %v2174
    %v2207 = vmul.f32 %v2139, %v2174
    %v2208 = vmul.f32 %v2140, %v2174
    %v2209 = vmul.f32 %v2141, %v2174
    %v2210 = vmul.f32 %v2142, %v2174
    %v2211 = vmul.f32 %v2143, %v2174
    %v2212 = vmul.f32 %v2144, %v2174
    %v2213 = vmul.f32 %v2145, %v2174
    %v2214 = vmul.f32 %v2146, %v2174
    %v2215 = vmul.f32 %v2147, %v2174
    %v2216 = vmul.f32 %v2148, %v2174
    %v2217 = vmul.f32 %v2149, %v2174
    %v2218 = vmul.f32 %v2150, %v2174
    %v2219 = vmul.f32 %v2151, %v2174
    %v2220 = vmul.f32 %v2152, %v2174
    %v2221 = vmul.f32 %v2153, %v2174
    %v2222 = vmul.f32 %v2154, %v2174
    %v2223 = vmul.f32 %v2155, %v2174
    %v2224 = vmul.f32 %v2156, %v2174
    %v2225 = vmul.f32 %v2157, %v2174
    %v2226 = vmul.f32 %v2158, %v2174
    %v2227 = vmul.f32 %v2159, %v2174
    %v2228 = vmul.f32 %v2160, %v2174
    %v2229 = vmul.f32 %v2161, %v2174
    %v2230 = vmul.f32 %v2162, %v2174
    %v2231 = vmul.f32 %v2163, %v2174
    %v2232 = vmul.f32 %v2164, %v2174
    %v2233 = vmul.f32 %v2165, %v2174
    %v2234 = vmul.f32 %v2166, %v2174
    %v2235 = vmul.f32 %v2167, %v2174
    %v2236 = vmul.f32 %v2168, %v2174
    %v2237 = vmul.f32 %v2169, %v2174
    %v2238 = vmul.f32 %v2170, %v2174
    %v2239 = vadd.f32 %v2042, %v2175
    %v2240 = vadd.f32 %v2043, %v2176
    %v2241 = vadd.f32 %v2044, %v2177
    %v2242 = vadd.f32 %v2045, %v2178
    %v2243 = vadd.f32 %v2046, %v2179
    %v2244 = vadd.f32 %v2047, %v2180
    %v2245 = vadd.f32 %v2048, %v2181
    %v2246 = vadd.f32 %v2049, %v2182
    %v2247 = vadd.f32 %v2050, %v2183
    %v2248 = vadd.f32 %v2051, %v2184
    %v2249 = vadd.f32 %v2052, %v2185
    %v2250 = vadd.f32 %v2053, %v2186
    %v2251 = vadd.f32 %v2054, %v2187
    %v2252 = vadd.f32 %v2055, %v2188
    %v2253 = vadd.f32 %v2056, %v2189
    %v2254 = vadd.f32 %v2057, %v2190
    %v2255 = vadd.f32 %v2058, %v2191
    %v2256 = vadd.f32 %v2059, %v2192
    %v2257 = vadd.f32 %v2060, %v2193
    %v2258 = vadd.f32 %v2061, %v2194
    %v2259 = vadd.f32 %v2062, %v2195
    %v2260 = vadd.f32 %v2063, %v2196
    %v2261 = vadd.f32 %v2064, %v2197
    %v2262 = vadd.f32 %v2065, %v2198
    %v2263 = vadd.f32 %v2066, %v2199
    %v2264 = vadd.f32 %v2067, %v2200
    %v2265 = vadd.f32 %v2068, %v2201
    %v2266 = vadd.f32 %v2069, %v2202
    %v2267 = vadd.f32 %v2070, %v2203
    %v2268 = vadd.f32 %v2071, %v2204
    %v2269 = vadd.f32 %v2072, %v2205
    %v2270 = vadd.f32 %v2073, %v2206
    %v2271 = vadd.f32 %v2074, %v2207
    %v2272 = vadd.f32 %v2075, %v2208
    %v2273 = vadd.f32 %v2076, %v2209
    %v2274 = vadd.f32 %v2077, %v2210
    %v2275 = vadd.f32 %v2078, %v2211
    %v2276 = vadd.f32 %v2079, %v2212
    %v2277 = vadd.f32 %v2080, %v2213
    %v2278 = vadd.f32 %v2081, %v2214
    %v2279 = vadd.f32 %v2082, %v2215
    %v2280 = vadd.f32 %v2083, %v2216
    %v2281 = vadd.f32 %v2084, %v2217
    %v2282 = vadd.f32 %v2085, %v2218
    %v2283 = vadd.f32 %v2086, %v2219
    %v2284 = vadd.f32 %v2087, %v2220
    %v2285 = vadd.f32 %v2088, %v2221
    %v2286 = vadd.f32 %v2089, %v2222
    %v2287 = vadd.f32 %v2090, %v2223
    %v2288 = vadd.f32 %v2091, %v2224
    %v2289 = vadd.f32 %v2092, %v2225
    %v2290 = vadd.f32 %v2093, %v2226
    %v2291 = vadd.f32 %v2094, %v2227
    %v2292 = vadd.f32 %v2095, %v2228
    %v2293 = vadd.f32 %v2096, %v2229
    %v2294 = vadd.f32 %v2097, %v2230
    %v2295 = vadd.f32 %v2098, %v2231
    %v2296 = vadd.f32 %v2099, %v2232
    %v2297 = vadd.f32 %v2100, %v2233
    %v2298 = vadd.f32 %v2101, %v2234
    %v2299 = vadd.f32 %v2102, %v2235
    %v2300 = vadd.f32 %v2103, %v2236
    %v2301 = vadd.f32 %v2104, %v2237
    %v2302 = vadd.f32 %v2105, %v2238
    %v2303 = vld [vmem:[#allocation9 + $0x5] sm:$0x1]
    %v2304 = vld [vmem:[%s932 + $0x2] sm:$0xff]
    %v2305 = vld [vmem:[%s932 + $0xa] sm:$0xff]
    %v2306 = vld [vmem:[%s932 + $0x1a] sm:$0xff]
    %v2307 = vld [vmem:[%s932 + $0x22] sm:$0xff]
    %v2308 = vld [vmem:[%s932 + $0x32] sm:$0xff]
    %v2309 = vld [vmem:[%s932 + $0x3a] sm:$0xff]
    %v2310 = vld [vmem:[%s932 + $0x4a] sm:$0xff]
    %v2311 = vld [vmem:[%s932 + $0x52] sm:$0xff]
    %v2312 = vld [vmem:[%s932 + $0x62] sm:$0xff]
    %v2313 = vld [vmem:[%s932 + $0x6a] sm:$0xff]
    %v2314 = vld [vmem:[%s932 + $0x7a] sm:$0xff]
    %v2315 = vld [vmem:[%s932 + $0x82] sm:$0xff]
    %v2316 = vld [vmem:[%s932 + $0x92] sm:$0xff]
    %v2317 = vld [vmem:[%s932 + $0x9a] sm:$0xff]
    %v2318 = vld [vmem:[%s932 + $0xaa] sm:$0xff]
    %v2319 = vld [vmem:[%s932 + $0xb2] sm:$0xff]
    %v2320 = vld [vmem:[%s932 + $0xc2] sm:$0xff]
    %v2321 = vld [vmem:[%s932 + $0xca] sm:$0xff]
    %v2322 = vld [vmem:[%s932 + $0xda] sm:$0xff]
    %v2323 = vld [vmem:[%s932 + $0xe2] sm:$0xff]
    %v2324 = vld [vmem:[%s932 + $0xf2] sm:$0xff]
    %v2325 = vld [vmem:[%s932 + $0xfa] sm:$0xff]
    %v2326 = vld [vmem:[%s932 + $0x10a] sm:$0xff]
    %v2327 = vld [vmem:[%s932 + $0x112] sm:$0xff]
    %v2328 = vld [vmem:[%s932 + $0x122] sm:$0xff]
    %v2329 = vld [vmem:[%s932 + $0x12a] sm:$0xff]
    %v2330 = vld [vmem:[%s932 + $0x13a] sm:$0xff]
    %v2331 = vld [vmem:[%s932 + $0x142] sm:$0xff]
    %v2332 = vld [vmem:[%s932 + $0x152] sm:$0xff]
    %v2333 = vld [vmem:[%s932 + $0x15a] sm:$0xff]
    %v2334 = vld [vmem:[%s932 + $0x16a] sm:$0xff]
    %v2335 = vld [vmem:[%s932 + $0x172] sm:$0xff]
    %v2336 = vld [vmem:[%s932 + $0x1b2] sm:$0xff]
    %v2337 = vld [vmem:[%s932 + $0x1ba] sm:$0xff]
    %v2338 = vld [vmem:[%s932 + $0x1ca] sm:$0xff]
    %v2339 = vld [vmem:[%s932 + $0x1d2] sm:$0xff]
    %v2340 = vld [vmem:[%s932 + $0x1e2] sm:$0xff]
    %v2341 = vld [vmem:[%s932 + $0x1ea] sm:$0xff]
    %v2342 = vld [vmem:[%s932 + $0x1fa] sm:$0xff]
    %v2343 = vld [vmem:[%s932 + $0x202] sm:$0xff]
    %v2344 = vld [vmem:[%s932 + $0x212] sm:$0xff]
    %v2345 = vld [vmem:[%s932 + $0x21a] sm:$0xff]
    %v2346 = vld [vmem:[%s932 + $0x22a] sm:$0xff]
    %v2347 = vld [vmem:[%s932 + $0x232] sm:$0xff]
    %v2348 = vld [vmem:[%s932 + $0x242] sm:$0xff]
    %v2349 = vld [vmem:[%s932 + $0x24a] sm:$0xff]
    %v2350 = vld [vmem:[%s932 + $0x25a] sm:$0xff]
    %v2351 = vld [vmem:[%s932 + $0x262] sm:$0xff]
    %v2352 = vld [vmem:[%s932 + $0x272] sm:$0xff]
    %v2353 = vld [vmem:[%s932 + $0x27a] sm:$0xff]
    %v2354 = vld [vmem:[%s932 + $0x28a] sm:$0xff]
    %v2355 = vld [vmem:[%s932 + $0x292] sm:$0xff]
    %v2356 = vld [vmem:[%s932 + $0x2a2] sm:$0xff]
    %v2357 = vld [vmem:[%s932 + $0x2aa] sm:$0xff]
    %v2358 = vld [vmem:[%s932 + $0x2ba] sm:$0xff]
    %v2359 = vld [vmem:[%s932 + $0x2c2] sm:$0xff]
    %v2360 = vld [vmem:[%s932 + $0x2d2] sm:$0xff]
    %v2361 = vld [vmem:[%s932 + $0x2da] sm:$0xff]
    %v2362 = vld [vmem:[%s932 + $0x2ea] sm:$0xff]
    %v2363 = vld [vmem:[%s932 + $0x2f2] sm:$0xff]
    %v2364 = vld [vmem:[%s932 + $0x302] sm:$0xff]
    %v2365 = vld [vmem:[%s932 + $0x30a] sm:$0xff]
    %v2366 = vld [vmem:[%s932 + $0x31a] sm:$0xff]
    %v2367 = vld [vmem:[%s932 + $0x322] sm:$0xff]
    %v2368 = vlaneseq
    %v2369 = vshrl.u32 %v2368, 7
    %v2370 = vsub.s32 0, %v2369
    %v2371 = vrot.slane %v2303, %v2370
    %v2372 = vmul.f32 %v2304, %v2371
    %v2373 = vmul.f32 %v2305, %v2371
    %v2374 = vmul.f32 %v2306, %v2371
    %v2375 = vmul.f32 %v2307, %v2371
    %v2376 = vmul.f32 %v2308, %v2371
    %v2377 = vmul.f32 %v2309, %v2371
    %v2378 = vmul.f32 %v2310, %v2371
    %v2379 = vmul.f32 %v2311, %v2371
    %v2380 = vmul.f32 %v2312, %v2371
    %v2381 = vmul.f32 %v2313, %v2371
    %v2382 = vmul.f32 %v2314, %v2371
    %v2383 = vmul.f32 %v2315, %v2371
    %v2384 = vmul.f32 %v2316, %v2371
    %v2385 = vmul.f32 %v2317, %v2371
    %v2386 = vmul.f32 %v2318, %v2371
    %v2387 = vmul.f32 %v2319, %v2371
    %v2388 = vmul.f32 %v2320, %v2371
    %v2389 = vmul.f32 %v2321, %v2371
    %v2390 = vmul.f32 %v2322, %v2371
    %v2391 = vmul.f32 %v2323, %v2371
    %v2392 = vmul.f32 %v2324, %v2371
    %v2393 = vmul.f32 %v2325, %v2371
    %v2394 = vmul.f32 %v2326, %v2371
    %v2395 = vmul.f32 %v2327, %v2371
    %v2396 = vmul.f32 %v2328, %v2371
    %v2397 = vmul.f32 %v2329, %v2371
    %v2398 = vmul.f32 %v2330, %v2371
    %v2399 = vmul.f32 %v2331, %v2371
    %v2400 = vmul.f32 %v2332, %v2371
    %v2401 = vmul.f32 %v2333, %v2371
    %v2402 = vmul.f32 %v2334, %v2371
    %v2403 = vmul.f32 %v2335, %v2371
    %v2404 = vmul.f32 %v2336, %v2371
    %v2405 = vmul.f32 %v2337, %v2371
    %v2406 = vmul.f32 %v2338, %v2371
    %v2407 = vmul.f32 %v2339, %v2371
    %v2408 = vmul.f32 %v2340, %v2371
    %v2409 = vmul.f32 %v2341, %v2371
    %v2410 = vmul.f32 %v2342, %v2371
    %v2411 = vmul.f32 %v2343, %v2371
    %v2412 = vmul.f32 %v2344, %v2371
    %v2413 = vmul.f32 %v2345, %v2371
    %v2414 = vmul.f32 %v2346, %v2371
    %v2415 = vmul.f32 %v2347, %v2371
    %v2416 = vmul.f32 %v2348, %v2371
    %v2417 = vmul.f32 %v2349, %v2371
    %v2418 = vmul.f32 %v2350, %v2371
    %v2419 = vmul.f32 %v2351, %v2371
    %v2420 = vmul.f32 %v2352, %v2371
    %v2421 = vmul.f32 %v2353, %v2371
    %v2422 = vmul.f32 %v2354, %v2371
    %v2423 = vmul.f32 %v2355, %v2371
    %v2424 = vmul.f32 %v2356, %v2371
    %v2425 = vmul.f32 %v2357, %v2371
    %v2426 = vmul.f32 %v2358, %v2371
    %v2427 = vmul.f32 %v2359, %v2371
    %v2428 = vmul.f32 %v2360, %v2371
    %v2429 = vmul.f32 %v2361, %v2371
    %v2430 = vmul.f32 %v2362, %v2371
    %v2431 = vmul.f32 %v2363, %v2371
    %v2432 = vmul.f32 %v2364, %v2371
    %v2433 = vmul.f32 %v2365, %v2371
    %v2434 = vmul.f32 %v2366, %v2371
    %v2435 = vmul.f32 %v2367, %v2371
    %v2436 = vadd.f32 %v2239, %v2372
    %v2437 = vadd.f32 %v2240, %v2373
    %v2438 = vadd.f32 %v2241, %v2374
    %v2439 = vadd.f32 %v2242, %v2375
    %v2440 = vadd.f32 %v2243, %v2376
    %v2441 = vadd.f32 %v2244, %v2377
    %v2442 = vadd.f32 %v2245, %v2378
    %v2443 = vadd.f32 %v2246, %v2379
    %v2444 = vadd.f32 %v2247, %v2380
    %v2445 = vadd.f32 %v2248, %v2381
    %v2446 = vadd.f32 %v2249, %v2382
    %v2447 = vadd.f32 %v2250, %v2383
    %v2448 = vadd.f32 %v2251, %v2384
    %v2449 = vadd.f32 %v2252, %v2385
    %v2450 = vadd.f32 %v2253, %v2386
    %v2451 = vadd.f32 %v2254, %v2387
    %v2452 = vadd.f32 %v2255, %v2388
    %v2453 = vadd.f32 %v2256, %v2389
    %v2454 = vadd.f32 %v2257, %v2390
    %v2455 = vadd.f32 %v2258, %v2391
    %v2456 = vadd.f32 %v2259, %v2392
    %v2457 = vadd.f32 %v2260, %v2393
    %v2458 = vadd.f32 %v2261, %v2394
    %v2459 = vadd.f32 %v2262, %v2395
    %v2460 = vadd.f32 %v2263, %v2396
    %v2461 = vadd.f32 %v2264, %v2397
    %v2462 = vadd.f32 %v2265, %v2398
    %v2463 = vadd.f32 %v2266, %v2399
    %v2464 = vadd.f32 %v2267, %v2400
    %v2465 = vadd.f32 %v2268, %v2401
    %v2466 = vadd.f32 %v2269, %v2402
    %v2467 = vadd.f32 %v2270, %v2403
    %v2468 = vadd.f32 %v2271, %v2404
    %v2469 = vadd.f32 %v2272, %v2405
    %v2470 = vadd.f32 %v2273, %v2406
    %v2471 = vadd.f32 %v2274, %v2407
    %v2472 = vadd.f32 %v2275, %v2408
    %v2473 = vadd.f32 %v2276, %v2409
    %v2474 = vadd.f32 %v2277, %v2410
    %v2475 = vadd.f32 %v2278, %v2411
    %v2476 = vadd.f32 %v2279, %v2412
    %v2477 = vadd.f32 %v2280, %v2413
    %v2478 = vadd.f32 %v2281, %v2414
    %v2479 = vadd.f32 %v2282, %v2415
    %v2480 = vadd.f32 %v2283, %v2416
    %v2481 = vadd.f32 %v2284, %v2417
    %v2482 = vadd.f32 %v2285, %v2418
    %v2483 = vadd.f32 %v2286, %v2419
    %v2484 = vadd.f32 %v2287, %v2420
    %v2485 = vadd.f32 %v2288, %v2421
    %v2486 = vadd.f32 %v2289, %v2422
    %v2487 = vadd.f32 %v2290, %v2423
    %v2488 = vadd.f32 %v2291, %v2424
    %v2489 = vadd.f32 %v2292, %v2425
    %v2490 = vadd.f32 %v2293, %v2426
    %v2491 = vadd.f32 %v2294, %v2427
    %v2492 = vadd.f32 %v2295, %v2428
    %v2493 = vadd.f32 %v2296, %v2429
    %v2494 = vadd.f32 %v2297, %v2430
    %v2495 = vadd.f32 %v2298, %v2431
    %v2496 = vadd.f32 %v2299, %v2432
    %v2497 = vadd.f32 %v2300, %v2433
    %v2498 = vadd.f32 %v2301, %v2434
    %v2499 = vadd.f32 %v2302, %v2435
    %v2500 = vld [vmem:[#allocation9 + $0x6] sm:$0x1]
    %s2501 = scalar_lea.vmem [#allocation2], 48
    %v2502 = vld [vmem:[%s2501] sm:$0xff]
    %v2503 = vld [vmem:[%s2501 + $0x8] sm:$0xff]
    %v2504 = vld [vmem:[%s2501 + $0x18] sm:$0xff]
    %v2505 = vld [vmem:[%s2501 + $0x20] sm:$0xff]
    %v2506 = vld [vmem:[%s2501 + $0x30] sm:$0xff]
    %v2507 = vld [vmem:[%s2501 + $0x38] sm:$0xff]
    %v2508 = vld [vmem:[%s2501 + $0x48] sm:$0xff]
    %v2509 = vld [vmem:[%s2501 + $0x50] sm:$0xff]
    %v2510 = vld [vmem:[%s2501 + $0x60] sm:$0xff]
    %v2511 = vld [vmem:[%s2501 + $0x68] sm:$0xff]
    %v2512 = vld [vmem:[%s2501 + $0x78] sm:$0xff]
    %v2513 = vld [vmem:[%s2501 + $0x80] sm:$0xff]
    %v2514 = vld [vmem:[%s2501 + $0x90] sm:$0xff]
    %v2515 = vld [vmem:[%s2501 + $0x98] sm:$0xff]
    %v2516 = vld [vmem:[%s2501 + $0xa8] sm:$0xff]
    %v2517 = vld [vmem:[%s2501 + $0xb0] sm:$0xff]
    %v2518 = vld [vmem:[%s2501 + $0xc0] sm:$0xff]
    %v2519 = vld [vmem:[%s2501 + $0xc8] sm:$0xff]
    %v2520 = vld [vmem:[%s2501 + $0xd8] sm:$0xff]
    %v2521 = vld [vmem:[%s2501 + $0xe0] sm:$0xff]
    %v2522 = vld [vmem:[%s2501 + $0xf0] sm:$0xff]
    %v2523 = vld [vmem:[%s2501 + $0xf8] sm:$0xff]
    %v2524 = vld [vmem:[%s2501 + $0x108] sm:$0xff]
    %v2525 = vld [vmem:[%s2501 + $0x110] sm:$0xff]
    %v2526 = vld [vmem:[%s2501 + $0x120] sm:$0xff]
    %v2527 = vld [vmem:[%s2501 + $0x128] sm:$0xff]
    %v2528 = vld [vmem:[%s2501 + $0x138] sm:$0xff]
    %v2529 = vld [vmem:[%s2501 + $0x140] sm:$0xff]
    %v2530 = vld [vmem:[%s2501 + $0x150] sm:$0xff]
    %v2531 = vld [vmem:[%s2501 + $0x158] sm:$0xff]
    %v2532 = vld [vmem:[%s2501 + $0x168] sm:$0xff]
    %v2533 = vld [vmem:[%s2501 + $0x170] sm:$0xff]
    %v2534 = vld [vmem:[%s2501 + $0x1b0] sm:$0xff]
    %v2535 = vld [vmem:[%s2501 + $0x1b8] sm:$0xff]
    %v2536 = vld [vmem:[%s2501 + $0x1c8] sm:$0xff]
    %v2537 = vld [vmem:[%s2501 + $0x1d0] sm:$0xff]
    %v2538 = vld [vmem:[%s2501 + $0x1e0] sm:$0xff]
    %v2539 = vld [vmem:[%s2501 + $0x1e8] sm:$0xff]
    %v2540 = vld [vmem:[%s2501 + $0x1f8] sm:$0xff]
    %v2541 = vld [vmem:[%s2501 + $0x200] sm:$0xff]
    %v2542 = vld [vmem:[%s2501 + $0x210] sm:$0xff]
    %v2543 = vld [vmem:[%s2501 + $0x218] sm:$0xff]
    %v2544 = vld [vmem:[%s2501 + $0x228] sm:$0xff]
    %v2545 = vld [vmem:[%s2501 + $0x230] sm:$0xff]
    %v2546 = vld [vmem:[%s2501 + $0x240] sm:$0xff]
    %v2547 = vld [vmem:[%s2501 + $0x248] sm:$0xff]
    %v2548 = vld [vmem:[%s2501 + $0x258] sm:$0xff]
    %v2549 = vld [vmem:[%s2501 + $0x260] sm:$0xff]
    %v2550 = vld [vmem:[%s2501 + $0x270] sm:$0xff]
    %v2551 = vld [vmem:[%s2501 + $0x278] sm:$0xff]
    %v2552 = vld [vmem:[%s2501 + $0x288] sm:$0xff]
    %v2553 = vld [vmem:[%s2501 + $0x290] sm:$0xff]
    %v2554 = vld [vmem:[%s2501 + $0x2a0] sm:$0xff]
    %v2555 = vld [vmem:[%s2501 + $0x2a8] sm:$0xff]
    %v2556 = vld [vmem:[%s2501 + $0x2b8] sm:$0xff]
    %v2557 = vld [vmem:[%s2501 + $0x2c0] sm:$0xff]
    %v2558 = vld [vmem:[%s2501 + $0x2d0] sm:$0xff]
    %v2559 = vld [vmem:[%s2501 + $0x2d8] sm:$0xff]
    %v2560 = vld [vmem:[%s2501 + $0x2e8] sm:$0xff]
    %v2561 = vld [vmem:[%s2501 + $0x2f0] sm:$0xff]
    %v2562 = vld [vmem:[%s2501 + $0x300] sm:$0xff]
    %v2563 = vld [vmem:[%s2501 + $0x308] sm:$0xff]
    %v2564 = vld [vmem:[%s2501 + $0x318] sm:$0xff]
    %v2565 = vld [vmem:[%s2501 + $0x320] sm:$0xff]
    %v2566 = vlaneseq
    %v2567 = vshrl.u32 %v2566, 7
    %v2568 = vsub.s32 0, %v2567
    %v2569 = vrot.slane %v2500, %v2568
    %v2570 = vmul.f32 %v2502, %v2569
    %v2571 = vmul.f32 %v2503, %v2569
    %v2572 = vmul.f32 %v2504, %v2569
    %v2573 = vmul.f32 %v2505, %v2569
    %v2574 = vmul.f32 %v2506, %v2569
    %v2575 = vmul.f32 %v2507, %v2569
    %v2576 = vmul.f32 %v2508, %v2569
    %v2577 = vmul.f32 %v2509, %v2569
    %v2578 = vmul.f32 %v2510, %v2569
    %v2579 = vmul.f32 %v2511, %v2569
    %v2580 = vmul.f32 %v2512, %v2569
    %v2581 = vmul.f32 %v2513, %v2569
    %v2582 = vmul.f32 %v2514, %v2569
    %v2583 = vmul.f32 %v2515, %v2569
    %v2584 = vmul.f32 %v2516, %v2569
    %v2585 = vmul.f32 %v2517, %v2569
    %v2586 = vmul.f32 %v2518, %v2569
    %v2587 = vmul.f32 %v2519, %v2569
    %v2588 = vmul.f32 %v2520, %v2569
    %v2589 = vmul.f32 %v2521, %v2569
    %v2590 = vmul.f32 %v2522, %v2569
    %v2591 = vmul.f32 %v2523, %v2569
    %v2592 = vmul.f32 %v2524, %v2569
    %v2593 = vmul.f32 %v2525, %v2569
    %v2594 = vmul.f32 %v2526, %v2569
    %v2595 = vmul.f32 %v2527, %v2569
    %v2596 = vmul.f32 %v2528, %v2569
    %v2597 = vmul.f32 %v2529, %v2569
    %v2598 = vmul.f32 %v2530, %v2569
    %v2599 = vmul.f32 %v2531, %v2569
    %v2600 = vmul.f32 %v2532, %v2569
    %v2601 = vmul.f32 %v2533, %v2569
    %v2602 = vmul.f32 %v2534, %v2569
    %v2603 = vmul.f32 %v2535, %v2569
    %v2604 = vmul.f32 %v2536, %v2569
    %v2605 = vmul.f32 %v2537, %v2569
    %v2606 = vmul.f32 %v2538, %v2569
    %v2607 = vmul.f32 %v2539, %v2569
    %v2608 = vmul.f32 %v2540, %v2569
    %v2609 = vmul.f32 %v2541, %v2569
    %v2610 = vmul.f32 %v2542, %v2569
    %v2611 = vmul.f32 %v2543, %v2569
    %v2612 = vmul.f32 %v2544, %v2569
    %v2613 = vmul.f32 %v2545, %v2569
    %v2614 = vmul.f32 %v2546, %v2569
    %v2615 = vmul.f32 %v2547, %v2569
    %v2616 = vmul.f32 %v2548, %v2569
    %v2617 = vmul.f32 %v2549, %v2569
    %v2618 = vmul.f32 %v2550, %v2569
    %v2619 = vmul.f32 %v2551, %v2569
    %v2620 = vmul.f32 %v2552, %v2569
    %v2621 = vmul.f32 %v2553, %v2569
    %v2622 = vmul.f32 %v2554, %v2569
    %v2623 = vmul.f32 %v2555, %v2569
    %v2624 = vmul.f32 %v2556, %v2569
    %v2625 = vmul.f32 %v2557, %v2569
    %v2626 = vmul.f32 %v2558, %v2569
    %v2627 = vmul.f32 %v2559, %v2569
    %v2628 = vmul.f32 %v2560, %v2569
    %v2629 = vmul.f32 %v2561, %v2569
    %v2630 = vmul.f32 %v2562, %v2569
    %v2631 = vmul.f32 %v2563, %v2569
    %v2632 = vmul.f32 %v2564, %v2569
    %v2633 = vmul.f32 %v2565, %v2569
    %v2634 = vadd.f32 %v2436, %v2570
    %v2635 = vadd.f32 %v2437, %v2571
    %v2636 = vadd.f32 %v2438, %v2572
    %v2637 = vadd.f32 %v2439, %v2573
    %v2638 = vadd.f32 %v2440, %v2574
    %v2639 = vadd.f32 %v2441, %v2575
    %v2640 = vadd.f32 %v2442, %v2576
    %v2641 = vadd.f32 %v2443, %v2577
    %v2642 = vadd.f32 %v2444, %v2578
    %v2643 = vadd.f32 %v2445, %v2579
    %v2644 = vadd.f32 %v2446, %v2580
    %v2645 = vadd.f32 %v2447, %v2581
    %v2646 = vadd.f32 %v2448, %v2582
    %v2647 = vadd.f32 %v2449, %v2583
    %v2648 = vadd.f32 %v2450, %v2584
    %v2649 = vadd.f32 %v2451, %v2585
    %v2650 = vadd.f32 %v2452, %v2586
    %v2651 = vadd.f32 %v2453, %v2587
    %v2652 = vadd.f32 %v2454, %v2588
    %v2653 = vadd.f32 %v2455, %v2589
    %v2654 = vadd.f32 %v2456, %v2590
    %v2655 = vadd.f32 %v2457, %v2591
    %v2656 = vadd.f32 %v2458, %v2592
    %v2657 = vadd.f32 %v2459, %v2593
    %v2658 = vadd.f32 %v2460, %v2594
    %v2659 = vadd.f32 %v2461, %v2595
    %v2660 = vadd.f32 %v2462, %v2596
    %v2661 = vadd.f32 %v2463, %v2597
    %v2662 = vadd.f32 %v2464, %v2598
    %v2663 = vadd.f32 %v2465, %v2599
    %v2664 = vadd.f32 %v2466, %v2600
    %v2665 = vadd.f32 %v2467, %v2601
    %v2666 = vadd.f32 %v2468, %v2602
    %v2667 = vadd.f32 %v2469, %v2603
    %v2668 = vadd.f32 %v2470, %v2604
    %v2669 = vadd.f32 %v2471, %v2605
    %v2670 = vadd.f32 %v2472, %v2606
    %v2671 = vadd.f32 %v2473, %v2607
    %v2672 = vadd.f32 %v2474, %v2608
    %v2673 = vadd.f32 %v2475, %v2609
    %v2674 = vadd.f32 %v2476, %v2610
    %v2675 = vadd.f32 %v2477, %v2611
    %v2676 = vadd.f32 %v2478, %v2612
    %v2677 = vadd.f32 %v2479, %v2613
    %v2678 = vadd.f32 %v2480, %v2614
    %v2679 = vadd.f32 %v2481, %v2615
    %v2680 = vadd.f32 %v2482, %v2616
    %v2681 = vadd.f32 %v2483, %v2617
    %v2682 = vadd.f32 %v2484, %v2618
    %v2683 = vadd.f32 %v2485, %v2619
    %v2684 = vadd.f32 %v2486, %v2620
    %v2685 = vadd.f32 %v2487, %v2621
    %v2686 = vadd.f32 %v2488, %v2622
    %v2687 = vadd.f32 %v2489, %v2623
    %v2688 = vadd.f32 %v2490, %v2624
    %v2689 = vadd.f32 %v2491, %v2625
    %v2690 = vadd.f32 %v2492, %v2626
    %v2691 = vadd.f32 %v2493, %v2627
    %v2692 = vadd.f32 %v2494, %v2628
    %v2693 = vadd.f32 %v2495, %v2629
    %v2694 = vadd.f32 %v2496, %v2630
    %v2695 = vadd.f32 %v2497, %v2631
    %v2696 = vadd.f32 %v2498, %v2632
    %v2697 = vadd.f32 %v2499, %v2633
    %v2698 = vld [vmem:[#allocation9 + $0x7] sm:$0x1]
    %v2699 = vld [vmem:[%s2501 + $0x1] sm:$0xff]
    %v2700 = vld [vmem:[%s2501 + $0x9] sm:$0xff]
    %v2701 = vld [vmem:[%s2501 + $0x19] sm:$0xff]
    %v2702 = vld [vmem:[%s2501 + $0x21] sm:$0xff]
    %v2703 = vld [vmem:[%s2501 + $0x31] sm:$0xff]
    %v2704 = vld [vmem:[%s2501 + $0x39] sm:$0xff]
    %v2705 = vld [vmem:[%s2501 + $0x49] sm:$0xff]
    %v2706 = vld [vmem:[%s2501 + $0x51] sm:$0xff]
    %v2707 = vld [vmem:[%s2501 + $0x61] sm:$0xff]
    %v2708 = vld [vmem:[%s2501 + $0x69] sm:$0xff]
    %v2709 = vld [vmem:[%s2501 + $0x79] sm:$0xff]
    %v2710 = vld [vmem:[%s2501 + $0x81] sm:$0xff]
    %v2711 = vld [vmem:[%s2501 + $0x91] sm:$0xff]
    %v2712 = vld [vmem:[%s2501 + $0x99] sm:$0xff]
    %v2713 = vld [vmem:[%s2501 + $0xa9] sm:$0xff]
    %v2714 = vld [vmem:[%s2501 + $0xb1] sm:$0xff]
    %v2715 = vld [vmem:[%s2501 + $0xc1] sm:$0xff]
    %v2716 = vld [vmem:[%s2501 + $0xc9] sm:$0xff]
    %v2717 = vld [vmem:[%s2501 + $0xd9] sm:$0xff]
    %v2718 = vld [vmem:[%s2501 + $0xe1] sm:$0xff]
    %v2719 = vld [vmem:[%s2501 + $0xf1] sm:$0xff]
    %v2720 = vld [vmem:[%s2501 + $0xf9] sm:$0xff]
    %v2721 = vld [vmem:[%s2501 + $0x109] sm:$0xff]
    %v2722 = vld [vmem:[%s2501 + $0x111] sm:$0xff]
    %v2723 = vld [vmem:[%s2501 + $0x121] sm:$0xff]
    %v2724 = vld [vmem:[%s2501 + $0x129] sm:$0xff]
    %v2725 = vld [vmem:[%s2501 + $0x139] sm:$0xff]
    %v2726 = vld [vmem:[%s2501 + $0x141] sm:$0xff]
    %v2727 = vld [vmem:[%s2501 + $0x151] sm:$0xff]
    %v2728 = vld [vmem:[%s2501 + $0x159] sm:$0xff]
    %v2729 = vld [vmem:[%s2501 + $0x169] sm:$0xff]
    %v2730 = vld [vmem:[%s2501 + $0x171] sm:$0xff]
    %v2731 = vld [vmem:[%s2501 + $0x1b1] sm:$0xff]
    %v2732 = vld [vmem:[%s2501 + $0x1b9] sm:$0xff]
    %v2733 = vld [vmem:[%s2501 + $0x1c9] sm:$0xff]
    %v2734 = vld [vmem:[%s2501 + $0x1d1] sm:$0xff]
    %v2735 = vld [vmem:[%s2501 + $0x1e1] sm:$0xff]
    %v2736 = vld [vmem:[%s2501 + $0x1e9] sm:$0xff]
    %v2737 = vld [vmem:[%s2501 + $0x1f9] sm:$0xff]
    %v2738 = vld [vmem:[%s2501 + $0x201] sm:$0xff]
    %v2739 = vld [vmem:[%s2501 + $0x211] sm:$0xff]
    %v2740 = vld [vmem:[%s2501 + $0x219] sm:$0xff]
    %v2741 = vld [vmem:[%s2501 + $0x229] sm:$0xff]
    %v2742 = vld [vmem:[%s2501 + $0x231] sm:$0xff]
    %v2743 = vld [vmem:[%s2501 + $0x241] sm:$0xff]
    %v2744 = vld [vmem:[%s2501 + $0x249] sm:$0xff]
    %v2745 = vld [vmem:[%s2501 + $0x259] sm:$0xff]
    %v2746 = vld [vmem:[%s2501 + $0x261] sm:$0xff]
    %v2747 = vld [vmem:[%s2501 + $0x271] sm:$0xff]
    %v2748 = vld [vmem:[%s2501 + $0x279] sm:$0xff]
    %v2749 = vld [vmem:[%s2501 + $0x289] sm:$0xff]
    %v2750 = vld [vmem:[%s2501 + $0x291] sm:$0xff]
    %v2751 = vld [vmem:[%s2501 + $0x2a1] sm:$0xff]
    %v2752 = vld [vmem:[%s2501 + $0x2a9] sm:$0xff]
    %v2753 = vld [vmem:[%s2501 + $0x2b9] sm:$0xff]
    %v2754 = vld [vmem:[%s2501 + $0x2c1] sm:$0xff]
    %v2755 = vld [vmem:[%s2501 + $0x2d1] sm:$0xff]
    %v2756 = vld [vmem:[%s2501 + $0x2d9] sm:$0xff]
    %v2757 = vld [vmem:[%s2501 + $0x2e9] sm:$0xff]
    %v2758 = vld [vmem:[%s2501 + $0x2f1] sm:$0xff]
    %v2759 = vld [vmem:[%s2501 + $0x301] sm:$0xff]
    %v2760 = vld [vmem:[%s2501 + $0x309] sm:$0xff]
    %v2761 = vld [vmem:[%s2501 + $0x319] sm:$0xff]
    %v2762 = vld [vmem:[%s2501 + $0x321] sm:$0xff]
    %v2763 = vlaneseq
    %v2764 = vshrl.u32 %v2763, 7
    %v2765 = vsub.s32 0, %v2764
    %v2766 = vrot.slane %v2698, %v2765
    %v2767 = vmul.f32 %v2699, %v2766
    %v2768 = vmul.f32 %v2700, %v2766
    %v2769 = vmul.f32 %v2701, %v2766
    %v2770 = vmul.f32 %v2702, %v2766
    %v2771 = vmul.f32 %v2703, %v2766
    %v2772 = vmul.f32 %v2704, %v2766
    %v2773 = vmul.f32 %v2705, %v2766
    %v2774 = vmul.f32 %v2706, %v2766
    %v2775 = vmul.f32 %v2707, %v2766
    %v2776 = vmul.f32 %v2708, %v2766
    %v2777 = vmul.f32 %v2709, %v2766
    %v2778 = vmul.f32 %v2710, %v2766
    %v2779 = vmul.f32 %v2711, %v2766
    %v2780 = vmul.f32 %v2712, %v2766
    %v2781 = vmul.f32 %v2713, %v2766
    %v2782 = vmul.f32 %v2714, %v2766
    %v2783 = vmul.f32 %v2715, %v2766
    %v2784 = vmul.f32 %v2716, %v2766
    %v2785 = vmul.f32 %v2717, %v2766
    %v2786 = vmul.f32 %v2718, %v2766
    %v2787 = vmul.f32 %v2719, %v2766
    %v2788 = vmul.f32 %v2720, %v2766
    %v2789 = vmul.f32 %v2721, %v2766
    %v2790 = vmul.f32 %v2722, %v2766
    %v2791 = vmul.f32 %v2723, %v2766
    %v2792 = vmul.f32 %v2724, %v2766
    %v2793 = vmul.f32 %v2725, %v2766
    %v2794 = vmul.f32 %v2726, %v2766
    %v2795 = vmul.f32 %v2727, %v2766
    %v2796 = vmul.f32 %v2728, %v2766
    %v2797 = vmul.f32 %v2729, %v2766
    %v2798 = vmul.f32 %v2730, %v2766
    %v2799 = vmul.f32 %v2731, %v2766
    %v2800 = vmul.f32 %v2732, %v2766
    %v2801 = vmul.f32 %v2733, %v2766
    %v2802 = vmul.f32 %v2734, %v2766
    %v2803 = vmul.f32 %v2735, %v2766
    %v2804 = vmul.f32 %v2736, %v2766
    %v2805 = vmul.f32 %v2737, %v2766
    %v2806 = vmul.f32 %v2738, %v2766
    %v2807 = vmul.f32 %v2739, %v2766
    %v2808 = vmul.f32 %v2740, %v2766
    %v2809 = vmul.f32 %v2741, %v2766
    %v2810 = vmul.f32 %v2742, %v2766
    %v2811 = vmul.f32 %v2743, %v2766
    %v2812 = vmul.f32 %v2744, %v2766
    %v2813 = vmul.f32 %v2745, %v2766
    %v2814 = vmul.f32 %v2746, %v2766
    %v2815 = vmul.f32 %v2747, %v2766
    %v2816 = vmul.f32 %v2748, %v2766
    %v2817 = vmul.f32 %v2749, %v2766
    %v2818 = vmul.f32 %v2750, %v2766
    %v2819 = vmul.f32 %v2751, %v2766
    %v2820 = vmul.f32 %v2752, %v2766
    %v2821 = vmul.f32 %v2753, %v2766
    %v2822 = vmul.f32 %v2754, %v2766
    %v2823 = vmul.f32 %v2755, %v2766
    %v2824 = vmul.f32 %v2756, %v2766
    %v2825 = vmul.f32 %v2757, %v2766
    %v2826 = vmul.f32 %v2758, %v2766
    %v2827 = vmul.f32 %v2759, %v2766
    %v2828 = vmul.f32 %v2760, %v2766
    %v2829 = vmul.f32 %v2761, %v2766
    %v2830 = vmul.f32 %v2762, %v2766
    %v2831 = vadd.f32 %v2634, %v2767
    %v2832 = vadd.f32 %v2635, %v2768
    %v2833 = vadd.f32 %v2636, %v2769
    %v2834 = vadd.f32 %v2637, %v2770
    %v2835 = vadd.f32 %v2638, %v2771
    %v2836 = vadd.f32 %v2639, %v2772
    %v2837 = vadd.f32 %v2640, %v2773
    %v2838 = vadd.f32 %v2641, %v2774
    %v2839 = vadd.f32 %v2642, %v2775
    %v2840 = vadd.f32 %v2643, %v2776
    %v2841 = vadd.f32 %v2644, %v2777
    %v2842 = vadd.f32 %v2645, %v2778
    %v2843 = vadd.f32 %v2646, %v2779
    %v2844 = vadd.f32 %v2647, %v2780
    %v2845 = vadd.f32 %v2648, %v2781
    %v2846 = vadd.f32 %v2649, %v2782
    %v2847 = vadd.f32 %v2650, %v2783
    %v2848 = vadd.f32 %v2651, %v2784
    %v2849 = vadd.f32 %v2652, %v2785
    %v2850 = vadd.f32 %v2653, %v2786
    %v2851 = vadd.f32 %v2654, %v2787
    %v2852 = vadd.f32 %v2655, %v2788
    %v2853 = vadd.f32 %v2656, %v2789
    %v2854 = vadd.f32 %v2657, %v2790
    %v2855 = vadd.f32 %v2658, %v2791
    %v2856 = vadd.f32 %v2659, %v2792
    %v2857 = vadd.f32 %v2660, %v2793
    %v2858 = vadd.f32 %v2661, %v2794
    %v2859 = vadd.f32 %v2662, %v2795
    %v2860 = vadd.f32 %v2663, %v2796
    %v2861 = vadd.f32 %v2664, %v2797
    %v2862 = vadd.f32 %v2665, %v2798
    %v2863 = vadd.f32 %v2666, %v2799
    %v2864 = vadd.f32 %v2667, %v2800
    %v2865 = vadd.f32 %v2668, %v2801
    %v2866 = vadd.f32 %v2669, %v2802
    %v2867 = vadd.f32 %v2670, %v2803
    %v2868 = vadd.f32 %v2671, %v2804
    %v2869 = vadd.f32 %v2672, %v2805
    %v2870 = vadd.f32 %v2673, %v2806
    %v2871 = vadd.f32 %v2674, %v2807
    %v2872 = vadd.f32 %v2675, %v2808
    %v2873 = vadd.f32 %v2676, %v2809
    %v2874 = vadd.f32 %v2677, %v2810
    %v2875 = vadd.f32 %v2678, %v2811
    %v2876 = vadd.f32 %v2679, %v2812
    %v2877 = vadd.f32 %v2680, %v2813
    %v2878 = vadd.f32 %v2681, %v2814
    %v2879 = vadd.f32 %v2682, %v2815
    %v2880 = vadd.f32 %v2683, %v2816
    %v2881 = vadd.f32 %v2684, %v2817
    %v2882 = vadd.f32 %v2685, %v2818
    %v2883 = vadd.f32 %v2686, %v2819
    %v2884 = vadd.f32 %v2687, %v2820
    %v2885 = vadd.f32 %v2688, %v2821
    %v2886 = vadd.f32 %v2689, %v2822
    %v2887 = vadd.f32 %v2690, %v2823
    %v2888 = vadd.f32 %v2691, %v2824
    %v2889 = vadd.f32 %v2692, %v2825
    %v2890 = vadd.f32 %v2693, %v2826
    %v2891 = vadd.f32 %v2694, %v2827
    %v2892 = vadd.f32 %v2695, %v2828
    %v2893 = vadd.f32 %v2696, %v2829
    %v2894 = vadd.f32 %v2697, %v2830
    %v2895 = vld [vmem:[#allocation9 + $0x8] sm:$0x1]
    %v2896 = vld [vmem:[%s2501 + $0x2] sm:$0xff]
    %v2897 = vld [vmem:[%s2501 + $0xa] sm:$0xff]
    %v2898 = vld [vmem:[%s2501 + $0x1a] sm:$0xff]
    %v2899 = vld [vmem:[%s2501 + $0x22] sm:$0xff]
    %v2900 = vld [vmem:[%s2501 + $0x32] sm:$0xff]
    %v2901 = vld [vmem:[%s2501 + $0x3a] sm:$0xff]
    %v2902 = vld [vmem:[%s2501 + $0x4a] sm:$0xff]
    %v2903 = vld [vmem:[%s2501 + $0x52] sm:$0xff]
    %v2904 = vld [vmem:[%s2501 + $0x62] sm:$0xff]
    %v2905 = vld [vmem:[%s2501 + $0x6a] sm:$0xff]
    %v2906 = vld [vmem:[%s2501 + $0x7a] sm:$0xff]
    %v2907 = vld [vmem:[%s2501 + $0x82] sm:$0xff]
    %v2908 = vld [vmem:[%s2501 + $0x92] sm:$0xff]
    %v2909 = vld [vmem:[%s2501 + $0x9a] sm:$0xff]
    %v2910 = vld [vmem:[%s2501 + $0xaa] sm:$0xff]
    %v2911 = vld [vmem:[%s2501 + $0xb2] sm:$0xff]
    %v2912 = vld [vmem:[%s2501 + $0xc2] sm:$0xff]
    %v2913 = vld [vmem:[%s2501 + $0xca] sm:$0xff]
    %v2914 = vld [vmem:[%s2501 + $0xda] sm:$0xff]
    %v2915 = vld [vmem:[%s2501 + $0xe2] sm:$0xff]
    %v2916 = vld [vmem:[%s2501 + $0xf2] sm:$0xff]
    %v2917 = vld [vmem:[%s2501 + $0xfa] sm:$0xff]
    %v2918 = vld [vmem:[%s2501 + $0x10a] sm:$0xff]
    %v2919 = vld [vmem:[%s2501 + $0x112] sm:$0xff]
    %v2920 = vld [vmem:[%s2501 + $0x122] sm:$0xff]
    %v2921 = vld [vmem:[%s2501 + $0x12a] sm:$0xff]
    %v2922 = vld [vmem:[%s2501 + $0x13a] sm:$0xff]
    %v2923 = vld [vmem:[%s2501 + $0x142] sm:$0xff]
    %v2924 = vld [vmem:[%s2501 + $0x152] sm:$0xff]
    %v2925 = vld [vmem:[%s2501 + $0x15a] sm:$0xff]
    %v2926 = vld [vmem:[%s2501 + $0x16a] sm:$0xff]
    %v2927 = vld [vmem:[%s2501 + $0x172] sm:$0xff]
    %v2928 = vld [vmem:[%s2501 + $0x1b2] sm:$0xff]
    %v2929 = vld [vmem:[%s2501 + $0x1ba] sm:$0xff]
    %v2930 = vld [vmem:[%s2501 + $0x1ca] sm:$0xff]
    %v2931 = vld [vmem:[%s2501 + $0x1d2] sm:$0xff]
    %v2932 = vld [vmem:[%s2501 + $0x1e2] sm:$0xff]
    %v2933 = vld [vmem:[%s2501 + $0x1ea] sm:$0xff]
    %v2934 = vld [vmem:[%s2501 + $0x1fa] sm:$0xff]
    %v2935 = vld [vmem:[%s2501 + $0x202] sm:$0xff]
    %v2936 = vld [vmem:[%s2501 + $0x212] sm:$0xff]
    %v2937 = vld [vmem:[%s2501 + $0x21a] sm:$0xff]
    %v2938 = vld [vmem:[%s2501 + $0x22a] sm:$0xff]
    %v2939 = vld [vmem:[%s2501 + $0x232] sm:$0xff]
    %v2940 = vld [vmem:[%s2501 + $0x242] sm:$0xff]
    %v2941 = vld [vmem:[%s2501 + $0x24a] sm:$0xff]
    %v2942 = vld [vmem:[%s2501 + $0x25a] sm:$0xff]
    %v2943 = vld [vmem:[%s2501 + $0x262] sm:$0xff]
    %v2944 = vld [vmem:[%s2501 + $0x272] sm:$0xff]
    %v2945 = vld [vmem:[%s2501 + $0x27a] sm:$0xff]
    %v2946 = vld [vmem:[%s2501 + $0x28a] sm:$0xff]
    %v2947 = vld [vmem:[%s2501 + $0x292] sm:$0xff]
    %v2948 = vld [vmem:[%s2501 + $0x2a2] sm:$0xff]
    %v2949 = vld [vmem:[%s2501 + $0x2aa] sm:$0xff]
    %v2950 = vld [vmem:[%s2501 + $0x2ba] sm:$0xff]
    %v2951 = vld [vmem:[%s2501 + $0x2c2] sm:$0xff]
    %v2952 = vld [vmem:[%s2501 + $0x2d2] sm:$0xff]
    %v2953 = vld [vmem:[%s2501 + $0x2da] sm:$0xff]
    %v2954 = vld [vmem:[%s2501 + $0x2ea] sm:$0xff]
    %v2955 = vld [vmem:[%s2501 + $0x2f2] sm:$0xff]
    %v2956 = vld [vmem:[%s2501 + $0x302] sm:$0xff]
    %v2957 = vld [vmem:[%s2501 + $0x30a] sm:$0xff]
    %v2958 = vld [vmem:[%s2501 + $0x31a] sm:$0xff]
    %v2959 = vld [vmem:[%s2501 + $0x322] sm:$0xff]
    %v2960 = vlaneseq
    %v2961 = vshrl.u32 %v2960, 7
    %v2962 = vsub.s32 0, %v2961
    %v2963 = vrot.slane %v2895, %v2962
    %v2964 = vmul.f32 %v2896, %v2963
    %v2965 = vmul.f32 %v2897, %v2963
    %v2966 = vmul.f32 %v2898, %v2963
    %v2967 = vmul.f32 %v2899, %v2963
    %v2968 = vmul.f32 %v2900, %v2963
    %v2969 = vmul.f32 %v2901, %v2963
    %v2970 = vmul.f32 %v2902, %v2963
    %v2971 = vmul.f32 %v2903, %v2963
    %v2972 = vmul.f32 %v2904, %v2963
    %v2973 = vmul.f32 %v2905, %v2963
    %v2974 = vmul.f32 %v2906, %v2963
    %v2975 = vmul.f32 %v2907, %v2963
    %v2976 = vmul.f32 %v2908, %v2963
    %v2977 = vmul.f32 %v2909, %v2963
    %v2978 = vmul.f32 %v2910, %v2963
    %v2979 = vmul.f32 %v2911, %v2963
    %v2980 = vmul.f32 %v2912, %v2963
    %v2981 = vmul.f32 %v2913, %v2963
    %v2982 = vmul.f32 %v2914, %v2963
    %v2983 = vmul.f32 %v2915, %v2963
    %v2984 = vmul.f32 %v2916, %v2963
    %v2985 = vmul.f32 %v2917, %v2963
    %v2986 = vmul.f32 %v2918, %v2963
    %v2987 = vmul.f32 %v2919, %v2963
    %v2988 = vmul.f32 %v2920, %v2963
    %v2989 = vmul.f32 %v2921, %v2963
    %v2990 = vmul.f32 %v2922, %v2963
    %v2991 = vmul.f32 %v2923, %v2963
    %v2992 = vmul.f32 %v2924, %v2963
    %v2993 = vmul.f32 %v2925, %v2963
    %v2994 = vmul.f32 %v2926, %v2963
    %v2995 = vmul.f32 %v2927, %v2963
    %v2996 = vmul.f32 %v2928, %v2963
    %v2997 = vmul.f32 %v2929, %v2963
    %v2998 = vmul.f32 %v2930, %v2963
    %v2999 = vmul.f32 %v2931, %v2963
    %v3000 = vmul.f32 %v2932, %v2963
    %v3001 = vmul.f32 %v2933, %v2963
    %v3002 = vmul.f32 %v2934, %v2963
    %v3003 = vmul.f32 %v2935, %v2963
    %v3004 = vmul.f32 %v2936, %v2963
    %v3005 = vmul.f32 %v2937, %v2963
    %v3006 = vmul.f32 %v2938, %v2963
    %v3007 = vmul.f32 %v2939, %v2963
    %v3008 = vmul.f32 %v2940, %v2963
    %v3009 = vmul.f32 %v2941, %v2963
    %v3010 = vmul.f32 %v2942, %v2963
    %v3011 = vmul.f32 %v2943, %v2963
    %v3012 = vmul.f32 %v2944, %v2963
    %v3013 = vmul.f32 %v2945, %v2963
    %v3014 = vmul.f32 %v2946, %v2963
    %v3015 = vmul.f32 %v2947, %v2963
    %v3016 = vmul.f32 %v2948, %v2963
    %v3017 = vmul.f32 %v2949, %v2963
    %v3018 = vmul.f32 %v2950, %v2963
    %v3019 = vmul.f32 %v2951, %v2963
    %v3020 = vmul.f32 %v2952, %v2963
    %v3021 = vmul.f32 %v2953, %v2963
    %v3022 = vmul.f32 %v2954, %v2963
    %v3023 = vmul.f32 %v2955, %v2963
    %v3024 = vmul.f32 %v2956, %v2963
    %v3025 = vmul.f32 %v2957, %v2963
    %v3026 = vmul.f32 %v2958, %v2963
    %v3027 = vmul.f32 %v2959, %v2963
    %v3028 = vadd.f32 %v2831, %v2964
    %v3029 = vadd.f32 %v2832, %v2965
    %v3030 = vadd.f32 %v2833, %v2966
    %v3031 = vadd.f32 %v2834, %v2967
    %v3032 = vadd.f32 %v2835, %v2968
    %v3033 = vadd.f32 %v2836, %v2969
    %v3034 = vadd.f32 %v2837, %v2970
    %v3035 = vadd.f32 %v2838, %v2971
    %v3036 = vadd.f32 %v2839, %v2972
    %v3037 = vadd.f32 %v2840, %v2973
    %v3038 = vadd.f32 %v2841, %v2974
    %v3039 = vadd.f32 %v2842, %v2975
    %v3040 = vadd.f32 %v2843, %v2976
    %v3041 = vadd.f32 %v2844, %v2977
    %v3042 = vadd.f32 %v2845, %v2978
    %v3043 = vadd.f32 %v2846, %v2979
    %v3044 = vadd.f32 %v2847, %v2980
    %v3045 = vadd.f32 %v2848, %v2981
    %v3046 = vadd.f32 %v2849, %v2982
    %v3047 = vadd.f32 %v2850, %v2983
    %v3048 = vadd.f32 %v2851, %v2984
    %v3049 = vadd.f32 %v2852, %v2985
    %v3050 = vadd.f32 %v2853, %v2986
    %v3051 = vadd.f32 %v2854, %v2987
    %v3052 = vadd.f32 %v2855, %v2988
    %v3053 = vadd.f32 %v2856, %v2989
    %v3054 = vadd.f32 %v2857, %v2990
    %v3055 = vadd.f32 %v2858, %v2991
    %v3056 = vadd.f32 %v2859, %v2992
    %v3057 = vadd.f32 %v2860, %v2993
    %v3058 = vadd.f32 %v2861, %v2994
    %v3059 = vadd.f32 %v2862, %v2995
    %v3060 = vadd.f32 %v2863, %v2996
    %v3061 = vadd.f32 %v2864, %v2997
    %v3062 = vadd.f32 %v2865, %v2998
    %v3063 = vadd.f32 %v2866, %v2999
    %v3064 = vadd.f32 %v2867, %v3000
    %v3065 = vadd.f32 %v2868, %v3001
    %v3066 = vadd.f32 %v2869, %v3002
    %v3067 = vadd.f32 %v2870, %v3003
    %v3068 = vadd.f32 %v2871, %v3004
    %v3069 = vadd.f32 %v2872, %v3005
    %v3070 = vadd.f32 %v2873, %v3006
    %v3071 = vadd.f32 %v2874, %v3007
    %v3072 = vadd.f32 %v2875, %v3008
    %v3073 = vadd.f32 %v2876, %v3009
    %v3074 = vadd.f32 %v2877, %v3010
    %v3075 = vadd.f32 %v2878, %v3011
    %v3076 = vadd.f32 %v2879, %v3012
    %v3077 = vadd.f32 %v2880, %v3013
    %v3078 = vadd.f32 %v2881, %v3014
    %v3079 = vadd.f32 %v2882, %v3015
    %v3080 = vadd.f32 %v2883, %v3016
    %v3081 = vadd.f32 %v2884, %v3017
    %v3082 = vadd.f32 %v2885, %v3018
    %v3083 = vadd.f32 %v2886, %v3019
    %v3084 = vadd.f32 %v2887, %v3020
    %v3085 = vadd.f32 %v2888, %v3021
    %v3086 = vadd.f32 %v2889, %v3022
    %v3087 = vadd.f32 %v2890, %v3023
    %v3088 = vadd.f32 %v2891, %v3024
    %v3089 = vadd.f32 %v2892, %v3025
    %v3090 = vadd.f32 %v2893, %v3026
    %v3091 = vadd.f32 %v2894, %v3027
    %v3092 = vld [vmem:[#allocation9 + $0xa] sm:$0x1]
    %v3093 = vlaneseq
    %v3094 = vshrl.u32 %v3093, 7
    %v3095 = vsub.s32 0, %v3094
    %v3096 = vrot.slane %v3092, %v3095
    %v3097 = vadd.f32 %v3028, %v3096
    %v3098 = vadd.f32 %v3029, %v3096
    %v3099 = vadd.f32 %v3030, %v3096
    %v3100 = vadd.f32 %v3031, %v3096
    %v3101 = vadd.f32 %v3032, %v3096
    %v3102 = vadd.f32 %v3033, %v3096
    %v3103 = vadd.f32 %v3034, %v3096
    %v3104 = vadd.f32 %v3035, %v3096
    %v3105 = vadd.f32 %v3036, %v3096
    %v3106 = vadd.f32 %v3037, %v3096
    %v3107 = vadd.f32 %v3038, %v3096
    %v3108 = vadd.f32 %v3039, %v3096
    %v3109 = vadd.f32 %v3040, %v3096
    %v3110 = vadd.f32 %v3041, %v3096
    %v3111 = vadd.f32 %v3042, %v3096
    %v3112 = vadd.f32 %v3043, %v3096
    %v3113 = vadd.f32 %v3044, %v3096
    %v3114 = vadd.f32 %v3045, %v3096
    %v3115 = vadd.f32 %v3046, %v3096
    %v3116 = vadd.f32 %v3047, %v3096
    %v3117 = vadd.f32 %v3048, %v3096
    %v3118 = vadd.f32 %v3049, %v3096
    %v3119 = vadd.f32 %v3050, %v3096
    %v3120 = vadd.f32 %v3051, %v3096
    %v3121 = vadd.f32 %v3052, %v3096
    %v3122 = vadd.f32 %v3053, %v3096
    %v3123 = vadd.f32 %v3054, %v3096
    %v3124 = vadd.f32 %v3055, %v3096
    %v3125 = vadd.f32 %v3056, %v3096
    %v3126 = vadd.f32 %v3057, %v3096
    %v3127 = vadd.f32 %v3058, %v3096
    %v3128 = vadd.f32 %v3059, %v3096
    %v3129 = vadd.f32 %v3060, %v3096
    %v3130 = vadd.f32 %v3061, %v3096
    %v3131 = vadd.f32 %v3062, %v3096
    %v3132 = vadd.f32 %v3063, %v3096
    %v3133 = vadd.f32 %v3064, %v3096
    %v3134 = vadd.f32 %v3065, %v3096
    %v3135 = vadd.f32 %v3066, %v3096
    %v3136 = vadd.f32 %v3067, %v3096
    %v3137 = vadd.f32 %v3068, %v3096
    %v3138 = vadd.f32 %v3069, %v3096
    %v3139 = vadd.f32 %v3070, %v3096
    %v3140 = vadd.f32 %v3071, %v3096
    %v3141 = vadd.f32 %v3072, %v3096
    %v3142 = vadd.f32 %v3073, %v3096
    %v3143 = vadd.f32 %v3074, %v3096
    %v3144 = vadd.f32 %v3075, %v3096
    %v3145 = vadd.f32 %v3076, %v3096
    %v3146 = vadd.f32 %v3077, %v3096
    %v3147 = vadd.f32 %v3078, %v3096
    %v3148 = vadd.f32 %v3079, %v3096
    %v3149 = vadd.f32 %v3080, %v3096
    %v3150 = vadd.f32 %v3081, %v3096
    %v3151 = vadd.f32 %v3082, %v3096
    %v3152 = vadd.f32 %v3083, %v3096
    %v3153 = vadd.f32 %v3084, %v3096
    %v3154 = vadd.f32 %v3085, %v3096
    %v3155 = vadd.f32 %v3086, %v3096
    %v3156 = vadd.f32 %v3087, %v3096
    %v3157 = vadd.f32 %v3088, %v3096
    %v3158 = vadd.f32 %v3089, %v3096
    %v3159 = vadd.f32 %v3090, %v3096
    %v3160 = vadd.f32 %v3091, %v3096
    %v3161 = vmax.f32 %v3097, 0.0
    %v3162 = vmax.f32 %v3098, 0.0
    %v3163 = vmax.f32 %v3099, 0.0
    %v3164 = vmax.f32 %v3100, 0.0
    %v3165 = vmax.f32 %v3101, 0.0
    %v3166 = vmax.f32 %v3102, 0.0
    %v3167 = vmax.f32 %v3103, 0.0
    %v3168 = vmax.f32 %v3104, 0.0
    %v3169 = vmax.f32 %v3105, 0.0
    %v3170 = vmax.f32 %v3106, 0.0
    %v3171 = vmax.f32 %v3107, 0.0
    %v3172 = vmax.f32 %v3108, 0.0
    %v3173 = vmax.f32 %v3109, 0.0
    %v3174 = vmax.f32 %v3110, 0.0
    %v3175 = vmax.f32 %v3111, 0.0
    %v3176 = vmax.f32 %v3112, 0.0
    %v3177 = vmax.f32 %v3113, 0.0
    %v3178 = vmax.f32 %v3114, 0.0
    %v3179 = vmax.f32 %v3115, 0.0
    %v3180 = vmax.f32 %v3116, 0.0
    %v3181 = vmax.f32 %v3117, 0.0
    %v3182 = vmax.f32 %v3118, 0.0
    %v3183 = vmax.f32 %v3119, 0.0
    %v3184 = vmax.f32 %v3120, 0.0
    %v3185 = vmax.f32 %v3121, 0.0
    %v3186 = vmax.f32 %v3122, 0.0
    %v3187 = vmax.f32 %v3123, 0.0
    %v3188 = vmax.f32 %v3124, 0.0
    %v3189 = vmax.f32 %v3125, 0.0
    %v3190 = vmax.f32 %v3126, 0.0
    %v3191 = vmax.f32 %v3127, 0.0
    %v3192 = vmax.f32 %v3128, 0.0
    %v3193 = vmax.f32 %v3129, 0.0
    %v3194 = vmax.f32 %v3130, 0.0
    %v3195 = vmax.f32 %v3131, 0.0
    %v3196 = vmax.f32 %v3132, 0.0
    %v3197 = vmax.f32 %v3133, 0.0
    %v3198 = vmax.f32 %v3134, 0.0
    %v3199 = vmax.f32 %v3135, 0.0
    %v3200 = vmax.f32 %v3136, 0.0
    %v3201 = vmax.f32 %v3137, 0.0
    %v3202 = vmax.f32 %v3138, 0.0
    %v3203 = vmax.f32 %v3139, 0.0
    %v3204 = vmax.f32 %v3140, 0.0
    %v3205 = vmax.f32 %v3141, 0.0
    %v3206 = vmax.f32 %v3142, 0.0
    %v3207 = vmax.f32 %v3143, 0.0
    %v3208 = vmax.f32 %v3144, 0.0
    %v3209 = vmax.f32 %v3145, 0.0
    %v3210 = vmax.f32 %v3146, 0.0
    %v3211 = vmax.f32 %v3147, 0.0
    %v3212 = vmax.f32 %v3148, 0.0
    %v3213 = vmax.f32 %v3149, 0.0
    %v3214 = vmax.f32 %v3150, 0.0
    %v3215 = vmax.f32 %v3151, 0.0
    %v3216 = vmax.f32 %v3152, 0.0
    %v3217 = vmax.f32 %v3153, 0.0
    %v3218 = vmax.f32 %v3154, 0.0
    %v3219 = vmax.f32 %v3155, 0.0
    %v3220 = vmax.f32 %v3156, 0.0
    %v3221 = vmax.f32 %v3157, 0.0
    %v3222 = vmax.f32 %v3158, 0.0
    %v3223 = vmax.f32 %v3159, 0.0
    %v3224 = vmax.f32 %v3160, 0.0
    %v3225 = vpack.c.bf16 %v3162, %v3161
    %v3226 = vpack.c.bf16 %v3164, %v3163
    %v3227 = vpack.c.bf16 %v3166, %v3165
    %v3228 = vpack.c.bf16 %v3168, %v3167
    %v3229 = vpack.c.bf16 %v3170, %v3169
    %v3230 = vpack.c.bf16 %v3172, %v3171
    %v3231 = vpack.c.bf16 %v3174, %v3173
    %v3232 = vpack.c.bf16 %v3176, %v3175
    %v3233 = vpack.c.bf16 %v3178, %v3177
    %v3234 = vpack.c.bf16 %v3180, %v3179
    %v3235 = vpack.c.bf16 %v3182, %v3181
    %v3236 = vpack.c.bf16 %v3184, %v3183
    %v3237 = vpack.c.bf16 %v3186, %v3185
    %v3238 = vpack.c.bf16 %v3188, %v3187
    %v3239 = vpack.c.bf16 %v3190, %v3189
    %v3240 = vpack.c.bf16 %v3192, %v3191
    %v3241 = vpack.c.bf16 %v3194, %v3193
    %v3242 = vpack.c.bf16 %v3196, %v3195
    %v3243 = vpack.c.bf16 %v3198, %v3197
    %v3244 = vpack.c.bf16 %v3200, %v3199
    %v3245 = vpack.c.bf16 %v3202, %v3201
    %v3246 = vpack.c.bf16 %v3204, %v3203
    %v3247 = vpack.c.bf16 %v3206, %v3205
    %v3248 = vpack.c.bf16 %v3208, %v3207
    %v3249 = vpack.c.bf16 %v3210, %v3209
    %v3250 = vpack.c.bf16 %v3212, %v3211
    %v3251 = vpack.c.bf16 %v3214, %v3213
    %v3252 = vpack.c.bf16 %v3216, %v3215
    %v3253 = vpack.c.bf16 %v3218, %v3217
    %v3254 = vpack.c.bf16 %v3220, %v3219
    %v3255 = vpack.c.bf16 %v3222, %v3221
    %v3256 = vpack.c.bf16 %v3224, %v3223
    %v3257 = vld [vmem:[#allocation10] sm:$0xf]
    %v3258 = vld [vmem:[#allocation10 + $0x4] sm:$0xf]
    %v3259 = vld [vmem:[#allocation10 + $0x8] sm:$0xf]
    %v3260 = vld [vmem:[#allocation10 + $0xc] sm:$0xf]
    %v3261 = vld [vmem:[#allocation9 + $0xb] sm:$0x1]
    %v3262 = vld [vmem:[#allocation3] sm:$0xff]
    %v3263 = vld [vmem:[#allocation3 + $0x8] sm:$0xff]
    %v3264 = vld [vmem:[#allocation3 + $0x10] sm:$0xff]
    %v3265 = vld [vmem:[#allocation3 + $0x18] sm:$0xff]
    %v3266 = vld [vmem:[#allocation3 + $0x20] sm:$0xff]
    %v3267 = vld [vmem:[#allocation3 + $0x28] sm:$0xff]
    %v3268 = vld [vmem:[#allocation3 + $0x30] sm:$0xff]
    %v3269 = vld [vmem:[#allocation3 + $0x38] sm:$0xff]
    %v3270 = vld [vmem:[#allocation3 + $0x40] sm:$0xff]
    %v3271 = vld [vmem:[#allocation3 + $0x48] sm:$0xff]
    %v3272 = vld [vmem:[#allocation3 + $0x50] sm:$0xff]
    %v3273 = vld [vmem:[#allocation3 + $0x58] sm:$0xff]
    %v3274 = vld [vmem:[#allocation3 + $0x60] sm:$0xff]
    %v3275 = vld [vmem:[#allocation3 + $0x68] sm:$0xff]
    %v3276 = vld [vmem:[#allocation3 + $0x70] sm:$0xff]
    %v3277 = vld [vmem:[#allocation3 + $0x78] sm:$0xff]
    %v3278 = vld [vmem:[#allocation3 + $0x80] sm:$0xff]
    %v3279 = vld [vmem:[#allocation3 + $0x88] sm:$0xff]
    %v3280 = vld [vmem:[#allocation3 + $0x90] sm:$0xff]
    %v3281 = vld [vmem:[#allocation3 + $0x98] sm:$0xff]
    %v3282 = vld [vmem:[#allocation3 + $0xa0] sm:$0xff]
    %v3283 = vld [vmem:[#allocation3 + $0xa8] sm:$0xff]
    %v3284 = vld [vmem:[#allocation3 + $0xb0] sm:$0xff]
    %v3285 = vld [vmem:[#allocation3 + $0xb8] sm:$0xff]
    %v3286 = vld [vmem:[#allocation3 + $0xc0] sm:$0xff]
    %v3287 = vld [vmem:[#allocation3 + $0xc8] sm:$0xff]
    %v3288 = vld [vmem:[#allocation3 + $0xd0] sm:$0xff]
    %v3289 = vld [vmem:[#allocation3 + $0xd8] sm:$0xff]
    %v3290 = vld [vmem:[#allocation3 + $0xe0] sm:$0xff]
    %v3291 = vld [vmem:[#allocation3 + $0xe8] sm:$0xff]
    %v3292 = vld [vmem:[#allocation3 + $0xf0] sm:$0xff]
    %v3293 = vld [vmem:[#allocation3 + $0xf8] sm:$0xff]
    %v3294 = vld [vmem:[#allocation3 + $0x100] sm:$0xff]
    %v3295 = vld [vmem:[#allocation3 + $0x108] sm:$0xff]
    %v3296 = vld [vmem:[#allocation3 + $0x110] sm:$0xff]
    %v3297 = vld [vmem:[#allocation3 + $0x118] sm:$0xff]
    %v3298 = vld [vmem:[#allocation3 + $0x120] sm:$0xff]
    %v3299 = vld [vmem:[#allocation3 + $0x128] sm:$0xff]
    %v3300 = vld [vmem:[#allocation3 + $0x130] sm:$0xff]
    %v3301 = vld [vmem:[#allocation3 + $0x138] sm:$0xff]
    %v3302 = vld [vmem:[#allocation3 + $0x140] sm:$0xff]
    %v3303 = vld [vmem:[#allocation3 + $0x148] sm:$0xff]
    %v3304 = vld [vmem:[#allocation3 + $0x150] sm:$0xff]
    %v3305 = vld [vmem:[#allocation3 + $0x158] sm:$0xff]
    %v3306 = vld [vmem:[#allocation3 + $0x160] sm:$0xff]
    %v3307 = vld [vmem:[#allocation3 + $0x168] sm:$0xff]
    %v3308 = vld [vmem:[#allocation3 + $0x170] sm:$0xff]
    %v3309 = vld [vmem:[#allocation3 + $0x178] sm:$0xff]
    %v3310 = vld [vmem:[#allocation3 + $0x180] sm:$0xff]
    %v3311 = vld [vmem:[#allocation3 + $0x188] sm:$0xff]
    %v3312 = vld [vmem:[#allocation3 + $0x190] sm:$0xff]
    %v3313 = vld [vmem:[#allocation3 + $0x198] sm:$0xff]
    %v3314 = vld [vmem:[#allocation3 + $0x1a0] sm:$0xff]
    %v3315 = vld [vmem:[#allocation3 + $0x1a8] sm:$0xff]
    %v3316 = vld [vmem:[#allocation3 + $0x1b0] sm:$0xff]
    %v3317 = vld [vmem:[#allocation3 + $0x1b8] sm:$0xff]
    %v3318 = vld [vmem:[#allocation3 + $0x1c0] sm:$0xff]
    %v3319 = vld [vmem:[#allocation3 + $0x1c8] sm:$0xff]
    %v3320 = vld [vmem:[#allocation3 + $0x1d0] sm:$0xff]
    %v3321 = vld [vmem:[#allocation3 + $0x1d8] sm:$0xff]
    %v3322 = vld [vmem:[#allocation3 + $0x1e0] sm:$0xff]
    %v3323 = vld [vmem:[#allocation3 + $0x1e8] sm:$0xff]
    %v3324 = vld [vmem:[#allocation3 + $0x1f0] sm:$0xff]
    %v3325 = vld [vmem:[#allocation3 + $0x1f8] sm:$0xff]
    %v3330 = vunpack.c.l.b16 %v3257
    %v3331 = vunpack.c.l.b16 %v3258
    %v3332 = vunpack.c.l.b16 %v3259
    %v3333 = vunpack.c.l.b16 %v3260
    %v3334 = vpack.c.b16 %v3331, %v3330
    %v3335 = vpack.c.b16 %v3333, %v3332
    %v3339 = vsel %vm917, %v3225, 0
    %v3342 = vsel %vm917, %v3226, 0
    %v3345 = vsel %vm917, %v3227, 0
    %v3348 = vsel %vm917, %v3228, 0
    %v3351 = vsel %vm917, %v3229, 0
    %v3354 = vsel %vm917, %v3230, 0
    %v3357 = vsel %vm917, %v3231, 0
    %v3360 = vsel %vm917, %v3232, 0
    %v3363 = vsel %vm917, %v3233, 0
    %v3366 = vsel %vm917, %v3234, 0
    %v3369 = vsel %vm917, %v3235, 0
    %v3372 = vsel %vm917, %v3236, 0
    %v3375 = vsel %vm917, %v3237, 0
    %v3378 = vsel %vm917, %v3238, 0
    %v3381 = vsel %vm917, %v3239, 0
    %v3384 = vsel %vm917, %v3240, 0
    %v3387 = vsel %vm917, %v3241, 0
    %v3390 = vsel %vm917, %v3242, 0
    %v3393 = vsel %vm917, %v3243, 0
    %v3396 = vsel %vm917, %v3244, 0
    %v3399 = vsel %vm917, %v3245, 0
    %v3402 = vsel %vm917, %v3246, 0
    %v3405 = vsel %vm917, %v3247, 0
    %v3408 = vsel %vm917, %v3248, 0
    %v3411 = vsel %vm917, %v3249, 0
    %v3414 = vsel %vm917, %v3250, 0
    %v3417 = vsel %vm917, %v3251, 0
    %v3420 = vsel %vm917, %v3252, 0
    %v3423 = vsel %vm917, %v3253, 0
    %v3426 = vsel %vm917, %v3254, 0
    %v3429 = vsel %vm917, %v3255, 0
    %v3432 = vsel %vm917, %v3256, 0
    %3434 = vmatprep.subr.bf16.mxu0 0
    %3435 = vmatpush1.bf16.msra.mxu0 0
    %3436 = vmatprep.subr.bf16.mxu0 0
    %3437 = vmatpush1.bf16.msra.mxu0 0
    %3438 = vmatprep.subr.bf16.mxu0 0
    %3439 = vmatpush1.bf16.msra.mxu0 0
    %3440 = vmatprep.subr.bf16.mxu0 0
    %3441 = vmatpush1.bf16.msra.mxu0 0
    %3442 = vmatprep.subr.bf16.mxu0 0
    %3443 = vmatpush1.bf16.msra.mxu0 0
    %3444 = vmatprep.subr.bf16.mxu0 0
    %3445 = vmatpush1.bf16.msra.mxu0 0
    %3446 = vmatprep.subr.bf16.mxu0 0
    %3447 = vmatpush1.bf16.msra.mxu0 %v3335
    %3448 = vmatprep.subr.bf16.mxu0 0
    %3449 = vmatpush1.bf16.msra.mxu0 %v3334
    %3450 = vmatprep.subr.bf16.mxu0 0
    %3451 = vmatpush2.bf16.msra.mxu0 0
    %3452 = vmatprep.subr.bf16.mxu0 0
    %3453 = vmatpush2.bf16.msra.mxu0 0
    %3454 = vmatprep.subr.bf16.mxu0 0
    %3455 = vmatpush2.bf16.msra.mxu0 0
    %3456 = vmatprep.subr.bf16.mxu0 0
    %3457 = vmatpush2.bf16.msra.mxu0 0
    %3458 = vmatprep.subr.bf16.mxu0 0
    %3459 = vmatpush2.bf16.msra.mxu0 0
    %3460 = vmatprep.subr.bf16.mxu0 0
    %3461 = vmatpush2.bf16.msra.mxu0 0
    %3462 = vmatprep.subr.bf16.mxu0 0
    %3463 = vmatpush2.bf16.msra.mxu0 0
    %3464 = vmatprep.subr.bf16.mxu0 0
    %3465 = vmatpush2.bf16.msra.mxu0 0
    %3466 = vmatprep.mubr.bf16.mxu0 0
    %3467 = vmatmul.mubr.bf16.gmra.mxu0 %v3339
    %v3468 = vpop.f32.mrf.mxu0
    %v3469 = vadd.f32 %v3262, %v3468
    %v3470 = vpop.f32.mrf.mxu0
    %v3471 = vpop.f32.mrf.mxu0
    %v3472 = vadd.f32 %v3263, %v3471
    %v3473 = vpop.f32.mrf.mxu0
    %3474 = vmatprep.mubr.bf16.mxu0 0
    %3475 = vmatmul.mubr.bf16.gmra.mxu0 %v3342
    %v3476 = vpop.f32.mrf.mxu0
    %v3477 = vadd.f32 %v3264, %v3476
    %v3478 = vpop.f32.mrf.mxu0
    %v3479 = vpop.f32.mrf.mxu0
    %v3480 = vadd.f32 %v3265, %v3479
    %v3481 = vpop.f32.mrf.mxu0
    %3482 = vmatprep.mubr.bf16.mxu0 0
    %3483 = vmatmul.mubr.bf16.gmra.mxu0 %v3345
    %v3484 = vpop.f32.mrf.mxu0
    %v3485 = vadd.f32 %v3266, %v3484
    %v3486 = vpop.f32.mrf.mxu0
    %v3487 = vpop.f32.mrf.mxu0
    %v3488 = vadd.f32 %v3267, %v3487
    %v3489 = vpop.f32.mrf.mxu0
    %3490 = vmatprep.mubr.bf16.mxu0 0
    %3491 = vmatmul.mubr.bf16.gmra.mxu0 %v3348
    %v3492 = vpop.f32.mrf.mxu0
    %v3493 = vadd.f32 %v3268, %v3492
    %v3494 = vpop.f32.mrf.mxu0
    %v3495 = vpop.f32.mrf.mxu0
    %v3496 = vadd.f32 %v3269, %v3495
    %v3497 = vpop.f32.mrf.mxu0
    %3498 = vmatprep.mubr.bf16.mxu0 0
    %3499 = vmatmul.mubr.bf16.gmra.mxu0 %v3351
    %v3500 = vpop.f32.mrf.mxu0
    %v3501 = vadd.f32 %v3270, %v3500
    %v3502 = vpop.f32.mrf.mxu0
    %v3503 = vpop.f32.mrf.mxu0
    %v3504 = vadd.f32 %v3271, %v3503
    %v3505 = vpop.f32.mrf.mxu0
    %3506 = vmatprep.mubr.bf16.mxu0 0
    %3507 = vmatmul.mubr.bf16.gmra.mxu0 %v3354
    %v3508 = vpop.f32.mrf.mxu0
    %v3509 = vadd.f32 %v3272, %v3508
    %v3510 = vpop.f32.mrf.mxu0
    %v3511 = vpop.f32.mrf.mxu0
    %v3512 = vadd.f32 %v3273, %v3511
    %v3513 = vpop.f32.mrf.mxu0
    %3514 = vmatprep.mubr.bf16.mxu0 0
    %3515 = vmatmul.mubr.bf16.gmra.mxu0 %v3357
    %v3516 = vpop.f32.mrf.mxu0
    %v3517 = vadd.f32 %v3274, %v3516
    %v3518 = vpop.f32.mrf.mxu0
    %v3519 = vpop.f32.mrf.mxu0
    %v3520 = vadd.f32 %v3275, %v3519
    %v3521 = vpop.f32.mrf.mxu0
    %3522 = vmatprep.mubr.bf16.mxu0 0
    %3523 = vmatmul.mubr.bf16.gmra.mxu0 %v3360
    %v3524 = vpop.f32.mrf.mxu0
    %v3525 = vadd.f32 %v3276, %v3524
    %v3526 = vpop.f32.mrf.mxu0
    %v3527 = vpop.f32.mrf.mxu0
    %v3528 = vadd.f32 %v3277, %v3527
    %v3529 = vpop.f32.mrf.mxu0
    %3530 = vmatprep.mubr.bf16.mxu0 0
    %3531 = vmatmul.mubr.bf16.gmra.mxu0 %v3363
    %v3532 = vpop.f32.mrf.mxu0
    %v3533 = vadd.f32 %v3278, %v3532
    %v3534 = vpop.f32.mrf.mxu0
    %v3535 = vpop.f32.mrf.mxu0
    %v3536 = vadd.f32 %v3279, %v3535
    %v3537 = vpop.f32.mrf.mxu0
    %3538 = vmatprep.mubr.bf16.mxu0 0
    %3539 = vmatmul.mubr.bf16.gmra.mxu0 %v3366
    %v3540 = vpop.f32.mrf.mxu0
    %v3541 = vadd.f32 %v3280, %v3540
    %v3542 = vpop.f32.mrf.mxu0
    %v3543 = vpop.f32.mrf.mxu0
    %v3544 = vadd.f32 %v3281, %v3543
    %v3545 = vpop.f32.mrf.mxu0
    %3546 = vmatprep.mubr.bf16.mxu0 0
    %3547 = vmatmul.mubr.bf16.gmra.mxu0 %v3369
    %v3548 = vpop.f32.mrf.mxu0
    %v3549 = vadd.f32 %v3282, %v3548
    %v3550 = vpop.f32.mrf.mxu0
    %v3551 = vpop.f32.mrf.mxu0
    %v3552 = vadd.f32 %v3283, %v3551
    %v3553 = vpop.f32.mrf.mxu0
    %3554 = vmatprep.mubr.bf16.mxu0 0
    %3555 = vmatmul.mubr.bf16.gmra.mxu0 %v3372
    %v3556 = vpop.f32.mrf.mxu0
    %v3557 = vadd.f32 %v3284, %v3556
    %v3558 = vpop.f32.mrf.mxu0
    %v3559 = vpop.f32.mrf.mxu0
    %v3560 = vadd.f32 %v3285, %v3559
    %v3561 = vpop.f32.mrf.mxu0
    %3562 = vmatprep.mubr.bf16.mxu0 0
    %3563 = vmatmul.mubr.bf16.gmra.mxu0 %v3375
    %v3564 = vpop.f32.mrf.mxu0
    %v3565 = vadd.f32 %v3286, %v3564
    %v3566 = vpop.f32.mrf.mxu0
    %v3567 = vpop.f32.mrf.mxu0
    %v3568 = vadd.f32 %v3287, %v3567
    %v3569 = vpop.f32.mrf.mxu0
    %3570 = vmatprep.mubr.bf16.mxu0 0
    %3571 = vmatmul.mubr.bf16.gmra.mxu0 %v3378
    %v3572 = vpop.f32.mrf.mxu0
    %v3573 = vadd.f32 %v3288, %v3572
    %v3574 = vpop.f32.mrf.mxu0
    %v3575 = vpop.f32.mrf.mxu0
    %v3576 = vadd.f32 %v3289, %v3575
    %v3577 = vpop.f32.mrf.mxu0
    %3578 = vmatprep.mubr.bf16.mxu0 0
    %3579 = vmatmul.mubr.bf16.gmra.mxu0 %v3381
    %v3580 = vpop.f32.mrf.mxu0
    %v3581 = vadd.f32 %v3290, %v3580
    %v3582 = vpop.f32.mrf.mxu0
    %v3583 = vpop.f32.mrf.mxu0
    %v3584 = vadd.f32 %v3291, %v3583
    %v3585 = vpop.f32.mrf.mxu0
    %3586 = vmatprep.mubr.bf16.mxu0 0
    %3587 = vmatmul.mubr.bf16.gmra.mxu0 %v3384
    %v3588 = vpop.f32.mrf.mxu0
    %v3589 = vadd.f32 %v3292, %v3588
    %v3590 = vpop.f32.mrf.mxu0
    %v3591 = vpop.f32.mrf.mxu0
    %v3592 = vadd.f32 %v3293, %v3591
    %v3593 = vpop.f32.mrf.mxu0
    %3594 = vmatprep.mubr.bf16.mxu0 0
    %3595 = vmatmul.mubr.bf16.gmra.mxu0 %v3387
    %v3596 = vpop.f32.mrf.mxu0
    %v3597 = vadd.f32 %v3294, %v3596
    %v3598 = vpop.f32.mrf.mxu0
    %v3599 = vpop.f32.mrf.mxu0
    %v3600 = vadd.f32 %v3295, %v3599
    %v3601 = vpop.f32.mrf.mxu0
    %3602 = vmatprep.mubr.bf16.mxu0 0
    %3603 = vmatmul.mubr.bf16.gmra.mxu0 %v3390
    %v3604 = vpop.f32.mrf.mxu0
    %v3605 = vadd.f32 %v3296, %v3604
    %v3606 = vpop.f32.mrf.mxu0
    %v3607 = vpop.f32.mrf.mxu0
    %v3608 = vadd.f32 %v3297, %v3607
    %v3609 = vpop.f32.mrf.mxu0
    %3610 = vmatprep.mubr.bf16.mxu0 0
    %3611 = vmatmul.mubr.bf16.gmra.mxu0 %v3393
    %v3612 = vpop.f32.mrf.mxu0
    %v3613 = vadd.f32 %v3298, %v3612
    %v3614 = vpop.f32.mrf.mxu0
    %v3615 = vpop.f32.mrf.mxu0
    %v3616 = vadd.f32 %v3299, %v3615
    %v3617 = vpop.f32.mrf.mxu0
    %3618 = vmatprep.mubr.bf16.mxu0 0
    %3619 = vmatmul.mubr.bf16.gmra.mxu0 %v3396
    %v3620 = vpop.f32.mrf.mxu0
    %v3621 = vadd.f32 %v3300, %v3620
    %v3622 = vpop.f32.mrf.mxu0
    %v3623 = vpop.f32.mrf.mxu0
    %v3624 = vadd.f32 %v3301, %v3623
    %v3625 = vpop.f32.mrf.mxu0
    %3626 = vmatprep.mubr.bf16.mxu0 0
    %3627 = vmatmul.mubr.bf16.gmra.mxu0 %v3399
    %v3628 = vpop.f32.mrf.mxu0
    %v3629 = vadd.f32 %v3302, %v3628
    %v3630 = vpop.f32.mrf.mxu0
    %v3631 = vpop.f32.mrf.mxu0
    %v3632 = vadd.f32 %v3303, %v3631
    %v3633 = vpop.f32.mrf.mxu0
    %3634 = vmatprep.mubr.bf16.mxu0 0
    %3635 = vmatmul.mubr.bf16.gmra.mxu0 %v3402
    %v3636 = vpop.f32.mrf.mxu0
    %v3637 = vadd.f32 %v3304, %v3636
    %v3638 = vpop.f32.mrf.mxu0
    %v3639 = vpop.f32.mrf.mxu0
    %v3640 = vadd.f32 %v3305, %v3639
    %v3641 = vpop.f32.mrf.mxu0
    %3642 = vmatprep.mubr.bf16.mxu0 0
    %3643 = vmatmul.mubr.bf16.gmra.mxu0 %v3405
    %v3644 = vpop.f32.mrf.mxu0
    %v3645 = vadd.f32 %v3306, %v3644
    %v3646 = vpop.f32.mrf.mxu0
    %v3647 = vpop.f32.mrf.mxu0
    %v3648 = vadd.f32 %v3307, %v3647
    %v3649 = vpop.f32.mrf.mxu0
    %3650 = vmatprep.mubr.bf16.mxu0 0
    %3651 = vmatmul.mubr.bf16.gmra.mxu0 %v3408
    %v3652 = vpop.f32.mrf.mxu0
    %v3653 = vadd.f32 %v3308, %v3652
    %v3654 = vpop.f32.mrf.mxu0
    %v3655 = vpop.f32.mrf.mxu0
    %v3656 = vadd.f32 %v3309, %v3655
    %v3657 = vpop.f32.mrf.mxu0
    %3658 = vmatprep.mubr.bf16.mxu0 0
    %3659 = vmatmul.mubr.bf16.gmra.mxu0 %v3411
    %v3660 = vpop.f32.mrf.mxu0
    %v3661 = vadd.f32 %v3310, %v3660
    %v3662 = vpop.f32.mrf.mxu0
    %v3663 = vpop.f32.mrf.mxu0
    %v3664 = vadd.f32 %v3311, %v3663
    %v3665 = vpop.f32.mrf.mxu0
    %3666 = vmatprep.mubr.bf16.mxu0 0
    %3667 = vmatmul.mubr.bf16.gmra.mxu0 %v3414
    %v3668 = vpop.f32.mrf.mxu0
    %v3669 = vadd.f32 %v3312, %v3668
    %v3670 = vpop.f32.mrf.mxu0
    %v3671 = vpop.f32.mrf.mxu0
    %v3672 = vadd.f32 %v3313, %v3671
    %v3673 = vpop.f32.mrf.mxu0
    %3674 = vmatprep.mubr.bf16.mxu0 0
    %3675 = vmatmul.mubr.bf16.gmra.mxu0 %v3417
    %v3676 = vpop.f32.mrf.mxu0
    %v3677 = vadd.f32 %v3314, %v3676
    %v3678 = vpop.f32.mrf.mxu0
    %v3679 = vpop.f32.mrf.mxu0
    %v3680 = vadd.f32 %v3315, %v3679
    %v3681 = vpop.f32.mrf.mxu0
    %3682 = vmatprep.mubr.bf16.mxu0 0
    %3683 = vmatmul.mubr.bf16.gmra.mxu0 %v3420
    %v3684 = vpop.f32.mrf.mxu0
    %v3685 = vadd.f32 %v3316, %v3684
    %v3686 = vpop.f32.mrf.mxu0
    %v3687 = vpop.f32.mrf.mxu0
    %v3688 = vadd.f32 %v3317, %v3687
    %v3689 = vpop.f32.mrf.mxu0
    %3690 = vmatprep.mubr.bf16.mxu0 0
    %3691 = vmatmul.mubr.bf16.gmra.mxu0 %v3423
    %v3692 = vpop.f32.mrf.mxu0
    %v3693 = vadd.f32 %v3318, %v3692
    %v3694 = vpop.f32.mrf.mxu0
    %v3695 = vpop.f32.mrf.mxu0
    %v3696 = vadd.f32 %v3319, %v3695
    %v3697 = vpop.f32.mrf.mxu0
    %3698 = vmatprep.mubr.bf16.mxu0 0
    %3699 = vmatmul.mubr.bf16.gmra.mxu0 %v3426
    %v3700 = vpop.f32.mrf.mxu0
    %v3701 = vadd.f32 %v3320, %v3700
    %v3702 = vpop.f32.mrf.mxu0
    %v3703 = vpop.f32.mrf.mxu0
    %v3704 = vadd.f32 %v3321, %v3703
    %v3705 = vpop.f32.mrf.mxu0
    %3706 = vmatprep.mubr.bf16.mxu0 0
    %3707 = vmatmul.mubr.bf16.gmra.mxu0 %v3429
    %v3708 = vpop.f32.mrf.mxu0
    %v3709 = vadd.f32 %v3322, %v3708
    %v3710 = vpop.f32.mrf.mxu0
    %v3711 = vpop.f32.mrf.mxu0
    %v3712 = vadd.f32 %v3323, %v3711
    %v3713 = vpop.f32.mrf.mxu0
    %3714 = vmatprep.mubr.bf16.mxu0 0
    %3715 = vmatmul.mubr.bf16.gmra.mxu0 %v3432
    %v3716 = vpop.f32.mrf.mxu0
    %v3717 = vadd.f32 %v3324, %v3716
    %v3718 = vpop.f32.mrf.mxu0
    %v3719 = vpop.f32.mrf.mxu0
    %v3720 = vadd.f32 %v3325, %v3719
    %v3721 = vpop.f32.mrf.mxu0
    %3722 = vdwg.mxu0
    %v3723 = vlaneseq
    %v3724 = vshrl.u32 %v3723, 7
    %v3725 = vsub.s32 0, %v3724
    %v3726 = vrot.slane %v3261, %v3725
    %v3727 = vadd.f32 %v3469, %v3726
    %v3728 = vadd.f32 %v3472, %v3726
    %v3729 = vadd.f32 %v3477, %v3726
    %v3730 = vadd.f32 %v3480, %v3726
    %v3731 = vadd.f32 %v3485, %v3726
    %v3732 = vadd.f32 %v3488, %v3726
    %v3733 = vadd.f32 %v3493, %v3726
    %v3734 = vadd.f32 %v3496, %v3726
    %v3735 = vadd.f32 %v3501, %v3726
    %v3736 = vadd.f32 %v3504, %v3726
    %v3737 = vadd.f32 %v3509, %v3726
    %v3738 = vadd.f32 %v3512, %v3726
    %v3739 = vadd.f32 %v3517, %v3726
    %v3740 = vadd.f32 %v3520, %v3726
    %v3741 = vadd.f32 %v3525, %v3726
    %v3742 = vadd.f32 %v3528, %v3726
    %v3743 = vadd.f32 %v3533, %v3726
    %v3744 = vadd.f32 %v3536, %v3726
    %v3745 = vadd.f32 %v3541, %v3726
    %v3746 = vadd.f32 %v3544, %v3726
    %v3747 = vadd.f32 %v3549, %v3726
    %v3748 = vadd.f32 %v3552, %v3726
    %v3749 = vadd.f32 %v3557, %v3726
    %v3750 = vadd.f32 %v3560, %v3726
    %v3751 = vadd.f32 %v3565, %v3726
    %v3752 = vadd.f32 %v3568, %v3726
    %v3753 = vadd.f32 %v3573, %v3726
    %v3754 = vadd.f32 %v3576, %v3726
    %v3755 = vadd.f32 %v3581, %v3726
    %v3756 = vadd.f32 %v3584, %v3726
    %v3757 = vadd.f32 %v3589, %v3726
    %v3758 = vadd.f32 %v3592, %v3726
    %v3759 = vadd.f32 %v3597, %v3726
    %v3760 = vadd.f32 %v3600, %v3726
    %v3761 = vadd.f32 %v3605, %v3726
    %v3762 = vadd.f32 %v3608, %v3726
    %v3763 = vadd.f32 %v3613, %v3726
    %v3764 = vadd.f32 %v3616, %v3726
    %v3765 = vadd.f32 %v3621, %v3726
    %v3766 = vadd.f32 %v3624, %v3726
    %v3767 = vadd.f32 %v3629, %v3726
    %v3768 = vadd.f32 %v3632, %v3726
    %v3769 = vadd.f32 %v3637, %v3726
    %v3770 = vadd.f32 %v3640, %v3726
    %v3771 = vadd.f32 %v3645, %v3726
    %v3772 = vadd.f32 %v3648, %v3726
    %v3773 = vadd.f32 %v3653, %v3726
    %v3774 = vadd.f32 %v3656, %v3726
    %v3775 = vadd.f32 %v3661, %v3726
    %v3776 = vadd.f32 %v3664, %v3726
    %v3777 = vadd.f32 %v3669, %v3726
    %v3778 = vadd.f32 %v3672, %v3726
    %v3779 = vadd.f32 %v3677, %v3726
    %v3780 = vadd.f32 %v3680, %v3726
    %v3781 = vadd.f32 %v3685, %v3726
    %v3782 = vadd.f32 %v3688, %v3726
    %v3783 = vadd.f32 %v3693, %v3726
    %v3784 = vadd.f32 %v3696, %v3726
    %v3785 = vadd.f32 %v3701, %v3726
    %v3786 = vadd.f32 %v3704, %v3726
    %v3787 = vadd.f32 %v3709, %v3726
    %v3788 = vadd.f32 %v3712, %v3726
    %v3789 = vadd.f32 %v3717, %v3726
    %v3790 = vadd.f32 %v3720, %v3726
    %v3791 = vmax.f32 %v3727, 0.0
    %v3792 = vmax.f32 %v3728, 0.0
    %v3793 = vmax.f32 %v3729, 0.0
    %v3794 = vmax.f32 %v3730, 0.0
    %v3795 = vmax.f32 %v3731, 0.0
    %v3796 = vmax.f32 %v3732, 0.0
    %v3797 = vmax.f32 %v3733, 0.0
    %v3798 = vmax.f32 %v3734, 0.0
    %v3799 = vmax.f32 %v3735, 0.0
    %v3800 = vmax.f32 %v3736, 0.0
    %v3801 = vmax.f32 %v3737, 0.0
    %v3802 = vmax.f32 %v3738, 0.0
    %v3803 = vmax.f32 %v3739, 0.0
    %v3804 = vmax.f32 %v3740, 0.0
    %v3805 = vmax.f32 %v3741, 0.0
    %v3806 = vmax.f32 %v3742, 0.0
    %v3807 = vmax.f32 %v3743, 0.0
    %v3808 = vmax.f32 %v3744, 0.0
    %v3809 = vmax.f32 %v3745, 0.0
    %v3810 = vmax.f32 %v3746, 0.0
    %v3811 = vmax.f32 %v3747, 0.0
    %v3812 = vmax.f32 %v3748, 0.0
    %v3813 = vmax.f32 %v3749, 0.0
    %v3814 = vmax.f32 %v3750, 0.0
    %v3815 = vmax.f32 %v3751, 0.0
    %v3816 = vmax.f32 %v3752, 0.0
    %v3817 = vmax.f32 %v3753, 0.0
    %v3818 = vmax.f32 %v3754, 0.0
    %v3819 = vmax.f32 %v3755, 0.0
    %v3820 = vmax.f32 %v3756, 0.0
    %v3821 = vmax.f32 %v3757, 0.0
    %v3822 = vmax.f32 %v3758, 0.0
    %v3823 = vmax.f32 %v3759, 0.0
    %v3824 = vmax.f32 %v3760, 0.0
    %v3825 = vmax.f32 %v3761, 0.0
    %v3826 = vmax.f32 %v3762, 0.0
    %v3827 = vmax.f32 %v3763, 0.0
    %v3828 = vmax.f32 %v3764, 0.0
    %v3829 = vmax.f32 %v3765, 0.0
    %v3830 = vmax.f32 %v3766, 0.0
    %v3831 = vmax.f32 %v3767, 0.0
    %v3832 = vmax.f32 %v3768, 0.0
    %v3833 = vmax.f32 %v3769, 0.0
    %v3834 = vmax.f32 %v3770, 0.0
    %v3835 = vmax.f32 %v3771, 0.0
    %v3836 = vmax.f32 %v3772, 0.0
    %v3837 = vmax.f32 %v3773, 0.0
    %v3838 = vmax.f32 %v3774, 0.0
    %v3839 = vmax.f32 %v3775, 0.0
    %v3840 = vmax.f32 %v3776, 0.0
    %v3841 = vmax.f32 %v3777, 0.0
    %v3842 = vmax.f32 %v3778, 0.0
    %v3843 = vmax.f32 %v3779, 0.0
    %v3844 = vmax.f32 %v3780, 0.0
    %v3845 = vmax.f32 %v3781, 0.0
    %v3846 = vmax.f32 %v3782, 0.0
    %v3847 = vmax.f32 %v3783, 0.0
    %v3848 = vmax.f32 %v3784, 0.0
    %v3849 = vmax.f32 %v3785, 0.0
    %v3850 = vmax.f32 %v3786, 0.0
    %v3851 = vmax.f32 %v3787, 0.0
    %v3852 = vmax.f32 %v3788, 0.0
    %v3853 = vmax.f32 %v3789, 0.0
    %v3854 = vmax.f32 %v3790, 0.0
    %3855 = vst.msk [vmem:[#allocation12] sm:$0xff] %vm330, %v3791
    %3856 = vst.msk [vmem:[#allocation12 + $0x8] sm:$0xff] %vm330, %v3792
    %3857 = vst.msk [vmem:[#allocation12 + $0x10] sm:$0xff] %vm330, %v3793
    %3858 = vst.msk [vmem:[#allocation12 + $0x18] sm:$0xff] %vm330, %v3794
    %3859 = vst.msk [vmem:[#allocation12 + $0x20] sm:$0xff] %vm330, %v3795
    %3860 = vst.msk [vmem:[#allocation12 + $0x28] sm:$0xff] %vm330, %v3796
    %3861 = vst.msk [vmem:[#allocation12 + $0x30] sm:$0xff] %vm330, %v3797
    %3862 = vst.msk [vmem:[#allocation12 + $0x38] sm:$0xff] %vm330, %v3798
    %3863 = vst.msk [vmem:[#allocation12 + $0x40] sm:$0xff] %vm330, %v3799
    %3864 = vst.msk [vmem:[#allocation12 + $0x48] sm:$0xff] %vm330, %v3800
    %3865 = vst.msk [vmem:[#allocation12 + $0x50] sm:$0xff] %vm330, %v3801
    %3866 = vst.msk [vmem:[#allocation12 + $0x58] sm:$0xff] %vm330, %v3802
    %3867 = vst.msk [vmem:[#allocation12 + $0x60] sm:$0xff] %vm330, %v3803
    %3868 = vst.msk [vmem:[#allocation12 + $0x68] sm:$0xff] %vm330, %v3804
    %3869 = vst.msk [vmem:[#allocation12 + $0x70] sm:$0xff] %vm330, %v3805
    %3870 = vst.msk [vmem:[#allocation12 + $0x78] sm:$0xff] %vm330, %v3806
    %3871 = vst.msk [vmem:[#allocation12 + $0x80] sm:$0xff] %vm330, %v3807
    %3872 = vst.msk [vmem:[#allocation12 + $0x88] sm:$0xff] %vm330, %v3808
    %3873 = vst.msk [vmem:[#allocation12 + $0x90] sm:$0xff] %vm330, %v3809
    %3874 = vst.msk [vmem:[#allocation12 + $0x98] sm:$0xff] %vm330, %v3810
    %3875 = vst.msk [vmem:[#allocation12 + $0xa0] sm:$0xff] %vm330, %v3811
    %3876 = vst.msk [vmem:[#allocation12 + $0xa8] sm:$0xff] %vm330, %v3812
    %3877 = vst.msk [vmem:[#allocation12 + $0xb0] sm:$0xff] %vm330, %v3813
    %3878 = vst.msk [vmem:[#allocation12 + $0xb8] sm:$0xff] %vm330, %v3814
    %3879 = vst.msk [vmem:[#allocation12 + $0xc0] sm:$0xff] %vm330, %v3815
    %3880 = vst.msk [vmem:[#allocation12 + $0xc8] sm:$0xff] %vm330, %v3816
    %3881 = vst.msk [vmem:[#allocation12 + $0xd0] sm:$0xff] %vm330, %v3817
    %3882 = vst.msk [vmem:[#allocation12 + $0xd8] sm:$0xff] %vm330, %v3818
    %3883 = vst.msk [vmem:[#allocation12 + $0xe0] sm:$0xff] %vm330, %v3819
    %3884 = vst.msk [vmem:[#allocation12 + $0xe8] sm:$0xff] %vm330, %v3820
    %3885 = vst.msk [vmem:[#allocation12 + $0xf0] sm:$0xff] %vm330, %v3821
    %3886 = vst.msk [vmem:[#allocation12 + $0xf8] sm:$0xff] %vm330, %v3822
    %3887 = vst.msk [vmem:[#allocation12 + $0x100] sm:$0xff] %vm330, %v3823
    %3888 = vst.msk [vmem:[#allocation12 + $0x108] sm:$0xff] %vm330, %v3824
    %3889 = vst.msk [vmem:[#allocation12 + $0x110] sm:$0xff] %vm330, %v3825
    %3890 = vst.msk [vmem:[#allocation12 + $0x118] sm:$0xff] %vm330, %v3826
    %3891 = vst.msk [vmem:[#allocation12 + $0x120] sm:$0xff] %vm330, %v3827
    %3892 = vst.msk [vmem:[#allocation12 + $0x128] sm:$0xff] %vm330, %v3828
    %3893 = vst.msk [vmem:[#allocation12 + $0x130] sm:$0xff] %vm330, %v3829
    %3894 = vst.msk [vmem:[#allocation12 + $0x138] sm:$0xff] %vm330, %v3830
    %3895 = vst.msk [vmem:[#allocation12 + $0x140] sm:$0xff] %vm330, %v3831
    %3896 = vst.msk [vmem:[#allocation12 + $0x148] sm:$0xff] %vm330, %v3832
    %3897 = vst.msk [vmem:[#allocation12 + $0x150] sm:$0xff] %vm330, %v3833
    %3898 = vst.msk [vmem:[#allocation12 + $0x158] sm:$0xff] %vm330, %v3834
    %3899 = vst.msk [vmem:[#allocation12 + $0x160] sm:$0xff] %vm330, %v3835
    %3900 = vst.msk [vmem:[#allocation12 + $0x168] sm:$0xff] %vm330, %v3836
    %3901 = vst.msk [vmem:[#allocation12 + $0x170] sm:$0xff] %vm330, %v3837
    %3902 = vst.msk [vmem:[#allocation12 + $0x178] sm:$0xff] %vm330, %v3838
    %3903 = vst.msk [vmem:[#allocation12 + $0x180] sm:$0xff] %vm330, %v3839
    %3904 = vst.msk [vmem:[#allocation12 + $0x188] sm:$0xff] %vm330, %v3840
    %3905 = vst.msk [vmem:[#allocation12 + $0x190] sm:$0xff] %vm330, %v3841
    %3906 = vst.msk [vmem:[#allocation12 + $0x198] sm:$0xff] %vm330, %v3842
    %3907 = vst.msk [vmem:[#allocation12 + $0x1a0] sm:$0xff] %vm330, %v3843
    %3908 = vst.msk [vmem:[#allocation12 + $0x1a8] sm:$0xff] %vm330, %v3844
    %3909 = vst.msk [vmem:[#allocation12 + $0x1b0] sm:$0xff] %vm330, %v3845
    %3910 = vst.msk [vmem:[#allocation12 + $0x1b8] sm:$0xff] %vm330, %v3846
    %3911 = vst.msk [vmem:[#allocation12 + $0x1c0] sm:$0xff] %vm330, %v3847
    %3912 = vst.msk [vmem:[#allocation12 + $0x1c8] sm:$0xff] %vm330, %v3848
    %3913 = vst.msk [vmem:[#allocation12 + $0x1d0] sm:$0xff] %vm330, %v3849
    %3914 = vst.msk [vmem:[#allocation12 + $0x1d8] sm:$0xff] %vm330, %v3850
    %3915 = vst.msk [vmem:[#allocation12 + $0x1e0] sm:$0xff] %vm330, %v3851
    %3916 = vst.msk [vmem:[#allocation12 + $0x1e8] sm:$0xff] %vm330, %v3852
    %3917 = vst.msk [vmem:[#allocation12 + $0x1f0] sm:$0xff] %vm330, %v3853
    %3918 = vst.msk [vmem:[#allocation12 + $0x1f8] sm:$0xff] %vm330, %v3854
    // Predicated region
    $region34: #{tpu_custom_call.1} parent=1 // pred_check
      _
    $region35: #{tpu_custom_call.1} parent=1 // pred_check_branch
      %3920 = sbr.rel (0) target = $region37
    $region36: #{tpu_custom_call.1} parent=1 // pred_region
      %s3922 = ssub.s32 8192, 8192
      %3923 = vsyncadd [#allocation6], %s3922
      %s3924 = sshll.u32 [#allocation12], 4
      %s3925 = int_to_ptr.vmem [resolvable:$true] %s3924
      %3930 = dma.vmem_to_hbm [thread:$0]  %s3925, 8192, %s4, [#allocation6], 128, 128, 8
    $region37: #{tpu_custom_call.1} parent=1 // pred_fallthru
      _
    // Predicated region
    $region38: #{tpu_custom_call.1} parent=1 // pred_check
      _
    $region39: #{tpu_custom_call.1} parent=1 // pred_check_branch
      %3932 = sbr.rel (0) target = $region41
    $region40: #{tpu_custom_call.1} parent=1 // pred_region
      %3933 = dma.done [#allocation6], 8192
    $region41: #{tpu_custom_call.1} parent=1 // pred_fallthru
      _
    %3934 = vsyncpa [#allocation5], 1
    %3935 = vsyncpa [#allocation8], 1
    %3936 = vsyncpa [#allocation11], 1
    %3937 = vsyncpa [#allocation6], 1

</llo_original>
